<compile_context>
chip_gen: v5e
topology: v5e:2x2
jax: 0.10.0
libtpu: 0.0.40
codegen_flags: <defaults>
</compile_context>

<pallas_src>
import numpy as np
import jax
import jax.numpy as jnp
from jax.experimental import pallas as pl
from jax.experimental.pallas import tpu as pltpu


# ------------------------------------------------------------------- schedule / parameters

def channel_schedule(in_c, out_c, convs_per_block):
    # Mirrors torch.linspace (float32) followed by int() truncation: (4,8,4) -> [4,5,6,8]+[8].
    lin = np.linspace(np.float32(in_c), np.float32(out_c), convs_per_block, dtype=np.float32)
    chans = [int(v) for v in lin] + [int(out_c)]
    n_layers_1 = len(chans) // 2 - 1          # number of convs before the upsample
    return chans, n_layers_1


def init_params(key, chans):
    """Synthetic Conv2d(kernel_size=1) parameters: w_i (cout, cin), b_i (cout,)."""
    params = {}
    for i in range(1, len(chans)):
        cin, cout = chans[i - 1], chans[i]
        key, kw, kb = jax.random.split(key, 3)
        bound = 1.0 / np.sqrt(cin)
        params[f"w{i}"] = jax.random.uniform(kw, (cout, cin), jnp.float32, -bound, bound)
        params[f"b{i}"] = jax.random.uniform(kb, (cout,), jnp.float32, -bound, bound)
    return params


def pack_params(params, chans):
    """Pack all weights+biases into one small f32 table (lands in SMEM via scalar prefetch).
    Layer i occupies rows [0, cout) of columns [off, off+cin]: weights, then bias."""
    rows = max(chans[1:])
    cols = sum(chans[i - 1] + 1 for i in range(1, len(chans)))
    P = np.zeros((rows, cols), np.float32)
    col_offs, col = [], 0
    for i in range(1, len(chans)):
        cin, cout = chans[i - 1], chans[i]
        P[:cout, col:col + cin] = np.asarray(params[f"w{i}"])
        P[:cout, col + cin] = np.asarray(params[f"b{i}"])
        col_offs.append(col)
        col += cin + 1
    return jnp.asarray(P), tuple(col_offs)


# ------------------------------------------------------------------- bilinear interpolation

def bilinear_matrix(in_size, out_size):
    """1-D interpolation matrix matching F.interpolate(mode='bilinear', align_corners=False):
    src = max((o+0.5)*scale - 0.5, 0), indices clamped, duplicate taps accumulated."""
    scale = in_size / out_size
    M = np.zeros((out_size, in_size), dtype=np.float32)
    for o in range(out_size):
        src = max((o + 0.5) * scale - 0.5, 0.0)
        i0 = min(int(np.floor(src)), in_size - 1)
        i1 = min(i0 + 1, in_size - 1)
        l1 = src - i0
        M[o, i0] += 1.0 - l1
        M[o, i1] += l1
    return M


def banded_height_matrix(H, TH):
    """Banded form of the (2H, H) height matrix.  Output slab t only touches input rows
    [t*TH-1, (t+1)*TH] (clamped), i.e. a THI = min(TH+2, H) wide window starting at
    r0(t) = clip(t*TH - 1, 0, H - THI).  Returns band of shape (GH, 2*TH, THI)."""
    GH = H // TH
    THI = min(TH + 2, H)
    Mh = bilinear_matrix(H, 2 * H)
    band = np.zeros((GH, 2 * TH, THI), np.float32)
    for t in range(GH):
        r0 = int(np.clip(t * TH - 1, 0, H - THI))
        band[t] = Mh[2 * t * TH: 2 * (t + 1) * TH, r0:r0 + THI]
        assert np.allclose(band[t].sum(-1), 1.0)   # no interpolation mass falls outside window
    return band, THI


# ------------------------------------------------------------------------------------ kernel

def make_kernel(chans, col_offs, n_layers_1, H, TH, THI):
    n_layers = len(chans) - 1

    def kernel(pp_ref, mh_ref, mwt_ref, x_ref, o_ref):
        # pp_ref : (rows, cols)       f32  SMEM -- packed 1x1-conv weights/biases (scalar reads)
        # mh_ref : (2*TH, THI)        bf16 VMEM -- banded height-interp slab for this t
        # mwt_ref: (W, 2*W)           bf16 VMEM -- width-interp matrix (transposed), constant
        # x_ref  : (Cin, H, W)        f32  VMEM -- one image (resident across the t loop)
        # o_ref  : (Cout, 2*TH, 2*W)  bf16 VMEM -- one output row-slab, NCHW layout
        f32, bf16 = jnp.float32, jnp.bfloat16
        t = pl.program_id(1)
        r0 = jnp.clip(t * TH - 1, 0, H - THI)     # input-row window start for this slab

        def channel_mix(planes, layer, out_ref=None):
            # 1x1 conv + bias + ReLU (last=False -> ReLU after every conv): unrolled VPU FMAs
            # with scalar weights broadcast from SMEM.  If out_ref is given, each finished
            # output channel is stored immediately (caps live planes at ~cin+1).
            col = col_offs[layer]
            cin, cout = chans[layer], chans[layer + 1]
            outs = []
            for o in range(cout):
                acc = planes[0] * pp_ref[o, col]
                for c in range(1, cin):
                    acc = acc + planes[c] * pp_ref[o, col + c]
                acc = jnp.maximum(acc + pp_ref[o, col + cin], 0.0)   # bias + ReLU
                if out_ref is None:
                    outs.append(acc)
                else:
                    out_ref[o] = acc.astype(out_ref.dtype)
            return outs

        # ---- layers_1 on the slab-local (THI, W) input window, f32 math ----
        planes = [x_ref[c, pl.ds(r0, THI), :] for c in range(chans[0])]
        for l in range(n_layers_1):
            planes = channel_mix(planes, l)

        # ---- separable bilinear 2x upsample for this slab of output rows ----
        #   up = Mh_band[t] @ plane @ Mw^T   (bf16 MXU operands, f32 accumulation)
        mh = mh_ref[...]
        mwt = mwt_ref[...]
        planes = [
            jnp.dot(
                jnp.dot(mh, p.astype(bf16), preferred_element_type=f32).astype(bf16),
                mwt, preferred_element_type=f32)
            for p in planes
        ]
        # NOTE: the dense (W, 2W) width matmul is O(W)-inflated (only 2 taps per output
        # column are nonzero); at very large W (v5e MXU-bound regime) tile W with banded
        # MwT slabs just like the banded Mh above.

        # ---- layers_2 at output resolution (2*TH, 2*W); last layer streams into o_ref ----
        for l in range(n_layers_1, n_layers - 1):
            planes = channel_mix(planes, l)
        channel_mix(planes, n_layers - 1, out_ref=o_ref)

    return kernel


def conv_block_pallas(x_nchw, packed_params, col_offs, chans, n_layers_1, h_tile=None):
    N, Cin, H, W = x_nchw.shape
    assert Cin == chans[0]
    Cout = chans[-1]
    n_layers = len(chans) - 1
    TH = H if h_tile is None else int(h_tile)
    assert H % TH == 0 and (2 * TH) % 8 == 0
    GH = H // TH                                           # output row-slabs per image

    band, THI = banded_height_matrix(H, TH)
    mh_band = jnp.asarray(band, jnp.bfloat16)              # {0,.25,.75,1}: exact in bf16
    mwt = jnp.asarray(bilinear_matrix(W, 2 * W).T, jnp.bfloat16)

    kernel = make_kernel(chans, col_offs, n_layers_1, H, TH, THI)

    # TODO(synk): at very large H, switch the input to memory_space=pl.ANY + a manual halo
    # DMA so the resident VMEM block is (Cin, THI, W) rather than (Cin, H, W); a Blocked
    # BlockSpec cannot express the overlapping +/-1-row halo window.
    grid_spec = pltpu.PrefetchScalarGridSpec(
        num_scalar_prefetch=1,                             # packed weights/biases -> SMEM
        grid=(N, GH),
        in_specs=[
            pl.BlockSpec((None, 2 * TH, THI), lambda n, t, pp: (t, 0, 0)),   # banded Mh slab
            pl.BlockSpec((W, 2 * W), lambda n, t, pp: (0, 0)),               # Mw^T (constant)
            pl.BlockSpec((None, Cin, H, W), lambda n, t, pp: (n, 0, 0, 0)),  # input image
        ],
        out_specs=pl.BlockSpec((None, Cout, 2 * TH, 2 * W),
                               lambda n, t, pp: (n, 0, t, 0)),
    )

    # advisory cost estimate for the XLA scheduler
    mix1 = 2 * sum(chans[i] * chans[i + 1] for i in range(n_layers_1))
    mix2 = 2 * sum(chans[i] * chans[i + 1] for i in range(n_layers_1, n_layers))
    C1 = chans[n_layers_1]
    flops = int(N * GH * THI * W * mix1
                + 2 * N * GH * C1 * (2 * TH * THI * W + 2 * TH * W * 2 * W)
                + N * 4 * H * W * mix2)
    bytes_accessed = int(x_nchw.size * 4                      # f32 input read
                         + N * Cout * 4 * H * W * 2           # bf16 output write
                         + N * (mh_band.size + GH * mwt.size) * 2
                         + packed_params.size * 4)

    return pl.pallas_call(
        kernel,
        out_shape=jax.ShapeDtypeStruct((N, Cout, 2 * H, 2 * W), jnp.bfloat16),
        grid_spec=grid_spec,
        compiler_params=pltpu.CompilerParams(
            # shard the batch axis across TensorCores only: the input block is keyed on n,
            # so splitting the t axis would duplicate the per-image input DMA on v7x.
            dimension_semantics=("parallel", "arbitrary"),
            vmem_limit_bytes=32 * 1024 * 1024),
        cost_estimate=pl.CostEstimate(flops=flops, transcendentals=0,
                                      bytes_accessed=bytes_accessed),
    )(packed_params, mh_band, mwt, x_nchw)


# --------------------------------------------------------------------------------- reference

def conv_block_ref(x_nchw, params, chans, n_layers_1):
    """Pure-JAX f32 reference of the same math (the kernel additionally rounds the MXU
    upsample operands and the output to bf16, hence the tolerance in main)."""
    hp = jax.lax.Precision.HIGHEST
    n_layers = len(chans) - 1
    H, W = x_nchw.shape[2:]
    mh = jnp.asarray(bilinear_matrix(H, 2 * H))            # (2H, H)
    mwt = jnp.asarray(bilinear_matrix(W, 2 * W).T)         # (W, 2W)

    def conv(y, i):
        w, b = params[f"w{i}"], params[f"b{i}"]
        y = jnp.einsum("oc,nchw->nohw", w, y, precision=hp) + b[None, :, None, None]
        return jax.nn.relu(y)

    y = x_nchw
    for i in range(1, n_layers_1 + 1):
        y = conv(y, i)
    y = jnp.einsum("uh,nchw->ncuw", mh, y, precision=hp)
    y = jnp.einsum("nchw,wv->nchv", y, mwt, precision=hp)
    for i in range(n_layers_1 + 1, n_layers + 1):
        y = conv(y, i)
    return y


# -------------------------------------------------------------------------------------- main

if __name__ == "__main__":
    key = jax.random.PRNGKey(0)
    kx, kp = jax.random.split(key)

    # ConvBlock(4, 8, convs_per_block=4, last=False).  W chosen so 2*W = 128 -> lane-dense
    # (unmasked) output stores.  Production h_tile should target 2*TH >= 128 (v6e/v7x MXU
    # M dim, re-derived against per-generation VMEM); the demo image only has 16 rows, so
    # h_tile=8 just exercises the slab tiling (grid = (2 images, 2 row-slabs)).
    N, Cin, Cout, H, W = 2, 4, 8, 16, 64
    chans, n_layers_1 = channel_schedule(Cin, Cout, 4)     # [4, 5, 6, 8, 8], 1

    x = jax.random.normal(kx, (N, Cin, H, W), dtype=jnp.float32)
    params = init_params(kp, chans)
    packed, col_offs = pack_params(params, chans)

    out = conv_block_pallas(x, packed, col_offs, chans, n_layers_1, h_tile=8)
    out = jax.block_until_ready(out)
    assert out.shape == (N, Cout, 2 * H, 2 * W) and out.dtype == jnp.bfloat16, (out.shape, out.dtype)

    ref = conv_block_ref(x, params, chans, n_layers_1)
    # tolerance covers the intentional bf16 rounding of the MXU operands and the bf16 output
    np.testing.assert_allclose(np.asarray(out.astype(jnp.float32)), np.asarray(ref),
                               rtol=2e-2, atol=2e-2)
    print("KERNEL_OK")
</pallas_src>

<mosaic_0001>
module attributes {stable_mosaic.version = 11 : i64} {
  func.func @kernel(%arg0: i32, %arg1: i32, %arg2: memref<8x27xf32, #tpu.memory_space<smem>>, %arg3: memref<1x16x10xbf16, #tpu.memory_space<vmem>>, %arg4: memref<64x128xbf16, #tpu.memory_space<vmem>>, %arg5: memref<1x4x16x64xf32, #tpu.memory_space<vmem>>, %arg6: memref<1x8x16x128xbf16, #tpu.memory_space<vmem>>) attributes {dimension_semantics = [#tpu.dimension_semantics<parallel>, #tpu.dimension_semantics<arbitrary>], iteration_bounds = array<i64: 2, 2>, scalar_prefetch = 1 : i64, scratch_operands = 0 : i64, tpu.core_type = #tpu.core_type<tc>, window_params = [{transform_indices = @transform_0, window_bounds = array<i64: 1, 16, 10>}, {pipeline_mode = #tpu.pipeline_mode<synchronous>, transform_indices = @transform_1, window_bounds = array<i64: 64, 128>}, {transform_indices = @transform_2, window_bounds = array<i64: 1, 4, 16, 64>}, {transform_indices = @transform_3, window_bounds = array<i64: 1, 8, 16, 128>}]} {
    %c8_i32 = arith.constant 8 : i32
    %0 = arith.muli %arg1, %c8_i32 : i32
    %c1_i32 = arith.constant 1 : i32
    %1 = arith.subi %0, %c1_i32 : i32
    %c0_i32 = arith.constant 0 : i32
    %c6_i32 = arith.constant 6 : i32
    %2 = arith.maxsi %c0_i32, %1 : i32
    %3 = arith.minsi %c6_i32, %2 : i32
    %c0 = arith.constant 0 : index
    %c0_0 = arith.constant 0 : index
    %4 = arith.index_cast %3 : i32 to index
    %c0_1 = arith.constant 0 : index
    %5 = vector.load %arg5[%c0, %c0_0, %4, %c0_1] : memref<1x4x16x64xf32, #tpu.memory_space<vmem>>, vector<1x1x10x64xf32>
    %6 = vector.shape_cast %5 : vector<1x1x10x64xf32> to vector<10x64xf32>
    %c0_2 = arith.constant 0 : index
    %c1 = arith.constant 1 : index
    %7 = arith.index_cast %3 : i32 to index
    %c0_3 = arith.constant 0 : index
    %8 = vector.load %arg5[%c0_2, %c1, %7, %c0_3] : memref<1x4x16x64xf32, #tpu.memory_space<vmem>>, vector<1x1x10x64xf32>
    %9 = vector.shape_cast %8 : vector<1x1x10x64xf32> to vector<10x64xf32>
    %c0_4 = arith.constant 0 : index
    %c2 = arith.constant 2 : index
    %10 = arith.index_cast %3 : i32 to index
    %c0_5 = arith.constant 0 : index
    %11 = vector.load %arg5[%c0_4, %c2, %10, %c0_5] : memref<1x4x16x64xf32, #tpu.memory_space<vmem>>, vector<1x1x10x64xf32>
    %12 = vector.shape_cast %11 : vector<1x1x10x64xf32> to vector<10x64xf32>
    %c0_6 = arith.constant 0 : index
    %c3 = arith.constant 3 : index
    %13 = arith.index_cast %3 : i32 to index
    %c0_7 = arith.constant 0 : index
    %14 = vector.load %arg5[%c0_6, %c3, %13, %c0_7] : memref<1x4x16x64xf32, #tpu.memory_space<vmem>>, vector<1x1x10x64xf32>
    %15 = vector.shape_cast %14 : vector<1x1x10x64xf32> to vector<10x64xf32>
    %c0_8 = arith.constant 0 : index
    %c0_9 = arith.constant 0 : index
    %16 = memref.load %arg2[%c0_8, %c0_9] : memref<8x27xf32, #tpu.memory_space<smem>>
    %17 = vector.broadcast %16 : f32 to vector<10x64xf32>
    %18 = arith.mulf %6, %17 : vector<10x64xf32>
    %c0_10 = arith.constant 0 : index
    %c1_11 = arith.constant 1 : index
    %19 = memref.load %arg2[%c0_10, %c1_11] : memref<8x27xf32, #tpu.memory_space<smem>>
    %20 = vector.broadcast %19 : f32 to vector<10x64xf32>
    %21 = arith.mulf %9, %20 : vector<10x64xf32>
    %22 = arith.addf %18, %21 : vector<10x64xf32>
    %c0_12 = arith.constant 0 : index
    %c2_13 = arith.constant 2 : index
    %23 = memref.load %arg2[%c0_12, %c2_13] : memref<8x27xf32, #tpu.memory_space<smem>>
    %24 = vector.broadcast %23 : f32 to vector<10x64xf32>
    %25 = arith.mulf %12, %24 : vector<10x64xf32>
    %26 = arith.addf %22, %25 : vector<10x64xf32>
    %c0_14 = arith.constant 0 : index
    %c3_15 = arith.constant 3 : index
    %27 = memref.load %arg2[%c0_14, %c3_15] : memref<8x27xf32, #tpu.memory_space<smem>>
    %28 = vector.broadcast %27 : f32 to vector<10x64xf32>
    %29 = arith.mulf %15, %28 : vector<10x64xf32>
    %30 = arith.addf %26, %29 : vector<10x64xf32>
    %c0_16 = arith.constant 0 : index
    %c4 = arith.constant 4 : index
    %31 = memref.load %arg2[%c0_16, %c4] : memref<8x27xf32, #tpu.memory_space<smem>>
    %32 = vector.broadcast %31 : f32 to vector<10x64xf32>
    %33 = arith.addf %30, %32 : vector<10x64xf32>
    %cst = arith.constant 0.000000e+00 : f32
    %34 = vector.broadcast %cst : f32 to vector<10x64xf32>
    %35 = arith.maximumf %33, %34 : vector<10x64xf32>
    %c1_17 = arith.constant 1 : index
    %c0_18 = arith.constant 0 : index
    %36 = memref.load %arg2[%c1_17, %c0_18] : memref<8x27xf32, #tpu.memory_space<smem>>
    %37 = vector.broadcast %36 : f32 to vector<10x64xf32>
    %38 = arith.mulf %6, %37 : vector<10x64xf32>
    %c1_19 = arith.constant 1 : index
    %c1_20 = arith.constant 1 : index
    %39 = memref.load %arg2[%c1_19, %c1_20] : memref<8x27xf32, #tpu.memory_space<smem>>
    %40 = vector.broadcast %39 : f32 to vector<10x64xf32>
    %41 = arith.mulf %9, %40 : vector<10x64xf32>
    %42 = arith.addf %38, %41 : vector<10x64xf32>
    %c1_21 = arith.constant 1 : index
    %c2_22 = arith.constant 2 : index
    %43 = memref.load %arg2[%c1_21, %c2_22] : memref<8x27xf32, #tpu.memory_space<smem>>
    %44 = vector.broadcast %43 : f32 to vector<10x64xf32>
    %45 = arith.mulf %12, %44 : vector<10x64xf32>
    %46 = arith.addf %42, %45 : vector<10x64xf32>
    %c1_23 = arith.constant 1 : index
    %c3_24 = arith.constant 3 : index
    %47 = memref.load %arg2[%c1_23, %c3_24] : memref<8x27xf32, #tpu.memory_space<smem>>
    %48 = vector.broadcast %47 : f32 to vector<10x64xf32>
    %49 = arith.mulf %15, %48 : vector<10x64xf32>
    %50 = arith.addf %46, %49 : vector<10x64xf32>
    %c1_25 = arith.constant 1 : index
    %c4_26 = arith.constant 4 : index
    %51 = memref.load %arg2[%c1_25, %c4_26] : memref<8x27xf32, #tpu.memory_space<smem>>
    %52 = vector.broadcast %51 : f32 to vector<10x64xf32>
    %53 = arith.addf %50, %52 : vector<10x64xf32>
    %cst_27 = arith.constant 0.000000e+00 : f32
    %54 = vector.broadcast %cst_27 : f32 to vector<10x64xf32>
    %55 = arith.maximumf %53, %54 : vector<10x64xf32>
    %c2_28 = arith.constant 2 : index
    %c0_29 = arith.constant 0 : index
    %56 = memref.load %arg2[%c2_28, %c0_29] : memref<8x27xf32, #tpu.memory_space<smem>>
    %57 = vector.broadcast %56 : f32 to vector<10x64xf32>
    %58 = arith.mulf %6, %57 : vector<10x64xf32>
    %c2_30 = arith.constant 2 : index
    %c1_31 = arith.constant 1 : index
    %59 = memref.load %arg2[%c2_30, %c1_31] : memref<8x27xf32, #tpu.memory_space<smem>>
    %60 = vector.broadcast %59 : f32 to vector<10x64xf32>
    %61 = arith.mulf %9, %60 : vector<10x64xf32>
    %62 = arith.addf %58, %61 : vector<10x64xf32>
    %c2_32 = arith.constant 2 : index
    %c2_33 = arith.constant 2 : index
    %63 = memref.load %arg2[%c2_32, %c2_33] : memref<8x27xf32, #tpu.memory_space<smem>>
    %64 = vector.broadcast %63 : f32 to vector<10x64xf32>
    %65 = arith.mulf %12, %64 : vector<10x64xf32>
    %66 = arith.addf %62, %65 : vector<10x64xf32>
    %c2_34 = arith.constant 2 : index
    %c3_35 = arith.constant 3 : index
    %67 = memref.load %arg2[%c2_34, %c3_35] : memref<8x27xf32, #tpu.memory_space<smem>>
    %68 = vector.broadcast %67 : f32 to vector<10x64xf32>
    %69 = arith.mulf %15, %68 : vector<10x64xf32>
    %70 = arith.addf %66, %69 : vector<10x64xf32>
    %c2_36 = arith.constant 2 : index
    %c4_37 = arith.constant 4 : index
    %71 = memref.load %arg2[%c2_36, %c4_37] : memref<8x27xf32, #tpu.memory_space<smem>>
    %72 = vector.broadcast %71 : f32 to vector<10x64xf32>
    %73 = arith.addf %70, %72 : vector<10x64xf32>
    %cst_38 = arith.constant 0.000000e+00 : f32
    %74 = vector.broadcast %cst_38 : f32 to vector<10x64xf32>
    %75 = arith.maximumf %73, %74 : vector<10x64xf32>
    %c3_39 = arith.constant 3 : index
    %c0_40 = arith.constant 0 : index
    %76 = memref.load %arg2[%c3_39, %c0_40] : memref<8x27xf32, #tpu.memory_space<smem>>
    %77 = vector.broadcast %76 : f32 to vector<10x64xf32>
    %78 = arith.mulf %6, %77 : vector<10x64xf32>
    %c3_41 = arith.constant 3 : index
    %c1_42 = arith.constant 1 : index
    %79 = memref.load %arg2[%c3_41, %c1_42] : memref<8x27xf32, #tpu.memory_space<smem>>
    %80 = vector.broadcast %79 : f32 to vector<10x64xf32>
    %81 = arith.mulf %9, %80 : vector<10x64xf32>
    %82 = arith.addf %78, %81 : vector<10x64xf32>
    %c3_43 = arith.constant 3 : index
    %c2_44 = arith.constant 2 : index
    %83 = memref.load %arg2[%c3_43, %c2_44] : memref<8x27xf32, #tpu.memory_space<smem>>
    %84 = vector.broadcast %83 : f32 to vector<10x64xf32>
    %85 = arith.mulf %12, %84 : vector<10x64xf32>
    %86 = arith.addf %82, %85 : vector<10x64xf32>
    %c3_45 = arith.constant 3 : index
    %c3_46 = arith.constant 3 : index
    %87 = memref.load %arg2[%c3_45, %c3_46] : memref<8x27xf32, #tpu.memory_space<smem>>
    %88 = vector.broadcast %87 : f32 to vector<10x64xf32>
    %89 = arith.mulf %15, %88 : vector<10x64xf32>
    %90 = arith.addf %86, %89 : vector<10x64xf32>
    %c3_47 = arith.constant 3 : index
    %c4_48 = arith.constant 4 : index
    %91 = memref.load %arg2[%c3_47, %c4_48] : memref<8x27xf32, #tpu.memory_space<smem>>
    %92 = vector.broadcast %91 : f32 to vector<10x64xf32>
    %93 = arith.addf %90, %92 : vector<10x64xf32>
    %cst_49 = arith.constant 0.000000e+00 : f32
    %94 = vector.broadcast %cst_49 : f32 to vector<10x64xf32>
    %95 = arith.maximumf %93, %94 : vector<10x64xf32>
    %c4_50 = arith.constant 4 : index
    %c0_51 = arith.constant 0 : index
    %96 = memref.load %arg2[%c4_50, %c0_51] : memref<8x27xf32, #tpu.memory_space<smem>>
    %97 = vector.broadcast %96 : f32 to vector<10x64xf32>
    %98 = arith.mulf %6, %97 : vector<10x64xf32>
    %c4_52 = arith.constant 4 : index
    %c1_53 = arith.constant 1 : index
    %99 = memref.load %arg2[%c4_52, %c1_53] : memref<8x27xf32, #tpu.memory_space<smem>>
    %100 = vector.broadcast %99 : f32 to vector<10x64xf32>
    %101 = arith.mulf %9, %100 : vector<10x64xf32>
    %102 = arith.addf %98, %101 : vector<10x64xf32>
    %c4_54 = arith.constant 4 : index
    %c2_55 = arith.constant 2 : index
    %103 = memref.load %arg2[%c4_54, %c2_55] : memref<8x27xf32, #tpu.memory_space<smem>>
    %104 = vector.broadcast %103 : f32 to vector<10x64xf32>
    %105 = arith.mulf %12, %104 : vector<10x64xf32>
    %106 = arith.addf %102, %105 : vector<10x64xf32>
    %c4_56 = arith.constant 4 : index
    %c3_57 = arith.constant 3 : index
    %107 = memref.load %arg2[%c4_56, %c3_57] : memref<8x27xf32, #tpu.memory_space<smem>>
    %108 = vector.broadcast %107 : f32 to vector<10x64xf32>
    %109 = arith.mulf %15, %108 : vector<10x64xf32>
    %110 = arith.addf %106, %109 : vector<10x64xf32>
    %c4_58 = arith.constant 4 : index
    %c4_59 = arith.constant 4 : index
    %111 = memref.load %arg2[%c4_58, %c4_59] : memref<8x27xf32, #tpu.memory_space<smem>>
    %112 = vector.broadcast %111 : f32 to vector<10x64xf32>
    %113 = arith.addf %110, %112 : vector<10x64xf32>
    %cst_60 = arith.constant 0.000000e+00 : f32
    %114 = vector.broadcast %cst_60 : f32 to vector<10x64xf32>
    %115 = arith.maximumf %113, %114 : vector<10x64xf32>
    %c0_61 = arith.constant 0 : index
    %c0_62 = arith.constant 0 : index
    %c0_63 = arith.constant 0 : index
    %116 = vector.load %arg3[%c0_61, %c0_62, %c0_63] : memref<1x16x10xbf16, #tpu.memory_space<vmem>>, vector<1x16x10xbf16>
    %117 = vector.shape_cast %116 : vector<1x16x10xbf16> to vector<16x10xbf16>
    %c0_64 = arith.constant 0 : index
    %c0_65 = arith.constant 0 : index
    %118 = vector.load %arg4[%c0_64, %c0_65] : memref<64x128xbf16, #tpu.memory_space<vmem>>, vector<64x128xbf16>
    %119 = arith.truncf %35 : vector<10x64xf32> to vector<10x64xbf16>
    %cst_66 = arith.constant dense<0.000000e+00> : vector<16x64xf32>
    %120 = tpu.matmul %117, %119, %cst_66 {dimension_numbers = #tpu.dot_dimension_numbers<[1], [0], [0], [1], [0, 0, 1, 1], [], []>} : vector<16x10xbf16>, vector<10x64xbf16>, vector<16x64xf32> -> vector<16x64xf32>
    %121 = arith.truncf %120 : vector<16x64xf32> to vector<16x64xbf16>
    %cst_67 = arith.constant dense<0.000000e+00> : vector<16x128xf32>
    %122 = tpu.matmul %121, %118, %cst_67 {dimension_numbers = #tpu.dot_dimension_numbers<[1], [0], [0], [1], [0, 0, 1, 1], [], []>} : vector<16x64xbf16>, vector<64x128xbf16>, vector<16x128xf32> -> vector<16x128xf32>
    %123 = arith.truncf %55 : vector<10x64xf32> to vector<10x64xbf16>
    %cst_68 = arith.constant dense<0.000000e+00> : vector<16x64xf32>
    %124 = tpu.matmul %117, %123, %cst_68 {dimension_numbers = #tpu.dot_dimension_numbers<[1], [0], [0], [1], [0, 0, 1, 1], [], []>} : vector<16x10xbf16>, vector<10x64xbf16>, vector<16x64xf32> -> vector<16x64xf32>
    %125 = arith.truncf %124 : vector<16x64xf32> to vector<16x64xbf16>
    %cst_69 = arith.constant dense<0.000000e+00> : vector<16x128xf32>
    %126 = tpu.matmul %125, %118, %cst_69 {dimension_numbers = #tpu.dot_dimension_numbers<[1], [0], [0], [1], [0, 0, 1, 1], [], []>} : vector<16x64xbf16>, vector<64x128xbf16>, vector<16x128xf32> -> vector<16x128xf32>
    %127 = arith.truncf %75 : vector<10x64xf32> to vector<10x64xbf16>
    %cst_70 = arith.constant dense<0.000000e+00> : vector<16x64xf32>
    %128 = tpu.matmul %117, %127, %cst_70 {dimension_numbers = #tpu.dot_dimension_numbers<[1], [0], [0], [1], [0, 0, 1, 1], [], []>} : vector<16x10xbf16>, vector<10x64xbf16>, vector<16x64xf32> -> vector<16x64xf32>
    %129 = arith.truncf %128 : vector<16x64xf32> to vector<16x64xbf16>
    %cst_71 = arith.constant dense<0.000000e+00> : vector<16x128xf32>
    %130 = tpu.matmul %129, %118, %cst_71 {dimension_numbers = #tpu.dot_dimension_numbers<[1], [0], [0], [1], [0, 0, 1, 1], [], []>} : vector<16x64xbf16>, vector<64x128xbf16>, vector<16x128xf32> -> vector<16x128xf32>
    %131 = arith.truncf %95 : vector<10x64xf32> to vector<10x64xbf16>
    %cst_72 = arith.constant dense<0.000000e+00> : vector<16x64xf32>
    %132 = tpu.matmul %117, %131, %cst_72 {dimension_numbers = #tpu.dot_dimension_numbers<[1], [0], [0], [1], [0, 0, 1, 1], [], []>} : vector<16x10xbf16>, vector<10x64xbf16>, vector<16x64xf32> -> vector<16x64xf32>
    %133 = arith.truncf %132 : vector<16x64xf32> to vector<16x64xbf16>
    %cst_73 = arith.constant dense<0.000000e+00> : vector<16x128xf32>
    %134 = tpu.matmul %133, %118, %cst_73 {dimension_numbers = #tpu.dot_dimension_numbers<[1], [0], [0], [1], [0, 0, 1, 1], [], []>} : vector<16x64xbf16>, vector<64x128xbf16>, vector<16x128xf32> -> vector<16x128xf32>
    %135 = arith.truncf %115 : vector<10x64xf32> to vector<10x64xbf16>
    %cst_74 = arith.constant dense<0.000000e+00> : vector<16x64xf32>
    %136 = tpu.matmul %117, %135, %cst_74 {dimension_numbers = #tpu.dot_dimension_numbers<[1], [0], [0], [1], [0, 0, 1, 1], [], []>} : vector<16x10xbf16>, vector<10x64xbf16>, vector<16x64xf32> -> vector<16x64xf32>
    %137 = arith.truncf %136 : vector<16x64xf32> to vector<16x64xbf16>
    %cst_75 = arith.constant dense<0.000000e+00> : vector<16x128xf32>
    %138 = tpu.matmul %137, %118, %cst_75 {dimension_numbers = #tpu.dot_dimension_numbers<[1], [0], [0], [1], [0, 0, 1, 1], [], []>} : vector<16x64xbf16>, vector<64x128xbf16>, vector<16x128xf32> -> vector<16x128xf32>
    %c0_76 = arith.constant 0 : index
    %c5 = arith.constant 5 : index
    %139 = memref.load %arg2[%c0_76, %c5] : memref<8x27xf32, #tpu.memory_space<smem>>
    %140 = vector.broadcast %139 : f32 to vector<16x128xf32>
    %141 = arith.mulf %122, %140 : vector<16x128xf32>
    %c0_77 = arith.constant 0 : index
    %c6 = arith.constant 6 : index
    %142 = memref.load %arg2[%c0_77, %c6] : memref<8x27xf32, #tpu.memory_space<smem>>
    %143 = vector.broadcast %142 : f32 to vector<16x128xf32>
    %144 = arith.mulf %126, %143 : vector<16x128xf32>
    %145 = arith.addf %141, %144 : vector<16x128xf32>
    %c0_78 = arith.constant 0 : index
    %c7 = arith.constant 7 : index
    %146 = memref.load %arg2[%c0_78, %c7] : memref<8x27xf32, #tpu.memory_space<smem>>
    %147 = vector.broadcast %146 : f32 to vector<16x128xf32>
    %148 = arith.mulf %130, %147 : vector<16x128xf32>
    %149 = arith.addf %145, %148 : vector<16x128xf32>
    %c0_79 = arith.constant 0 : index
    %c8 = arith.constant 8 : index
    %150 = memref.load %arg2[%c0_79, %c8] : memref<8x27xf32, #tpu.memory_space<smem>>
    %151 = vector.broadcast %150 : f32 to vector<16x128xf32>
    %152 = arith.mulf %134, %151 : vector<16x128xf32>
    %153 = arith.addf %149, %152 : vector<16x128xf32>
    %c0_80 = arith.constant 0 : index
    %c9 = arith.constant 9 : index
    %154 = memref.load %arg2[%c0_80, %c9] : memref<8x27xf32, #tpu.memory_space<smem>>
    %155 = vector.broadcast %154 : f32 to vector<16x128xf32>
    %156 = arith.mulf %138, %155 : vector<16x128xf32>
    %157 = arith.addf %153, %156 : vector<16x128xf32>
    %c0_81 = arith.constant 0 : index
    %c10 = arith.constant 10 : index
    %158 = memref.load %arg2[%c0_81, %c10] : memref<8x27xf32, #tpu.memory_space<smem>>
    %159 = vector.broadcast %158 : f32 to vector<16x128xf32>
    %160 = arith.addf %157, %159 : vector<16x128xf32>
    %cst_82 = arith.constant 0.000000e+00 : f32
    %161 = vector.broadcast %cst_82 : f32 to vector<16x128xf32>
    %162 = arith.maximumf %160, %161 : vector<16x128xf32>
    %c1_83 = arith.constant 1 : index
    %c5_84 = arith.constant 5 : index
    %163 = memref.load %arg2[%c1_83, %c5_84] : memref<8x27xf32, #tpu.memory_space<smem>>
    %164 = vector.broadcast %163 : f32 to vector<16x128xf32>
    %165 = arith.mulf %122, %164 : vector<16x128xf32>
    %c1_85 = arith.constant 1 : index
    %c6_86 = arith.constant 6 : index
    %166 = memref.load %arg2[%c1_85, %c6_86] : memref<8x27xf32, #tpu.memory_space<smem>>
    %167 = vector.broadcast %166 : f32 to vector<16x128xf32>
    %168 = arith.mulf %126, %167 : vector<16x128xf32>
    %169 = arith.addf %165, %168 : vector<16x128xf32>
    %c1_87 = arith.constant 1 : index
    %c7_88 = arith.constant 7 : index
    %170 = memref.load %arg2[%c1_87, %c7_88] : memref<8x27xf32, #tpu.memory_space<smem>>
    %171 = vector.broadcast %170 : f32 to vector<16x128xf32>
    %172 = arith.mulf %130, %171 : vector<16x128xf32>
    %173 = arith.addf %169, %172 : vector<16x128xf32>
    %c1_89 = arith.constant 1 : index
    %c8_90 = arith.constant 8 : index
    %174 = memref.load %arg2[%c1_89, %c8_90] : memref<8x27xf32, #tpu.memory_space<smem>>
    %175 = vector.broadcast %174 : f32 to vector<16x128xf32>
    %176 = arith.mulf %134, %175 : vector<16x128xf32>
    %177 = arith.addf %173, %176 : vector<16x128xf32>
    %c1_91 = arith.constant 1 : index
    %c9_92 = arith.constant 9 : index
    %178 = memref.load %arg2[%c1_91, %c9_92] : memref<8x27xf32, #tpu.memory_space<smem>>
    %179 = vector.broadcast %178 : f32 to vector<16x128xf32>
    %180 = arith.mulf %138, %179 : vector<16x128xf32>
    %181 = arith.addf %177, %180 : vector<16x128xf32>
    %c1_93 = arith.constant 1 : index
    %c10_94 = arith.constant 10 : index
    %182 = memref.load %arg2[%c1_93, %c10_94] : memref<8x27xf32, #tpu.memory_space<smem>>
    %183 = vector.broadcast %182 : f32 to vector<16x128xf32>
    %184 = arith.addf %181, %183 : vector<16x128xf32>
    %cst_95 = arith.constant 0.000000e+00 : f32
    %185 = vector.broadcast %cst_95 : f32 to vector<16x128xf32>
    %186 = arith.maximumf %184, %185 : vector<16x128xf32>
    %c2_96 = arith.constant 2 : index
    %c5_97 = arith.constant 5 : index
    %187 = memref.load %arg2[%c2_96, %c5_97] : memref<8x27xf32, #tpu.memory_space<smem>>
    %188 = vector.broadcast %187 : f32 to vector<16x128xf32>
    %189 = arith.mulf %122, %188 : vector<16x128xf32>
    %c2_98 = arith.constant 2 : index
    %c6_99 = arith.constant 6 : index
    %190 = memref.load %arg2[%c2_98, %c6_99] : memref<8x27xf32, #tpu.memory_space<smem>>
    %191 = vector.broadcast %190 : f32 to vector<16x128xf32>
    %192 = arith.mulf %126, %191 : vector<16x128xf32>
    %193 = arith.addf %189, %192 : vector<16x128xf32>
    %c2_100 = arith.constant 2 : index
    %c7_101 = arith.constant 7 : index
    %194 = memref.load %arg2[%c2_100, %c7_101] : memref<8x27xf32, #tpu.memory_space<smem>>
    %195 = vector.broadcast %194 : f32 to vector<16x128xf32>
    %196 = arith.mulf %130, %195 : vector<16x128xf32>
    %197 = arith.addf %193, %196 : vector<16x128xf32>
    %c2_102 = arith.constant 2 : index
    %c8_103 = arith.constant 8 : index
    %198 = memref.load %arg2[%c2_102, %c8_103] : memref<8x27xf32, #tpu.memory_space<smem>>
    %199 = vector.broadcast %198 : f32 to vector<16x128xf32>
    %200 = arith.mulf %134, %199 : vector<16x128xf32>
    %201 = arith.addf %197, %200 : vector<16x128xf32>
    %c2_104 = arith.constant 2 : index
    %c9_105 = arith.constant 9 : index
    %202 = memref.load %arg2[%c2_104, %c9_105] : memref<8x27xf32, #tpu.memory_space<smem>>
    %203 = vector.broadcast %202 : f32 to vector<16x128xf32>
    %204 = arith.mulf %138, %203 : vector<16x128xf32>
    %205 = arith.addf %201, %204 : vector<16x128xf32>
    %c2_106 = arith.constant 2 : index
    %c10_107 = arith.constant 10 : index
    %206 = memref.load %arg2[%c2_106, %c10_107] : memref<8x27xf32, #tpu.memory_space<smem>>
    %207 = vector.broadcast %206 : f32 to vector<16x128xf32>
    %208 = arith.addf %205, %207 : vector<16x128xf32>
    %cst_108 = arith.constant 0.000000e+00 : f32
    %209 = vector.broadcast %cst_108 : f32 to vector<16x128xf32>
    %210 = arith.maximumf %208, %209 : vector<16x128xf32>
    %c3_109 = arith.constant 3 : index
    %c5_110 = arith.constant 5 : index
    %211 = memref.load %arg2[%c3_109, %c5_110] : memref<8x27xf32, #tpu.memory_space<smem>>
    %212 = vector.broadcast %211 : f32 to vector<16x128xf32>
    %213 = arith.mulf %122, %212 : vector<16x128xf32>
    %c3_111 = arith.constant 3 : index
    %c6_112 = arith.constant 6 : index
    %214 = memref.load %arg2[%c3_111, %c6_112] : memref<8x27xf32, #tpu.memory_space<smem>>
    %215 = vector.broadcast %214 : f32 to vector<16x128xf32>
    %216 = arith.mulf %126, %215 : vector<16x128xf32>
    %217 = arith.addf %213, %216 : vector<16x128xf32>
    %c3_113 = arith.constant 3 : index
    %c7_114 = arith.constant 7 : index
    %218 = memref.load %arg2[%c3_113, %c7_114] : memref<8x27xf32, #tpu.memory_space<smem>>
    %219 = vector.broadcast %218 : f32 to vector<16x128xf32>
    %220 = arith.mulf %130, %219 : vector<16x128xf32>
    %221 = arith.addf %217, %220 : vector<16x128xf32>
    %c3_115 = arith.constant 3 : index
    %c8_116 = arith.constant 8 : index
    %222 = memref.load %arg2[%c3_115, %c8_116] : memref<8x27xf32, #tpu.memory_space<smem>>
    %223 = vector.broadcast %222 : f32 to vector<16x128xf32>
    %224 = arith.mulf %134, %223 : vector<16x128xf32>
    %225 = arith.addf %221, %224 : vector<16x128xf32>
    %c3_117 = arith.constant 3 : index
    %c9_118 = arith.constant 9 : index
    %226 = memref.load %arg2[%c3_117, %c9_118] : memref<8x27xf32, #tpu.memory_space<smem>>
    %227 = vector.broadcast %226 : f32 to vector<16x128xf32>
    %228 = arith.mulf %138, %227 : vector<16x128xf32>
    %229 = arith.addf %225, %228 : vector<16x128xf32>
    %c3_119 = arith.constant 3 : index
    %c10_120 = arith.constant 10 : index
    %230 = memref.load %arg2[%c3_119, %c10_120] : memref<8x27xf32, #tpu.memory_space<smem>>
    %231 = vector.broadcast %230 : f32 to vector<16x128xf32>
    %232 = arith.addf %229, %231 : vector<16x128xf32>
    %cst_121 = arith.constant 0.000000e+00 : f32
    %233 = vector.broadcast %cst_121 : f32 to vector<16x128xf32>
    %234 = arith.maximumf %232, %233 : vector<16x128xf32>
    %c4_122 = arith.constant 4 : index
    %c5_123 = arith.constant 5 : index
    %235 = memref.load %arg2[%c4_122, %c5_123] : memref<8x27xf32, #tpu.memory_space<smem>>
    %236 = vector.broadcast %235 : f32 to vector<16x128xf32>
    %237 = arith.mulf %122, %236 : vector<16x128xf32>
    %c4_124 = arith.constant 4 : index
    %c6_125 = arith.constant 6 : index
    %238 = memref.load %arg2[%c4_124, %c6_125] : memref<8x27xf32, #tpu.memory_space<smem>>
    %239 = vector.broadcast %238 : f32 to vector<16x128xf32>
    %240 = arith.mulf %126, %239 : vector<16x128xf32>
    %241 = arith.addf %237, %240 : vector<16x128xf32>
    %c4_126 = arith.constant 4 : index
    %c7_127 = arith.constant 7 : index
    %242 = memref.load %arg2[%c4_126, %c7_127] : memref<8x27xf32, #tpu.memory_space<smem>>
    %243 = vector.broadcast %242 : f32 to vector<16x128xf32>
    %244 = arith.mulf %130, %243 : vector<16x128xf32>
    %245 = arith.addf %241, %244 : vector<16x128xf32>
    %c4_128 = arith.constant 4 : index
    %c8_129 = arith.constant 8 : index
    %246 = memref.load %arg2[%c4_128, %c8_129] : memref<8x27xf32, #tpu.memory_space<smem>>
    %247 = vector.broadcast %246 : f32 to vector<16x128xf32>
    %248 = arith.mulf %134, %247 : vector<16x128xf32>
    %249 = arith.addf %245, %248 : vector<16x128xf32>
    %c4_130 = arith.constant 4 : index
    %c9_131 = arith.constant 9 : index
    %250 = memref.load %arg2[%c4_130, %c9_131] : memref<8x27xf32, #tpu.memory_space<smem>>
    %251 = vector.broadcast %250 : f32 to vector<16x128xf32>
    %252 = arith.mulf %138, %251 : vector<16x128xf32>
    %253 = arith.addf %249, %252 : vector<16x128xf32>
    %c4_132 = arith.constant 4 : index
    %c10_133 = arith.constant 10 : index
    %254 = memref.load %arg2[%c4_132, %c10_133] : memref<8x27xf32, #tpu.memory_space<smem>>
    %255 = vector.broadcast %254 : f32 to vector<16x128xf32>
    %256 = arith.addf %253, %255 : vector<16x128xf32>
    %cst_134 = arith.constant 0.000000e+00 : f32
    %257 = vector.broadcast %cst_134 : f32 to vector<16x128xf32>
    %258 = arith.maximumf %256, %257 : vector<16x128xf32>
    %c5_135 = arith.constant 5 : index
    %c5_136 = arith.constant 5 : index
    %259 = memref.load %arg2[%c5_135, %c5_136] : memref<8x27xf32, #tpu.memory_space<smem>>
    %260 = vector.broadcast %259 : f32 to vector<16x128xf32>
    %261 = arith.mulf %122, %260 : vector<16x128xf32>
    %c5_137 = arith.constant 5 : index
    %c6_138 = arith.constant 6 : index
    %262 = memref.load %arg2[%c5_137, %c6_138] : memref<8x27xf32, #tpu.memory_space<smem>>
    %263 = vector.broadcast %262 : f32 to vector<16x128xf32>
    %264 = arith.mulf %126, %263 : vector<16x128xf32>
    %265 = arith.addf %261, %264 : vector<16x128xf32>
    %c5_139 = arith.constant 5 : index
    %c7_140 = arith.constant 7 : index
    %266 = memref.load %arg2[%c5_139, %c7_140] : memref<8x27xf32, #tpu.memory_space<smem>>
    %267 = vector.broadcast %266 : f32 to vector<16x128xf32>
    %268 = arith.mulf %130, %267 : vector<16x128xf32>
    %269 = arith.addf %265, %268 : vector<16x128xf32>
    %c5_141 = arith.constant 5 : index
    %c8_142 = arith.constant 8 : index
    %270 = memref.load %arg2[%c5_141, %c8_142] : memref<8x27xf32, #tpu.memory_space<smem>>
    %271 = vector.broadcast %270 : f32 to vector<16x128xf32>
    %272 = arith.mulf %134, %271 : vector<16x128xf32>
    %273 = arith.addf %269, %272 : vector<16x128xf32>
    %c5_143 = arith.constant 5 : index
    %c9_144 = arith.constant 9 : index
    %274 = memref.load %arg2[%c5_143, %c9_144] : memref<8x27xf32, #tpu.memory_space<smem>>
    %275 = vector.broadcast %274 : f32 to vector<16x128xf32>
    %276 = arith.mulf %138, %275 : vector<16x128xf32>
    %277 = arith.addf %273, %276 : vector<16x128xf32>
    %c5_145 = arith.constant 5 : index
    %c10_146 = arith.constant 10 : index
    %278 = memref.load %arg2[%c5_145, %c10_146] : memref<8x27xf32, #tpu.memory_space<smem>>
    %279 = vector.broadcast %278 : f32 to vector<16x128xf32>
    %280 = arith.addf %277, %279 : vector<16x128xf32>
    %cst_147 = arith.constant 0.000000e+00 : f32
    %281 = vector.broadcast %cst_147 : f32 to vector<16x128xf32>
    %282 = arith.maximumf %280, %281 : vector<16x128xf32>
    %c0_148 = arith.constant 0 : index
    %c11 = arith.constant 11 : index
    %283 = memref.load %arg2[%c0_148, %c11] : memref<8x27xf32, #tpu.memory_space<smem>>
    %284 = vector.broadcast %283 : f32 to vector<16x128xf32>
    %285 = arith.mulf %162, %284 : vector<16x128xf32>
    %c0_149 = arith.constant 0 : index
    %c12 = arith.constant 12 : index
    %286 = memref.load %arg2[%c0_149, %c12] : memref<8x27xf32, #tpu.memory_space<smem>>
    %287 = vector.broadcast %286 : f32 to vector<16x128xf32>
    %288 = arith.mulf %186, %287 : vector<16x128xf32>
    %289 = arith.addf %285, %288 : vector<16x128xf32>
    %c0_150 = arith.constant 0 : index
    %c13 = arith.constant 13 : index
    %290 = memref.load %arg2[%c0_150, %c13] : memref<8x27xf32, #tpu.memory_space<smem>>
    %291 = vector.broadcast %290 : f32 to vector<16x128xf32>
    %292 = arith.mulf %210, %291 : vector<16x128xf32>
    %293 = arith.addf %289, %292 : vector<16x128xf32>
    %c0_151 = arith.constant 0 : index
    %c14 = arith.constant 14 : index
    %294 = memref.load %arg2[%c0_151, %c14] : memref<8x27xf32, #tpu.memory_space<smem>>
    %295 = vector.broadcast %294 : f32 to vector<16x128xf32>
    %296 = arith.mulf %234, %295 : vector<16x128xf32>
    %297 = arith.addf %293, %296 : vector<16x128xf32>
    %c0_152 = arith.constant 0 : index
    %c15 = arith.constant 15 : index
    %298 = memref.load %arg2[%c0_152, %c15] : memref<8x27xf32, #tpu.memory_space<smem>>
    %299 = vector.broadcast %298 : f32 to vector<16x128xf32>
    %300 = arith.mulf %258, %299 : vector<16x128xf32>
    %301 = arith.addf %297, %300 : vector<16x128xf32>
    %c0_153 = arith.constant 0 : index
    %c16 = arith.constant 16 : index
    %302 = memref.load %arg2[%c0_153, %c16] : memref<8x27xf32, #tpu.memory_space<smem>>
    %303 = vector.broadcast %302 : f32 to vector<16x128xf32>
    %304 = arith.mulf %282, %303 : vector<16x128xf32>
    %305 = arith.addf %301, %304 : vector<16x128xf32>
    %c0_154 = arith.constant 0 : index
    %c17 = arith.constant 17 : index
    %306 = memref.load %arg2[%c0_154, %c17] : memref<8x27xf32, #tpu.memory_space<smem>>
    %307 = vector.broadcast %306 : f32 to vector<16x128xf32>
    %308 = arith.addf %305, %307 : vector<16x128xf32>
    %cst_155 = arith.constant 0.000000e+00 : f32
    %309 = vector.broadcast %cst_155 : f32 to vector<16x128xf32>
    %310 = arith.maximumf %308, %309 : vector<16x128xf32>
    %c1_156 = arith.constant 1 : index
    %c11_157 = arith.constant 11 : index
    %311 = memref.load %arg2[%c1_156, %c11_157] : memref<8x27xf32, #tpu.memory_space<smem>>
    %312 = vector.broadcast %311 : f32 to vector<16x128xf32>
    %313 = arith.mulf %162, %312 : vector<16x128xf32>
    %c1_158 = arith.constant 1 : index
    %c12_159 = arith.constant 12 : index
    %314 = memref.load %arg2[%c1_158, %c12_159] : memref<8x27xf32, #tpu.memory_space<smem>>
    %315 = vector.broadcast %314 : f32 to vector<16x128xf32>
    %316 = arith.mulf %186, %315 : vector<16x128xf32>
    %317 = arith.addf %313, %316 : vector<16x128xf32>
    %c1_160 = arith.constant 1 : index
    %c13_161 = arith.constant 13 : index
    %318 = memref.load %arg2[%c1_160, %c13_161] : memref<8x27xf32, #tpu.memory_space<smem>>
    %319 = vector.broadcast %318 : f32 to vector<16x128xf32>
    %320 = arith.mulf %210, %319 : vector<16x128xf32>
    %321 = arith.addf %317, %320 : vector<16x128xf32>
    %c1_162 = arith.constant 1 : index
    %c14_163 = arith.constant 14 : index
    %322 = memref.load %arg2[%c1_162, %c14_163] : memref<8x27xf32, #tpu.memory_space<smem>>
    %323 = vector.broadcast %322 : f32 to vector<16x128xf32>
    %324 = arith.mulf %234, %323 : vector<16x128xf32>
    %325 = arith.addf %321, %324 : vector<16x128xf32>
    %c1_164 = arith.constant 1 : index
    %c15_165 = arith.constant 15 : index
    %326 = memref.load %arg2[%c1_164, %c15_165] : memref<8x27xf32, #tpu.memory_space<smem>>
    %327 = vector.broadcast %326 : f32 to vector<16x128xf32>
    %328 = arith.mulf %258, %327 : vector<16x128xf32>
    %329 = arith.addf %325, %328 : vector<16x128xf32>
    %c1_166 = arith.constant 1 : index
    %c16_167 = arith.constant 16 : index
    %330 = memref.load %arg2[%c1_166, %c16_167] : memref<8x27xf32, #tpu.memory_space<smem>>
    %331 = vector.broadcast %330 : f32 to vector<16x128xf32>
    %332 = arith.mulf %282, %331 : vector<16x128xf32>
    %333 = arith.addf %329, %332 : vector<16x128xf32>
    %c1_168 = arith.constant 1 : index
    %c17_169 = arith.constant 17 : index
    %334 = memref.load %arg2[%c1_168, %c17_169] : memref<8x27xf32, #tpu.memory_space<smem>>
    %335 = vector.broadcast %334 : f32 to vector<16x128xf32>
    %336 = arith.addf %333, %335 : vector<16x128xf32>
    %cst_170 = arith.constant 0.000000e+00 : f32
    %337 = vector.broadcast %cst_170 : f32 to vector<16x128xf32>
    %338 = arith.maximumf %336, %337 : vector<16x128xf32>
    %c2_171 = arith.constant 2 : index
    %c11_172 = arith.constant 11 : index
    %339 = memref.load %arg2[%c2_171, %c11_172] : memref<8x27xf32, #tpu.memory_space<smem>>
    %340 = vector.broadcast %339 : f32 to vector<16x128xf32>
    %341 = arith.mulf %162, %340 : vector<16x128xf32>
    %c2_173 = arith.constant 2 : index
    %c12_174 = arith.constant 12 : index
    %342 = memref.load %arg2[%c2_173, %c12_174] : memref<8x27xf32, #tpu.memory_space<smem>>
    %343 = vector.broadcast %342 : f32 to vector<16x128xf32>
    %344 = arith.mulf %186, %343 : vector<16x128xf32>
    %345 = arith.addf %341, %344 : vector<16x128xf32>
    %c2_175 = arith.constant 2 : index
    %c13_176 = arith.constant 13 : index
    %346 = memref.load %arg2[%c2_175, %c13_176] : memref<8x27xf32, #tpu.memory_space<smem>>
    %347 = vector.broadcast %346 : f32 to vector<16x128xf32>
    %348 = arith.mulf %210, %347 : vector<16x128xf32>
    %349 = arith.addf %345, %348 : vector<16x128xf32>
    %c2_177 = arith.constant 2 : index
    %c14_178 = arith.constant 14 : index
    %350 = memref.load %arg2[%c2_177, %c14_178] : memref<8x27xf32, #tpu.memory_space<smem>>
    %351 = vector.broadcast %350 : f32 to vector<16x128xf32>
    %352 = arith.mulf %234, %351 : vector<16x128xf32>
    %353 = arith.addf %349, %352 : vector<16x128xf32>
    %c2_179 = arith.constant 2 : index
    %c15_180 = arith.constant 15 : index
    %354 = memref.load %arg2[%c2_179, %c15_180] : memref<8x27xf32, #tpu.memory_space<smem>>
    %355 = vector.broadcast %354 : f32 to vector<16x128xf32>
    %356 = arith.mulf %258, %355 : vector<16x128xf32>
    %357 = arith.addf %353, %356 : vector<16x128xf32>
    %c2_181 = arith.constant 2 : index
    %c16_182 = arith.constant 16 : index
    %358 = memref.load %arg2[%c2_181, %c16_182] : memref<8x27xf32, #tpu.memory_space<smem>>
    %359 = vector.broadcast %358 : f32 to vector<16x128xf32>
    %360 = arith.mulf %282, %359 : vector<16x128xf32>
    %361 = arith.addf %357, %360 : vector<16x128xf32>
    %c2_183 = arith.constant 2 : index
    %c17_184 = arith.constant 17 : index
    %362 = memref.load %arg2[%c2_183, %c17_184] : memref<8x27xf32, #tpu.memory_space<smem>>
    %363 = vector.broadcast %362 : f32 to vector<16x128xf32>
    %364 = arith.addf %361, %363 : vector<16x128xf32>
    %cst_185 = arith.constant 0.000000e+00 : f32
    %365 = vector.broadcast %cst_185 : f32 to vector<16x128xf32>
    %366 = arith.maximumf %364, %365 : vector<16x128xf32>
    %c3_186 = arith.constant 3 : index
    %c11_187 = arith.constant 11 : index
    %367 = memref.load %arg2[%c3_186, %c11_187] : memref<8x27xf32, #tpu.memory_space<smem>>
    %368 = vector.broadcast %367 : f32 to vector<16x128xf32>
    %369 = arith.mulf %162, %368 : vector<16x128xf32>
    %c3_188 = arith.constant 3 : index
    %c12_189 = arith.constant 12 : index
    %370 = memref.load %arg2[%c3_188, %c12_189] : memref<8x27xf32, #tpu.memory_space<smem>>
    %371 = vector.broadcast %370 : f32 to vector<16x128xf32>
    %372 = arith.mulf %186, %371 : vector<16x128xf32>
    %373 = arith.addf %369, %372 : vector<16x128xf32>
    %c3_190 = arith.constant 3 : index
    %c13_191 = arith.constant 13 : index
    %374 = memref.load %arg2[%c3_190, %c13_191] : memref<8x27xf32, #tpu.memory_space<smem>>
    %375 = vector.broadcast %374 : f32 to vector<16x128xf32>
    %376 = arith.mulf %210, %375 : vector<16x128xf32>
    %377 = arith.addf %373, %376 : vector<16x128xf32>
    %c3_192 = arith.constant 3 : index
    %c14_193 = arith.constant 14 : index
    %378 = memref.load %arg2[%c3_192, %c14_193] : memref<8x27xf32, #tpu.memory_space<smem>>
    %379 = vector.broadcast %378 : f32 to vector<16x128xf32>
    %380 = arith.mulf %234, %379 : vector<16x128xf32>
    %381 = arith.addf %377, %380 : vector<16x128xf32>
    %c3_194 = arith.constant 3 : index
    %c15_195 = arith.constant 15 : index
    %382 = memref.load %arg2[%c3_194, %c15_195] : memref<8x27xf32, #tpu.memory_space<smem>>
    %383 = vector.broadcast %382 : f32 to vector<16x128xf32>
    %384 = arith.mulf %258, %383 : vector<16x128xf32>
    %385 = arith.addf %381, %384 : vector<16x128xf32>
    %c3_196 = arith.constant 3 : index
    %c16_197 = arith.constant 16 : index
    %386 = memref.load %arg2[%c3_196, %c16_197] : memref<8x27xf32, #tpu.memory_space<smem>>
    %387 = vector.broadcast %386 : f32 to vector<16x128xf32>
    %388 = arith.mulf %282, %387 : vector<16x128xf32>
    %389 = arith.addf %385, %388 : vector<16x128xf32>
    %c3_198 = arith.constant 3 : index
    %c17_199 = arith.constant 17 : index
    %390 = memref.load %arg2[%c3_198, %c17_199] : memref<8x27xf32, #tpu.memory_space<smem>>
    %391 = vector.broadcast %390 : f32 to vector<16x128xf32>
    %392 = arith.addf %389, %391 : vector<16x128xf32>
    %cst_200 = arith.constant 0.000000e+00 : f32
    %393 = vector.broadcast %cst_200 : f32 to vector<16x128xf32>
    %394 = arith.maximumf %392, %393 : vector<16x128xf32>
    %c4_201 = arith.constant 4 : index
    %c11_202 = arith.constant 11 : index
    %395 = memref.load %arg2[%c4_201, %c11_202] : memref<8x27xf32, #tpu.memory_space<smem>>
    %396 = vector.broadcast %395 : f32 to vector<16x128xf32>
    %397 = arith.mulf %162, %396 : vector<16x128xf32>
    %c4_203 = arith.constant 4 : index
    %c12_204 = arith.constant 12 : index
    %398 = memref.load %arg2[%c4_203, %c12_204] : memref<8x27xf32, #tpu.memory_space<smem>>
    %399 = vector.broadcast %398 : f32 to vector<16x128xf32>
    %400 = arith.mulf %186, %399 : vector<16x128xf32>
    %401 = arith.addf %397, %400 : vector<16x128xf32>
    %c4_205 = arith.constant 4 : index
    %c13_206 = arith.constant 13 : index
    %402 = memref.load %arg2[%c4_205, %c13_206] : memref<8x27xf32, #tpu.memory_space<smem>>
    %403 = vector.broadcast %402 : f32 to vector<16x128xf32>
    %404 = arith.mulf %210, %403 : vector<16x128xf32>
    %405 = arith.addf %401, %404 : vector<16x128xf32>
    %c4_207 = arith.constant 4 : index
    %c14_208 = arith.constant 14 : index
    %406 = memref.load %arg2[%c4_207, %c14_208] : memref<8x27xf32, #tpu.memory_space<smem>>
    %407 = vector.broadcast %406 : f32 to vector<16x128xf32>
    %408 = arith.mulf %234, %407 : vector<16x128xf32>
    %409 = arith.addf %405, %408 : vector<16x128xf32>
    %c4_209 = arith.constant 4 : index
    %c15_210 = arith.constant 15 : index
    %410 = memref.load %arg2[%c4_209, %c15_210] : memref<8x27xf32, #tpu.memory_space<smem>>
    %411 = vector.broadcast %410 : f32 to vector<16x128xf32>
    %412 = arith.mulf %258, %411 : vector<16x128xf32>
    %413 = arith.addf %409, %412 : vector<16x128xf32>
    %c4_211 = arith.constant 4 : index
    %c16_212 = arith.constant 16 : index
    %414 = memref.load %arg2[%c4_211, %c16_212] : memref<8x27xf32, #tpu.memory_space<smem>>
    %415 = vector.broadcast %414 : f32 to vector<16x128xf32>
    %416 = arith.mulf %282, %415 : vector<16x128xf32>
    %417 = arith.addf %413, %416 : vector<16x128xf32>
    %c4_213 = arith.constant 4 : index
    %c17_214 = arith.constant 17 : index
    %418 = memref.load %arg2[%c4_213, %c17_214] : memref<8x27xf32, #tpu.memory_space<smem>>
    %419 = vector.broadcast %418 : f32 to vector<16x128xf32>
    %420 = arith.addf %417, %419 : vector<16x128xf32>
    %cst_215 = arith.constant 0.000000e+00 : f32
    %421 = vector.broadcast %cst_215 : f32 to vector<16x128xf32>
    %422 = arith.maximumf %420, %421 : vector<16x128xf32>
    %c5_216 = arith.constant 5 : index
    %c11_217 = arith.constant 11 : index
    %423 = memref.load %arg2[%c5_216, %c11_217] : memref<8x27xf32, #tpu.memory_space<smem>>
    %424 = vector.broadcast %423 : f32 to vector<16x128xf32>
    %425 = arith.mulf %162, %424 : vector<16x128xf32>
    %c5_218 = arith.constant 5 : index
    %c12_219 = arith.constant 12 : index
    %426 = memref.load %arg2[%c5_218, %c12_219] : memref<8x27xf32, #tpu.memory_space<smem>>
    %427 = vector.broadcast %426 : f32 to vector<16x128xf32>
    %428 = arith.mulf %186, %427 : vector<16x128xf32>
    %429 = arith.addf %425, %428 : vector<16x128xf32>
    %c5_220 = arith.constant 5 : index
    %c13_221 = arith.constant 13 : index
    %430 = memref.load %arg2[%c5_220, %c13_221] : memref<8x27xf32, #tpu.memory_space<smem>>
    %431 = vector.broadcast %430 : f32 to vector<16x128xf32>
    %432 = arith.mulf %210, %431 : vector<16x128xf32>
    %433 = arith.addf %429, %432 : vector<16x128xf32>
    %c5_222 = arith.constant 5 : index
    %c14_223 = arith.constant 14 : index
    %434 = memref.load %arg2[%c5_222, %c14_223] : memref<8x27xf32, #tpu.memory_space<smem>>
    %435 = vector.broadcast %434 : f32 to vector<16x128xf32>
    %436 = arith.mulf %234, %435 : vector<16x128xf32>
    %437 = arith.addf %433, %436 : vector<16x128xf32>
    %c5_224 = arith.constant 5 : index
    %c15_225 = arith.constant 15 : index
    %438 = memref.load %arg2[%c5_224, %c15_225] : memref<8x27xf32, #tpu.memory_space<smem>>
    %439 = vector.broadcast %438 : f32 to vector<16x128xf32>
    %440 = arith.mulf %258, %439 : vector<16x128xf32>
    %441 = arith.addf %437, %440 : vector<16x128xf32>
    %c5_226 = arith.constant 5 : index
    %c16_227 = arith.constant 16 : index
    %442 = memref.load %arg2[%c5_226, %c16_227] : memref<8x27xf32, #tpu.memory_space<smem>>
    %443 = vector.broadcast %442 : f32 to vector<16x128xf32>
    %444 = arith.mulf %282, %443 : vector<16x128xf32>
    %445 = arith.addf %441, %444 : vector<16x128xf32>
    %c5_228 = arith.constant 5 : index
    %c17_229 = arith.constant 17 : index
    %446 = memref.load %arg2[%c5_228, %c17_229] : memref<8x27xf32, #tpu.memory_space<smem>>
    %447 = vector.broadcast %446 : f32 to vector<16x128xf32>
    %448 = arith.addf %445, %447 : vector<16x128xf32>
    %cst_230 = arith.constant 0.000000e+00 : f32
    %449 = vector.broadcast %cst_230 : f32 to vector<16x128xf32>
    %450 = arith.maximumf %448, %449 : vector<16x128xf32>
    %c6_231 = arith.constant 6 : index
    %c11_232 = arith.constant 11 : index
    %451 = memref.load %arg2[%c6_231, %c11_232] : memref<8x27xf32, #tpu.memory_space<smem>>
    %452 = vector.broadcast %451 : f32 to vector<16x128xf32>
    %453 = arith.mulf %162, %452 : vector<16x128xf32>
    %c6_233 = arith.constant 6 : index
    %c12_234 = arith.constant 12 : index
    %454 = memref.load %arg2[%c6_233, %c12_234] : memref<8x27xf32, #tpu.memory_space<smem>>
    %455 = vector.broadcast %454 : f32 to vector<16x128xf32>
    %456 = arith.mulf %186, %455 : vector<16x128xf32>
    %457 = arith.addf %453, %456 : vector<16x128xf32>
    %c6_235 = arith.constant 6 : index
    %c13_236 = arith.constant 13 : index
    %458 = memref.load %arg2[%c6_235, %c13_236] : memref<8x27xf32, #tpu.memory_space<smem>>
    %459 = vector.broadcast %458 : f32 to vector<16x128xf32>
    %460 = arith.mulf %210, %459 : vector<16x128xf32>
    %461 = arith.addf %457, %460 : vector<16x128xf32>
    %c6_237 = arith.constant 6 : index
    %c14_238 = arith.constant 14 : index
    %462 = memref.load %arg2[%c6_237, %c14_238] : memref<8x27xf32, #tpu.memory_space<smem>>
    %463 = vector.broadcast %462 : f32 to vector<16x128xf32>
    %464 = arith.mulf %234, %463 : vector<16x128xf32>
    %465 = arith.addf %461, %464 : vector<16x128xf32>
    %c6_239 = arith.constant 6 : index
    %c15_240 = arith.constant 15 : index
    %466 = memref.load %arg2[%c6_239, %c15_240] : memref<8x27xf32, #tpu.memory_space<smem>>
    %467 = vector.broadcast %466 : f32 to vector<16x128xf32>
    %468 = arith.mulf %258, %467 : vector<16x128xf32>
    %469 = arith.addf %465, %468 : vector<16x128xf32>
    %c6_241 = arith.constant 6 : index
    %c16_242 = arith.constant 16 : index
    %470 = memref.load %arg2[%c6_241, %c16_242] : memref<8x27xf32, #tpu.memory_space<smem>>
    %471 = vector.broadcast %470 : f32 to vector<16x128xf32>
    %472 = arith.mulf %282, %471 : vector<16x128xf32>
    %473 = arith.addf %469, %472 : vector<16x128xf32>
    %c6_243 = arith.constant 6 : index
    %c17_244 = arith.constant 17 : index
    %474 = memref.load %arg2[%c6_243, %c17_244] : memref<8x27xf32, #tpu.memory_space<smem>>
    %475 = vector.broadcast %474 : f32 to vector<16x128xf32>
    %476 = arith.addf %473, %475 : vector<16x128xf32>
    %cst_245 = arith.constant 0.000000e+00 : f32
    %477 = vector.broadcast %cst_245 : f32 to vector<16x128xf32>
    %478 = arith.maximumf %476, %477 : vector<16x128xf32>
    %c7_246 = arith.constant 7 : index
    %c11_247 = arith.constant 11 : index
    %479 = memref.load %arg2[%c7_246, %c11_247] : memref<8x27xf32, #tpu.memory_space<smem>>
    %480 = vector.broadcast %479 : f32 to vector<16x128xf32>
    %481 = arith.mulf %162, %480 : vector<16x128xf32>
    %c7_248 = arith.constant 7 : index
    %c12_249 = arith.constant 12 : index
    %482 = memref.load %arg2[%c7_248, %c12_249] : memref<8x27xf32, #tpu.memory_space<smem>>
    %483 = vector.broadcast %482 : f32 to vector<16x128xf32>
    %484 = arith.mulf %186, %483 : vector<16x128xf32>
    %485 = arith.addf %481, %484 : vector<16x128xf32>
    %c7_250 = arith.constant 7 : index
    %c13_251 = arith.constant 13 : index
    %486 = memref.load %arg2[%c7_250, %c13_251] : memref<8x27xf32, #tpu.memory_space<smem>>
    %487 = vector.broadcast %486 : f32 to vector<16x128xf32>
    %488 = arith.mulf %210, %487 : vector<16x128xf32>
    %489 = arith.addf %485, %488 : vector<16x128xf32>
    %c7_252 = arith.constant 7 : index
    %c14_253 = arith.constant 14 : index
    %490 = memref.load %arg2[%c7_252, %c14_253] : memref<8x27xf32, #tpu.memory_space<smem>>
    %491 = vector.broadcast %490 : f32 to vector<16x128xf32>
    %492 = arith.mulf %234, %491 : vector<16x128xf32>
    %493 = arith.addf %489, %492 : vector<16x128xf32>
    %c7_254 = arith.constant 7 : index
    %c15_255 = arith.constant 15 : index
    %494 = memref.load %arg2[%c7_254, %c15_255] : memref<8x27xf32, #tpu.memory_space<smem>>
    %495 = vector.broadcast %494 : f32 to vector<16x128xf32>
    %496 = arith.mulf %258, %495 : vector<16x128xf32>
    %497 = arith.addf %493, %496 : vector<16x128xf32>
    %c7_256 = arith.constant 7 : index
    %c16_257 = arith.constant 16 : index
    %498 = memref.load %arg2[%c7_256, %c16_257] : memref<8x27xf32, #tpu.memory_space<smem>>
    %499 = vector.broadcast %498 : f32 to vector<16x128xf32>
    %500 = arith.mulf %282, %499 : vector<16x128xf32>
    %501 = arith.addf %497, %500 : vector<16x128xf32>
    %c7_258 = arith.constant 7 : index
    %c17_259 = arith.constant 17 : index
    %502 = memref.load %arg2[%c7_258, %c17_259] : memref<8x27xf32, #tpu.memory_space<smem>>
    %503 = vector.broadcast %502 : f32 to vector<16x128xf32>
    %504 = arith.addf %501, %503 : vector<16x128xf32>
    %cst_260 = arith.constant 0.000000e+00 : f32
    %505 = vector.broadcast %cst_260 : f32 to vector<16x128xf32>
    %506 = arith.maximumf %504, %505 : vector<16x128xf32>
    %c0_261 = arith.constant 0 : index
    %c18 = arith.constant 18 : index
    %507 = memref.load %arg2[%c0_261, %c18] : memref<8x27xf32, #tpu.memory_space<smem>>
    %508 = vector.broadcast %507 : f32 to vector<16x128xf32>
    %509 = arith.mulf %310, %508 : vector<16x128xf32>
    %c0_262 = arith.constant 0 : index
    %c19 = arith.constant 19 : index
    %510 = memref.load %arg2[%c0_262, %c19] : memref<8x27xf32, #tpu.memory_space<smem>>
    %511 = vector.broadcast %510 : f32 to vector<16x128xf32>
    %512 = arith.mulf %338, %511 : vector<16x128xf32>
    %513 = arith.addf %509, %512 : vector<16x128xf32>
    %c0_263 = arith.constant 0 : index
    %c20 = arith.constant 20 : index
    %514 = memref.load %arg2[%c0_263, %c20] : memref<8x27xf32, #tpu.memory_space<smem>>
    %515 = vector.broadcast %514 : f32 to vector<16x128xf32>
    %516 = arith.mulf %366, %515 : vector<16x128xf32>
    %517 = arith.addf %513, %516 : vector<16x128xf32>
    %c0_264 = arith.constant 0 : index
    %c21 = arith.constant 21 : index
    %518 = memref.load %arg2[%c0_264, %c21] : memref<8x27xf32, #tpu.memory_space<smem>>
    %519 = vector.broadcast %518 : f32 to vector<16x128xf32>
    %520 = arith.mulf %394, %519 : vector<16x128xf32>
    %521 = arith.addf %517, %520 : vector<16x128xf32>
    %c0_265 = arith.constant 0 : index
    %c22 = arith.constant 22 : index
    %522 = memref.load %arg2[%c0_265, %c22] : memref<8x27xf32, #tpu.memory_space<smem>>
    %523 = vector.broadcast %522 : f32 to vector<16x128xf32>
    %524 = arith.mulf %422, %523 : vector<16x128xf32>
    %525 = arith.addf %521, %524 : vector<16x128xf32>
    %c0_266 = arith.constant 0 : index
    %c23 = arith.constant 23 : index
    %526 = memref.load %arg2[%c0_266, %c23] : memref<8x27xf32, #tpu.memory_space<smem>>
    %527 = vector.broadcast %526 : f32 to vector<16x128xf32>
    %528 = arith.mulf %450, %527 : vector<16x128xf32>
    %529 = arith.addf %525, %528 : vector<16x128xf32>
    %c0_267 = arith.constant 0 : index
    %c24 = arith.constant 24 : index
    %530 = memref.load %arg2[%c0_267, %c24] : memref<8x27xf32, #tpu.memory_space<smem>>
    %531 = vector.broadcast %530 : f32 to vector<16x128xf32>
    %532 = arith.mulf %478, %531 : vector<16x128xf32>
    %533 = arith.addf %529, %532 : vector<16x128xf32>
    %c0_268 = arith.constant 0 : index
    %c25 = arith.constant 25 : index
    %534 = memref.load %arg2[%c0_268, %c25] : memref<8x27xf32, #tpu.memory_space<smem>>
    %535 = vector.broadcast %534 : f32 to vector<16x128xf32>
    %536 = arith.mulf %506, %535 : vector<16x128xf32>
    %537 = arith.addf %533, %536 : vector<16x128xf32>
    %c0_269 = arith.constant 0 : index
    %c26 = arith.constant 26 : index
    %538 = memref.load %arg2[%c0_269, %c26] : memref<8x27xf32, #tpu.memory_space<smem>>
    %539 = vector.broadcast %538 : f32 to vector<16x128xf32>
    %540 = arith.addf %537, %539 : vector<16x128xf32>
    %cst_270 = arith.constant 0.000000e+00 : f32
    %541 = vector.broadcast %cst_270 : f32 to vector<16x128xf32>
    %542 = arith.maximumf %540, %541 : vector<16x128xf32>
    %543 = arith.truncf %542 : vector<16x128xf32> to vector<16x128xbf16>
    %c0_271 = arith.constant 0 : index
    %c0_272 = arith.constant 0 : index
    %c0_273 = arith.constant 0 : index
    %c0_274 = arith.constant 0 : index
    %544 = vector.load %arg6[%c0_271, %c0_272, %c0_273, %c0_274] : memref<1x8x16x128xbf16, #tpu.memory_space<vmem>>, vector<1x1x16x128xbf16>
    %545 = vector.shape_cast %544 : vector<1x1x16x128xbf16> to vector<16x128xbf16>
    %546 = vector.shape_cast %543 : vector<16x128xbf16> to vector<1x1x16x128xbf16>
    tpu.vector_store %arg6[%c0_271, %c0_272, %c0_273, %c0_274], %546 {strides = array<i32>} : memref<1x8x16x128xbf16, #tpu.memory_space<vmem>>, vector<1x1x16x128xbf16>,
    %c1_275 = arith.constant 1 : index
    %c18_276 = arith.constant 18 : index
    %547 = memref.load %arg2[%c1_275, %c18_276] : memref<8x27xf32, #tpu.memory_space<smem>>
    %548 = vector.broadcast %547 : f32 to vector<16x128xf32>
    %549 = arith.mulf %310, %548 : vector<16x128xf32>
    %c1_277 = arith.constant 1 : index
    %c19_278 = arith.constant 19 : index
    %550 = memref.load %arg2[%c1_277, %c19_278] : memref<8x27xf32, #tpu.memory_space<smem>>
    %551 = vector.broadcast %550 : f32 to vector<16x128xf32>
    %552 = arith.mulf %338, %551 : vector<16x128xf32>
    %553 = arith.addf %549, %552 : vector<16x128xf32>
    %c1_279 = arith.constant 1 : index
    %c20_280 = arith.constant 20 : index
    %554 = memref.load %arg2[%c1_279, %c20_280] : memref<8x27xf32, #tpu.memory_space<smem>>
    %555 = vector.broadcast %554 : f32 to vector<16x128xf32>
    %556 = arith.mulf %366, %555 : vector<16x128xf32>
    %557 = arith.addf %553, %556 : vector<16x128xf32>
    %c1_281 = arith.constant 1 : index
    %c21_282 = arith.constant 21 : index
    %558 = memref.load %arg2[%c1_281, %c21_282] : memref<8x27xf32, #tpu.memory_space<smem>>
    %559 = vector.broadcast %558 : f32 to vector<16x128xf32>
    %560 = arith.mulf %394, %559 : vector<16x128xf32>
    %561 = arith.addf %557, %560 : vector<16x128xf32>
    %c1_283 = arith.constant 1 : index
    %c22_284 = arith.constant 22 : index
    %562 = memref.load %arg2[%c1_283, %c22_284] : memref<8x27xf32, #tpu.memory_space<smem>>
    %563 = vector.broadcast %562 : f32 to vector<16x128xf32>
    %564 = arith.mulf %422, %563 : vector<16x128xf32>
    %565 = arith.addf %561, %564 : vector<16x128xf32>
    %c1_285 = arith.constant 1 : index
    %c23_286 = arith.constant 23 : index
    %566 = memref.load %arg2[%c1_285, %c23_286] : memref<8x27xf32, #tpu.memory_space<smem>>
    %567 = vector.broadcast %566 : f32 to vector<16x128xf32>
    %568 = arith.mulf %450, %567 : vector<16x128xf32>
    %569 = arith.addf %565, %568 : vector<16x128xf32>
    %c1_287 = arith.constant 1 : index
    %c24_288 = arith.constant 24 : index
    %570 = memref.load %arg2[%c1_287, %c24_288] : memref<8x27xf32, #tpu.memory_space<smem>>
    %571 = vector.broadcast %570 : f32 to vector<16x128xf32>
    %572 = arith.mulf %478, %571 : vector<16x128xf32>
    %573 = arith.addf %569, %572 : vector<16x128xf32>
    %c1_289 = arith.constant 1 : index
    %c25_290 = arith.constant 25 : index
    %574 = memref.load %arg2[%c1_289, %c25_290] : memref<8x27xf32, #tpu.memory_space<smem>>
    %575 = vector.broadcast %574 : f32 to vector<16x128xf32>
    %576 = arith.mulf %506, %575 : vector<16x128xf32>
    %577 = arith.addf %573, %576 : vector<16x128xf32>
    %c1_291 = arith.constant 1 : index
    %c26_292 = arith.constant 26 : index
    %578 = memref.load %arg2[%c1_291, %c26_292] : memref<8x27xf32, #tpu.memory_space<smem>>
    %579 = vector.broadcast %578 : f32 to vector<16x128xf32>
    %580 = arith.addf %577, %579 : vector<16x128xf32>
    %cst_293 = arith.constant 0.000000e+00 : f32
    %581 = vector.broadcast %cst_293 : f32 to vector<16x128xf32>
    %582 = arith.maximumf %580, %581 : vector<16x128xf32>
    %583 = arith.truncf %582 : vector<16x128xf32> to vector<16x128xbf16>
    %c0_294 = arith.constant 0 : index
    %c1_295 = arith.constant 1 : index
    %c0_296 = arith.constant 0 : index
    %c0_297 = arith.constant 0 : index
    %584 = vector.load %arg6[%c0_294, %c1_295, %c0_296, %c0_297] : memref<1x8x16x128xbf16, #tpu.memory_space<vmem>>, vector<1x1x16x128xbf16>
    %585 = vector.shape_cast %584 : vector<1x1x16x128xbf16> to vector<16x128xbf16>
    %586 = vector.shape_cast %583 : vector<16x128xbf16> to vector<1x1x16x128xbf16>
    tpu.vector_store %arg6[%c0_294, %c1_295, %c0_296, %c0_297], %586 {strides = array<i32>} : memref<1x8x16x128xbf16, #tpu.memory_space<vmem>>, vector<1x1x16x128xbf16>,
    %c2_298 = arith.constant 2 : index
    %c18_299 = arith.constant 18 : index
    %587 = memref.load %arg2[%c2_298, %c18_299] : memref<8x27xf32, #tpu.memory_space<smem>>
    %588 = vector.broadcast %587 : f32 to vector<16x128xf32>
    %589 = arith.mulf %310, %588 : vector<16x128xf32>
    %c2_300 = arith.constant 2 : index
    %c19_301 = arith.constant 19 : index
    %590 = memref.load %arg2[%c2_300, %c19_301] : memref<8x27xf32, #tpu.memory_space<smem>>
    %591 = vector.broadcast %590 : f32 to vector<16x128xf32>
    %592 = arith.mulf %338, %591 : vector<16x128xf32>
    %593 = arith.addf %589, %592 : vector<16x128xf32>
    %c2_302 = arith.constant 2 : index
    %c20_303 = arith.constant 20 : index
    %594 = memref.load %arg2[%c2_302, %c20_303] : memref<8x27xf32, #tpu.memory_space<smem>>
    %595 = vector.broadcast %594 : f32 to vector<16x128xf32>
    %596 = arith.mulf %366, %595 : vector<16x128xf32>
    %597 = arith.addf %593, %596 : vector<16x128xf32>
    %c2_304 = arith.constant 2 : index
    %c21_305 = arith.constant 21 : index
    %598 = memref.load %arg2[%c2_304, %c21_305] : memref<8x27xf32, #tpu.memory_space<smem>>
    %599 = vector.broadcast %598 : f32 to vector<16x128xf32>
    %600 = arith.mulf %394, %599 : vector<16x128xf32>
    %601 = arith.addf %597, %600 : vector<16x128xf32>
    %c2_306 = arith.constant 2 : index
    %c22_307 = arith.constant 22 : index
    %602 = memref.load %arg2[%c2_306, %c22_307] : memref<8x27xf32, #tpu.memory_space<smem>>
    %603 = vector.broadcast %602 : f32 to vector<16x128xf32>
    %604 = arith.mulf %422, %603 : vector<16x128xf32>
    %605 = arith.addf %601, %604 : vector<16x128xf32>
    %c2_308 = arith.constant 2 : index
    %c23_309 = arith.constant 23 : index
    %606 = memref.load %arg2[%c2_308, %c23_309] : memref<8x27xf32, #tpu.memory_space<smem>>
    %607 = vector.broadcast %606 : f32 to vector<16x128xf32>
    %608 = arith.mulf %450, %607 : vector<16x128xf32>
    %609 = arith.addf %605, %608 : vector<16x128xf32>
    %c2_310 = arith.constant 2 : index
    %c24_311 = arith.constant 24 : index
    %610 = memref.load %arg2[%c2_310, %c24_311] : memref<8x27xf32, #tpu.memory_space<smem>>
    %611 = vector.broadcast %610 : f32 to vector<16x128xf32>
    %612 = arith.mulf %478, %611 : vector<16x128xf32>
    %613 = arith.addf %609, %612 : vector<16x128xf32>
    %c2_312 = arith.constant 2 : index
    %c25_313 = arith.constant 25 : index
    %614 = memref.load %arg2[%c2_312, %c25_313] : memref<8x27xf32, #tpu.memory_space<smem>>
    %615 = vector.broadcast %614 : f32 to vector<16x128xf32>
    %616 = arith.mulf %506, %615 : vector<16x128xf32>
    %617 = arith.addf %613, %616 : vector<16x128xf32>
    %c2_314 = arith.constant 2 : index
    %c26_315 = arith.constant 26 : index
    %618 = memref.load %arg2[%c2_314, %c26_315] : memref<8x27xf32, #tpu.memory_space<smem>>
    %619 = vector.broadcast %618 : f32 to vector<16x128xf32>
    %620 = arith.addf %617, %619 : vector<16x128xf32>
    %cst_316 = arith.constant 0.000000e+00 : f32
    %621 = vector.broadcast %cst_316 : f32 to vector<16x128xf32>
    %622 = arith.maximumf %620, %621 : vector<16x128xf32>
    %623 = arith.truncf %622 : vector<16x128xf32> to vector<16x128xbf16>
    %c0_317 = arith.constant 0 : index
    %c2_318 = arith.constant 2 : index
    %c0_319 = arith.constant 0 : index
    %c0_320 = arith.constant 0 : index
    %624 = vector.load %arg6[%c0_317, %c2_318, %c0_319, %c0_320] : memref<1x8x16x128xbf16, #tpu.memory_space<vmem>>, vector<1x1x16x128xbf16>
    %625 = vector.shape_cast %624 : vector<1x1x16x128xbf16> to vector<16x128xbf16>
    %626 = vector.shape_cast %623 : vector<16x128xbf16> to vector<1x1x16x128xbf16>
    tpu.vector_store %arg6[%c0_317, %c2_318, %c0_319, %c0_320], %626 {strides = array<i32>} : memref<1x8x16x128xbf16, #tpu.memory_space<vmem>>, vector<1x1x16x128xbf16>,
    %c3_321 = arith.constant 3 : index
    %c18_322 = arith.constant 18 : index
    %627 = memref.load %arg2[%c3_321, %c18_322] : memref<8x27xf32, #tpu.memory_space<smem>>
    %628 = vector.broadcast %627 : f32 to vector<16x128xf32>
    %629 = arith.mulf %310, %628 : vector<16x128xf32>
    %c3_323 = arith.constant 3 : index
    %c19_324 = arith.constant 19 : index
    %630 = memref.load %arg2[%c3_323, %c19_324] : memref<8x27xf32, #tpu.memory_space<smem>>
    %631 = vector.broadcast %630 : f32 to vector<16x128xf32>
    %632 = arith.mulf %338, %631 : vector<16x128xf32>
    %633 = arith.addf %629, %632 : vector<16x128xf32>
    %c3_325 = arith.constant 3 : index
    %c20_326 = arith.constant 20 : index
    %634 = memref.load %arg2[%c3_325, %c20_326] : memref<8x27xf32, #tpu.memory_space<smem>>
    %635 = vector.broadcast %634 : f32 to vector<16x128xf32>
    %636 = arith.mulf %366, %635 : vector<16x128xf32>
    %637 = arith.addf %633, %636 : vector<16x128xf32>
    %c3_327 = arith.constant 3 : index
    %c21_328 = arith.constant 21 : index
    %638 = memref.load %arg2[%c3_327, %c21_328] : memref<8x27xf32, #tpu.memory_space<smem>>
    %639 = vector.broadcast %638 : f32 to vector<16x128xf32>
    %640 = arith.mulf %394, %639 : vector<16x128xf32>
    %641 = arith.addf %637, %640 : vector<16x128xf32>
    %c3_329 = arith.constant 3 : index
    %c22_330 = arith.constant 22 : index
    %642 = memref.load %arg2[%c3_329, %c22_330] : memref<8x27xf32, #tpu.memory_space<smem>>
    %643 = vector.broadcast %642 : f32 to vector<16x128xf32>
    %644 = arith.mulf %422, %643 : vector<16x128xf32>
    %645 = arith.addf %641, %644 : vector<16x128xf32>
    %c3_331 = arith.constant 3 : index
    %c23_332 = arith.constant 23 : index
    %646 = memref.load %arg2[%c3_331, %c23_332] : memref<8x27xf32, #tpu.memory_space<smem>>
    %647 = vector.broadcast %646 : f32 to vector<16x128xf32>
    %648 = arith.mulf %450, %647 : vector<16x128xf32>
    %649 = arith.addf %645, %648 : vector<16x128xf32>
    %c3_333 = arith.constant 3 : index
    %c24_334 = arith.constant 24 : index
    %650 = memref.load %arg2[%c3_333, %c24_334] : memref<8x27xf32, #tpu.memory_space<smem>>
    %651 = vector.broadcast %650 : f32 to vector<16x128xf32>
    %652 = arith.mulf %478, %651 : vector<16x128xf32>
    %653 = arith.addf %649, %652 : vector<16x128xf32>
    %c3_335 = arith.constant 3 : index
    %c25_336 = arith.constant 25 : index
    %654 = memref.load %arg2[%c3_335, %c25_336] : memref<8x27xf32, #tpu.memory_space<smem>>
    %655 = vector.broadcast %654 : f32 to vector<16x128xf32>
    %656 = arith.mulf %506, %655 : vector<16x128xf32>
    %657 = arith.addf %653, %656 : vector<16x128xf32>
    %c3_337 = arith.constant 3 : index
    %c26_338 = arith.constant 26 : index
    %658 = memref.load %arg2[%c3_337, %c26_338] : memref<8x27xf32, #tpu.memory_space<smem>>
    %659 = vector.broadcast %658 : f32 to vector<16x128xf32>
    %660 = arith.addf %657, %659 : vector<16x128xf32>
    %cst_339 = arith.constant 0.000000e+00 : f32
    %661 = vector.broadcast %cst_339 : f32 to vector<16x128xf32>
    %662 = arith.maximumf %660, %661 : vector<16x128xf32>
    %663 = arith.truncf %662 : vector<16x128xf32> to vector<16x128xbf16>
    %c0_340 = arith.constant 0 : index
    %c3_341 = arith.constant 3 : index
    %c0_342 = arith.constant 0 : index
    %c0_343 = arith.constant 0 : index
    %664 = vector.load %arg6[%c0_340, %c3_341, %c0_342, %c0_343] : memref<1x8x16x128xbf16, #tpu.memory_space<vmem>>, vector<1x1x16x128xbf16>
    %665 = vector.shape_cast %664 : vector<1x1x16x128xbf16> to vector<16x128xbf16>
    %666 = vector.shape_cast %663 : vector<16x128xbf16> to vector<1x1x16x128xbf16>
    tpu.vector_store %arg6[%c0_340, %c3_341, %c0_342, %c0_343], %666 {strides = array<i32>} : memref<1x8x16x128xbf16, #tpu.memory_space<vmem>>, vector<1x1x16x128xbf16>,
    %c4_344 = arith.constant 4 : index
    %c18_345 = arith.constant 18 : index
    %667 = memref.load %arg2[%c4_344, %c18_345] : memref<8x27xf32, #tpu.memory_space<smem>>
    %668 = vector.broadcast %667 : f32 to vector<16x128xf32>
    %669 = arith.mulf %310, %668 : vector<16x128xf32>
    %c4_346 = arith.constant 4 : index
    %c19_347 = arith.constant 19 : index
    %670 = memref.load %arg2[%c4_346, %c19_347] : memref<8x27xf32, #tpu.memory_space<smem>>
    %671 = vector.broadcast %670 : f32 to vector<16x128xf32>
    %672 = arith.mulf %338, %671 : vector<16x128xf32>
    %673 = arith.addf %669, %672 : vector<16x128xf32>
    %c4_348 = arith.constant 4 : index
    %c20_349 = arith.constant 20 : index
    %674 = memref.load %arg2[%c4_348, %c20_349] : memref<8x27xf32, #tpu.memory_space<smem>>
    %675 = vector.broadcast %674 : f32 to vector<16x128xf32>
    %676 = arith.mulf %366, %675 : vector<16x128xf32>
    %677 = arith.addf %673, %676 : vector<16x128xf32>
    %c4_350 = arith.constant 4 : index
    %c21_351 = arith.constant 21 : index
    %678 = memref.load %arg2[%c4_350, %c21_351] : memref<8x27xf32, #tpu.memory_space<smem>>
    %679 = vector.broadcast %678 : f32 to vector<16x128xf32>
    %680 = arith.mulf %394, %679 : vector<16x128xf32>
    %681 = arith.addf %677, %680 : vector<16x128xf32>
    %c4_352 = arith.constant 4 : index
    %c22_353 = arith.constant 22 : index
    %682 = memref.load %arg2[%c4_352, %c22_353] : memref<8x27xf32, #tpu.memory_space<smem>>
    %683 = vector.broadcast %682 : f32 to vector<16x128xf32>
    %684 = arith.mulf %422, %683 : vector<16x128xf32>
    %685 = arith.addf %681, %684 : vector<16x128xf32>
    %c4_354 = arith.constant 4 : index
    %c23_355 = arith.constant 23 : index
    %686 = memref.load %arg2[%c4_354, %c23_355] : memref<8x27xf32, #tpu.memory_space<smem>>
    %687 = vector.broadcast %686 : f32 to vector<16x128xf32>
    %688 = arith.mulf %450, %687 : vector<16x128xf32>
    %689 = arith.addf %685, %688 : vector<16x128xf32>
    %c4_356 = arith.constant 4 : index
    %c24_357 = arith.constant 24 : index
    %690 = memref.load %arg2[%c4_356, %c24_357] : memref<8x27xf32, #tpu.memory_space<smem>>
    %691 = vector.broadcast %690 : f32 to vector<16x128xf32>
    %692 = arith.mulf %478, %691 : vector<16x128xf32>
    %693 = arith.addf %689, %692 : vector<16x128xf32>
    %c4_358 = arith.constant 4 : index
    %c25_359 = arith.constant 25 : index
    %694 = memref.load %arg2[%c4_358, %c25_359] : memref<8x27xf32, #tpu.memory_space<smem>>
    %695 = vector.broadcast %694 : f32 to vector<16x128xf32>
    %696 = arith.mulf %506, %695 : vector<16x128xf32>
    %697 = arith.addf %693, %696 : vector<16x128xf32>
    %c4_360 = arith.constant 4 : index
    %c26_361 = arith.constant 26 : index
    %698 = memref.load %arg2[%c4_360, %c26_361] : memref<8x27xf32, #tpu.memory_space<smem>>
    %699 = vector.broadcast %698 : f32 to vector<16x128xf32>
    %700 = arith.addf %697, %699 : vector<16x128xf32>
    %cst_362 = arith.constant 0.000000e+00 : f32
    %701 = vector.broadcast %cst_362 : f32 to vector<16x128xf32>
    %702 = arith.maximumf %700, %701 : vector<16x128xf32>
    %703 = arith.truncf %702 : vector<16x128xf32> to vector<16x128xbf16>
    %c0_363 = arith.constant 0 : index
    %c4_364 = arith.constant 4 : index
    %c0_365 = arith.constant 0 : index
    %c0_366 = arith.constant 0 : index
    %704 = vector.load %arg6[%c0_363, %c4_364, %c0_365, %c0_366] : memref<1x8x16x128xbf16, #tpu.memory_space<vmem>>, vector<1x1x16x128xbf16>
    %705 = vector.shape_cast %704 : vector<1x1x16x128xbf16> to vector<16x128xbf16>
    %706 = vector.shape_cast %703 : vector<16x128xbf16> to vector<1x1x16x128xbf16>
    tpu.vector_store %arg6[%c0_363, %c4_364, %c0_365, %c0_366], %706 {strides = array<i32>} : memref<1x8x16x128xbf16, #tpu.memory_space<vmem>>, vector<1x1x16x128xbf16>,
    %c5_367 = arith.constant 5 : index
    %c18_368 = arith.constant 18 : index
    %707 = memref.load %arg2[%c5_367, %c18_368] : memref<8x27xf32, #tpu.memory_space<smem>>
    %708 = vector.broadcast %707 : f32 to vector<16x128xf32>
    %709 = arith.mulf %310, %708 : vector<16x128xf32>
    %c5_369 = arith.constant 5 : index
    %c19_370 = arith.constant 19 : index
    %710 = memref.load %arg2[%c5_369, %c19_370] : memref<8x27xf32, #tpu.memory_space<smem>>
    %711 = vector.broadcast %710 : f32 to vector<16x128xf32>
    %712 = arith.mulf %338, %711 : vector<16x128xf32>
    %713 = arith.addf %709, %712 : vector<16x128xf32>
    %c5_371 = arith.constant 5 : index
    %c20_372 = arith.constant 20 : index
    %714 = memref.load %arg2[%c5_371, %c20_372] : memref<8x27xf32, #tpu.memory_space<smem>>
    %715 = vector.broadcast %714 : f32 to vector<16x128xf32>
    %716 = arith.mulf %366, %715 : vector<16x128xf32>
    %717 = arith.addf %713, %716 : vector<16x128xf32>
    %c5_373 = arith.constant 5 : index
    %c21_374 = arith.constant 21 : index
    %718 = memref.load %arg2[%c5_373, %c21_374] : memref<8x27xf32, #tpu.memory_space<smem>>
    %719 = vector.broadcast %718 : f32 to vector<16x128xf32>
    %720 = arith.mulf %394, %719 : vector<16x128xf32>
    %721 = arith.addf %717, %720 : vector<16x128xf32>
    %c5_375 = arith.constant 5 : index
    %c22_376 = arith.constant 22 : index
    %722 = memref.load %arg2[%c5_375, %c22_376] : memref<8x27xf32, #tpu.memory_space<smem>>
    %723 = vector.broadcast %722 : f32 to vector<16x128xf32>
    %724 = arith.mulf %422, %723 : vector<16x128xf32>
    %725 = arith.addf %721, %724 : vector<16x128xf32>
    %c5_377 = arith.constant 5 : index
    %c23_378 = arith.constant 23 : index
    %726 = memref.load %arg2[%c5_377, %c23_378] : memref<8x27xf32, #tpu.memory_space<smem>>
    %727 = vector.broadcast %726 : f32 to vector<16x128xf32>
    %728 = arith.mulf %450, %727 : vector<16x128xf32>
    %729 = arith.addf %725, %728 : vector<16x128xf32>
    %c5_379 = arith.constant 5 : index
    %c24_380 = arith.constant 24 : index
    %730 = memref.load %arg2[%c5_379, %c24_380] : memref<8x27xf32, #tpu.memory_space<smem>>
    %731 = vector.broadcast %730 : f32 to vector<16x128xf32>
    %732 = arith.mulf %478, %731 : vector<16x128xf32>
    %733 = arith.addf %729, %732 : vector<16x128xf32>
    %c5_381 = arith.constant 5 : index
    %c25_382 = arith.constant 25 : index
    %734 = memref.load %arg2[%c5_381, %c25_382] : memref<8x27xf32, #tpu.memory_space<smem>>
    %735 = vector.broadcast %734 : f32 to vector<16x128xf32>
    %736 = arith.mulf %506, %735 : vector<16x128xf32>
    %737 = arith.addf %733, %736 : vector<16x128xf32>
    %c5_383 = arith.constant 5 : index
    %c26_384 = arith.constant 26 : index
    %738 = memref.load %arg2[%c5_383, %c26_384] : memref<8x27xf32, #tpu.memory_space<smem>>
    %739 = vector.broadcast %738 : f32 to vector<16x128xf32>
    %740 = arith.addf %737, %739 : vector<16x128xf32>
    %cst_385 = arith.constant 0.000000e+00 : f32
    %741 = vector.broadcast %cst_385 : f32 to vector<16x128xf32>
    %742 = arith.maximumf %740, %741 : vector<16x128xf32>
    %743 = arith.truncf %742 : vector<16x128xf32> to vector<16x128xbf16>
    %c0_386 = arith.constant 0 : index
    %c5_387 = arith.constant 5 : index
    %c0_388 = arith.constant 0 : index
    %c0_389 = arith.constant 0 : index
    %744 = vector.load %arg6[%c0_386, %c5_387, %c0_388, %c0_389] : memref<1x8x16x128xbf16, #tpu.memory_space<vmem>>, vector<1x1x16x128xbf16>
    %745 = vector.shape_cast %744 : vector<1x1x16x128xbf16> to vector<16x128xbf16>
    %746 = vector.shape_cast %743 : vector<16x128xbf16> to vector<1x1x16x128xbf16>
    tpu.vector_store %arg6[%c0_386, %c5_387, %c0_388, %c0_389], %746 {strides = array<i32>} : memref<1x8x16x128xbf16, #tpu.memory_space<vmem>>, vector<1x1x16x128xbf16>,
    %c6_390 = arith.constant 6 : index
    %c18_391 = arith.constant 18 : index
    %747 = memref.load %arg2[%c6_390, %c18_391] : memref<8x27xf32, #tpu.memory_space<smem>>
    %748 = vector.broadcast %747 : f32 to vector<16x128xf32>
    %749 = arith.mulf %310, %748 : vector<16x128xf32>
    %c6_392 = arith.constant 6 : index
    %c19_393 = arith.constant 19 : index
    %750 = memref.load %arg2[%c6_392, %c19_393] : memref<8x27xf32, #tpu.memory_space<smem>>
    %751 = vector.broadcast %750 : f32 to vector<16x128xf32>
    %752 = arith.mulf %338, %751 : vector<16x128xf32>
    %753 = arith.addf %749, %752 : vector<16x128xf32>
    %c6_394 = arith.constant 6 : index
    %c20_395 = arith.constant 20 : index
    %754 = memref.load %arg2[%c6_394, %c20_395] : memref<8x27xf32, #tpu.memory_space<smem>>
    %755 = vector.broadcast %754 : f32 to vector<16x128xf32>
    %756 = arith.mulf %366, %755 : vector<16x128xf32>
    %757 = arith.addf %753, %756 : vector<16x128xf32>
    %c6_396 = arith.constant 6 : index
    %c21_397 = arith.constant 21 : index
    %758 = memref.load %arg2[%c6_396, %c21_397] : memref<8x27xf32, #tpu.memory_space<smem>>
    %759 = vector.broadcast %758 : f32 to vector<16x128xf32>
    %760 = arith.mulf %394, %759 : vector<16x128xf32>
    %761 = arith.addf %757, %760 : vector<16x128xf32>
    %c6_398 = arith.constant 6 : index
    %c22_399 = arith.constant 22 : index
    %762 = memref.load %arg2[%c6_398, %c22_399] : memref<8x27xf32, #tpu.memory_space<smem>>
    %763 = vector.broadcast %762 : f32 to vector<16x128xf32>
    %764 = arith.mulf %422, %763 : vector<16x128xf32>
    %765 = arith.addf %761, %764 : vector<16x128xf32>
    %c6_400 = arith.constant 6 : index
    %c23_401 = arith.constant 23 : index
    %766 = memref.load %arg2[%c6_400, %c23_401] : memref<8x27xf32, #tpu.memory_space<smem>>
    %767 = vector.broadcast %766 : f32 to vector<16x128xf32>
    %768 = arith.mulf %450, %767 : vector<16x128xf32>
    %769 = arith.addf %765, %768 : vector<16x128xf32>
    %c6_402 = arith.constant 6 : index
    %c24_403 = arith.constant 24 : index
    %770 = memref.load %arg2[%c6_402, %c24_403] : memref<8x27xf32, #tpu.memory_space<smem>>
    %771 = vector.broadcast %770 : f32 to vector<16x128xf32>
    %772 = arith.mulf %478, %771 : vector<16x128xf32>
    %773 = arith.addf %769, %772 : vector<16x128xf32>
    %c6_404 = arith.constant 6 : index
    %c25_405 = arith.constant 25 : index
    %774 = memref.load %arg2[%c6_404, %c25_405] : memref<8x27xf32, #tpu.memory_space<smem>>
    %775 = vector.broadcast %774 : f32 to vector<16x128xf32>
    %776 = arith.mulf %506, %775 : vector<16x128xf32>
    %777 = arith.addf %773, %776 : vector<16x128xf32>
    %c6_406 = arith.constant 6 : index
    %c26_407 = arith.constant 26 : index
    %778 = memref.load %arg2[%c6_406, %c26_407] : memref<8x27xf32, #tpu.memory_space<smem>>
    %779 = vector.broadcast %778 : f32 to vector<16x128xf32>
    %780 = arith.addf %777, %779 : vector<16x128xf32>
    %cst_408 = arith.constant 0.000000e+00 : f32
    %781 = vector.broadcast %cst_408 : f32 to vector<16x128xf32>
    %782 = arith.maximumf %780, %781 : vector<16x128xf32>
    %783 = arith.truncf %782 : vector<16x128xf32> to vector<16x128xbf16>
    %c0_409 = arith.constant 0 : index
    %c6_410 = arith.constant 6 : index
    %c0_411 = arith.constant 0 : index
    %c0_412 = arith.constant 0 : index
    %784 = vector.load %arg6[%c0_409, %c6_410, %c0_411, %c0_412] : memref<1x8x16x128xbf16, #tpu.memory_space<vmem>>, vector<1x1x16x128xbf16>
    %785 = vector.shape_cast %784 : vector<1x1x16x128xbf16> to vector<16x128xbf16>
    %786 = vector.shape_cast %783 : vector<16x128xbf16> to vector<1x1x16x128xbf16>
    tpu.vector_store %arg6[%c0_409, %c6_410, %c0_411, %c0_412], %786 {strides = array<i32>} : memref<1x8x16x128xbf16, #tpu.memory_space<vmem>>, vector<1x1x16x128xbf16>,
    %c7_413 = arith.constant 7 : index
    %c18_414 = arith.constant 18 : index
    %787 = memref.load %arg2[%c7_413, %c18_414] : memref<8x27xf32, #tpu.memory_space<smem>>
    %788 = vector.broadcast %787 : f32 to vector<16x128xf32>
    %789 = arith.mulf %310, %788 : vector<16x128xf32>
    %c7_415 = arith.constant 7 : index
    %c19_416 = arith.constant 19 : index
    %790 = memref.load %arg2[%c7_415, %c19_416] : memref<8x27xf32, #tpu.memory_space<smem>>
    %791 = vector.broadcast %790 : f32 to vector<16x128xf32>
    %792 = arith.mulf %338, %791 : vector<16x128xf32>
    %793 = arith.addf %789, %792 : vector<16x128xf32>
    %c7_417 = arith.constant 7 : index
    %c20_418 = arith.constant 20 : index
    %794 = memref.load %arg2[%c7_417, %c20_418] : memref<8x27xf32, #tpu.memory_space<smem>>
    %795 = vector.broadcast %794 : f32 to vector<16x128xf32>
    %796 = arith.mulf %366, %795 : vector<16x128xf32>
    %797 = arith.addf %793, %796 : vector<16x128xf32>
    %c7_419 = arith.constant 7 : index
    %c21_420 = arith.constant 21 : index
    %798 = memref.load %arg2[%c7_419, %c21_420] : memref<8x27xf32, #tpu.memory_space<smem>>
    %799 = vector.broadcast %798 : f32 to vector<16x128xf32>
    %800 = arith.mulf %394, %799 : vector<16x128xf32>
    %801 = arith.addf %797, %800 : vector<16x128xf32>
    %c7_421 = arith.constant 7 : index
    %c22_422 = arith.constant 22 : index
    %802 = memref.load %arg2[%c7_421, %c22_422] : memref<8x27xf32, #tpu.memory_space<smem>>
    %803 = vector.broadcast %802 : f32 to vector<16x128xf32>
    %804 = arith.mulf %422, %803 : vector<16x128xf32>
    %805 = arith.addf %801, %804 : vector<16x128xf32>
    %c7_423 = arith.constant 7 : index
    %c23_424 = arith.constant 23 : index
    %806 = memref.load %arg2[%c7_423, %c23_424] : memref<8x27xf32, #tpu.memory_space<smem>>
    %807 = vector.broadcast %806 : f32 to vector<16x128xf32>
    %808 = arith.mulf %450, %807 : vector<16x128xf32>
    %809 = arith.addf %805, %808 : vector<16x128xf32>
    %c7_425 = arith.constant 7 : index
    %c24_426 = arith.constant 24 : index
    %810 = memref.load %arg2[%c7_425, %c24_426] : memref<8x27xf32, #tpu.memory_space<smem>>
    %811 = vector.broadcast %810 : f32 to vector<16x128xf32>
    %812 = arith.mulf %478, %811 : vector<16x128xf32>
    %813 = arith.addf %809, %812 : vector<16x128xf32>
    %c7_427 = arith.constant 7 : index
    %c25_428 = arith.constant 25 : index
    %814 = memref.load %arg2[%c7_427, %c25_428] : memref<8x27xf32, #tpu.memory_space<smem>>
    %815 = vector.broadcast %814 : f32 to vector<16x128xf32>
    %816 = arith.mulf %506, %815 : vector<16x128xf32>
    %817 = arith.addf %813, %816 : vector<16x128xf32>
    %c7_429 = arith.constant 7 : index
    %c26_430 = arith.constant 26 : index
    %818 = memref.load %arg2[%c7_429, %c26_430] : memref<8x27xf32, #tpu.memory_space<smem>>
    %819 = vector.broadcast %818 : f32 to vector<16x128xf32>
    %820 = arith.addf %817, %819 : vector<16x128xf32>
    %cst_431 = arith.constant 0.000000e+00 : f32
    %821 = vector.broadcast %cst_431 : f32 to vector<16x128xf32>
    %822 = arith.maximumf %820, %821 : vector<16x128xf32>
    %823 = arith.truncf %822 : vector<16x128xf32> to vector<16x128xbf16>
    %c0_432 = arith.constant 0 : index
    %c7_433 = arith.constant 7 : index
    %c0_434 = arith.constant 0 : index
    %c0_435 = arith.constant 0 : index
    %824 = vector.load %arg6[%c0_432, %c7_433, %c0_434, %c0_435] : memref<1x8x16x128xbf16, #tpu.memory_space<vmem>>, vector<1x1x16x128xbf16>
    %825 = vector.shape_cast %824 : vector<1x1x16x128xbf16> to vector<16x128xbf16>
    %826 = vector.shape_cast %823 : vector<16x128xbf16> to vector<1x1x16x128xbf16>
    tpu.vector_store %arg6[%c0_432, %c7_433, %c0_434, %c0_435], %826 {strides = array<i32>} : memref<1x8x16x128xbf16, #tpu.memory_space<vmem>>, vector<1x1x16x128xbf16>,
    return
  }
  func.func @transform_0(%arg0: i32, %arg1: i32, %arg2: memref<8x27xf32, #tpu.memory_space<smem>>) -> (i32, i32, i32) {
    %c0_i32 = arith.constant 0 : i32
    %c0_i32_0 = arith.constant 0 : i32
    %c0_i32_1 = arith.constant 0 : i32
    return %arg1, %c0_i32, %c0_i32_0 : i32, i32, i32
  }
  func.func @transform_1(%arg0: i32, %arg1: i32, %arg2: memref<8x27xf32, #tpu.memory_space<smem>>) -> (i32, i32) {
    %c0_i32 = arith.constant 0 : i32
    %c0_i32_0 = arith.constant 0 : i32
    %c0_i32_1 = arith.constant 0 : i32
    return %c0_i32, %c0_i32_0 : i32, i32
  }
  func.func @transform_2(%arg0: i32, %arg1: i32, %arg2: memref<8x27xf32, #tpu.memory_space<smem>>) -> (i32, i32, i32, i32) {
    %c0_i32 = arith.constant 0 : i32
    %c0_i32_0 = arith.constant 0 : i32
    %c0_i32_1 = arith.constant 0 : i32
    %c0_i32_2 = arith.constant 0 : i32
    return %arg0, %c0_i32, %c0_i32_0, %c0_i32_1 : i32, i32, i32, i32
  }
  func.func @transform_3(%arg0: i32, %arg1: i32, %arg2: memref<8x27xf32, #tpu.memory_space<smem>>) -> (i32, i32, i32, i32) {
    %c0_i32 = arith.constant 0 : i32
    %c0_i32_0 = arith.constant 0 : i32
    %c0_i32_1 = arith.constant 0 : i32
    return %arg0, %c0_i32, %arg1, %c0_i32_0 : i32, i32, i32, i32
  }
}

</mosaic_0001>

<llo_original>
// kernel: tpu_custom_call.1
$region0: #{tpu_custom_call.1}
  #allocation0 [shape = 'u32[]', space=smem, size = 0x4, offset = 0x4, fixed_abs, tag = 'smem constant byte address 0x4 - core index']
  #allocation1 [shape = 'u32[72,128]{1,0:T(1,128)}', space=vmem, size = 0x9000, scoped, tag = 'internal scratch']
  #allocation2 [shape = 's32[1]{0}', space=sflag, size = 0x4, scoped, tag = 'scoped memory for tpu_custom_call.1']
  #allocation3 [shape = 'u8[4096]{0}', space=smem, size = 0x1000, scoped, tag = 'prefetched SMEM operand 0']
  #allocation10 [shape = 's32[]', space=sflag, size = 0x4, offset = 0, fixed_abs, tag = 'sflag constant byte address 0x0 - dummy sync flag']
  %s0 = inlined_call_operand.vmem [shape: f32[8,27], index: 0, kind: input, shape index: {}]
  %s1 = inlined_call_operand.vmem [shape: bf16[2,16,10], index: 1, kind: input, shape index: {}]
  %s2 = inlined_call_operand.hbm [shape: bf16[64,128], index: 2, kind: input, shape index: {}]
  %s3 = inlined_call_operand.hbm [shape: f32[2,4,16,64], index: 3, kind: input, shape index: {}]
  %s4 = inlined_call_operand.hbm [shape: bf16[2,8,32,128], index: 4, kind: output, shape index: {}]
  %s5 = sld [smem:[#allocation0]]
  $region53: #{tpu_custom_call.1} parent=0
    _
  %s7 = ssub.s32 1, %s5
  %s8 = scalar_select 0, %s7, %s5
  %s10 = sshll.u32 %s0, 4
  %s11 = int_to_ptr.vmem [resolvable:$true] %s10
  %13 = dma.vmem_to_smem %s11, 128, [#allocation3], [#allocation2]
  %15 = dma.done [#allocation2], 128
  %16 = sfence
  $region1: #{tpu_custom_call.1} parent=0
    #allocation4 [shape = 'u8[16384]{0}', space=vmem, size = 0x4000, scoped, tag = 'input window, operand 2, single buffered']
    #allocation5 [shape = 's32[2]{0}', space=sflag, size = 0x8, scoped, tag = 'scoped memory for tpu_custom_call.1']
    #allocation6 [shape = 's32[2]{0}', space=sflag, size = 0x8, scoped, tag = 'scoped memory for tpu_custom_call.1']
    #allocation7 [shape = 'u8[65536]{0}', space=vmem, size = 0x10000, scoped, tag = 'input window, operand 3']
    #allocation8 [shape = 's32[2]{0}', space=sflag, size = 0x8, scoped, tag = 'scoped memory for tpu_custom_call.1']
    #allocation9 [shape = 'u8[65536]{0}', space=vmem, size = 0x10000, scoped, tag = 'output window, operand 0']
    %17 = vsyncpa [#allocation5], 0
    %18 = vsyncpa [#allocation8], 0
    %s19 = scalar_lea.sflag [#allocation8], 1
    %20 = vsyncpa %s19, 0
    %21 = vsyncpa [#allocation6], 0
    %s22 = scalar_lea.sflag [#allocation6], 1
    %23 = vsyncpa %s22, 0
    loop: start=0, step=1, limit=6
    $region2: #{tpu_custom_call.1} parent=1 // loop_pre_header
      _
    $region3: #{tpu_custom_call.1} parent=1 // loop_header
      %s25 = sphi 0, %s29
      %p26 = scmp.ge.s32.totalorder %s25, 6
      %s32 = sphi 0, %s44
      %s33 = sphi 0, %s40
      %s34 = sphi 0, %s32
      %s35 = sphi 0, %s33
      %s36 = sphi 0, %s34
      %s37 = sphi 0, %s35
      %s47 = sphi 0, %s49
      %s50 = sphi 0, %s47
      %s51 = sphi 0, %s50
      %s67 = sphi 0, %s51
      %s71 = sphi 0, %s71
      %s73 = sphi 0, %s71
      %s74 = sphi 0, %s73
      %s88 = sphi 0, %s74
      %s94 = sphi 0, %s96
      %s97 = sphi 0, %s94
      %s98 = sphi 0, %s97
      %s114 = sphi 0, %s98
      %s122 = sphi 0, %s124
      %s125 = sphi 0, %s122
      %s126 = sphi 0, %s125
      %s142 = sphi 0, %s126
    $region4: #{tpu_custom_call.1} parent=1 // loop_header_branch
      %28 = sbr.rel (%p26) target = $region8
    $region5: #{tpu_custom_call.1} parent=1 // loop_body
      %s30 = ssub.s32 %s25, 1
      %s31 = ssub.s32 %s25, 2
      %s38 = sadd.s32 1, %s33
      %p39 = scmp.ge.s32.totalorder %s38, 2
      %s40 = scalar_select %p39, 0, %s38
      %s41 = sadd.s32 1, %s32
      %s42 = scalar_select %p39, %s41, %s32
      %p43 = scmp.ge.s32.totalorder %s42, 2
      %s44 = scalar_select %p43, 0, %s42
      %s45 = ssub.s32 %s33, %s40
      %p46 = scmp.eq.s32.totalorder %s45, 0
      %s48 = sadd.s32 %s47, 1
      %s49 = scalar_select %p46, %s47, %s48
      %p52 = pneg %p46
      %p53 = scmp.eq.s32.totalorder %s25, 3
      %p54 = por %p52, %p53
      %p55 = scmp.ne.s32.totalorder %s47, %s50
      %p56 = scmp.eq.s32.totalorder %s25, 0
      %p57 = por %p55, %p56
      %p58 = scmp.ne.s32.totalorder %s47, %s50
      %p59 = scmp.eq.s32.totalorder %s30, 3
      %p60 = por %p58, %p59
      %p61 = scmp.ne.s32.totalorder %s50, %s51
      %p62 = scmp.eq.s32.totalorder %s30, 0
      %p63 = por %p61, %p62
      %p64 = scmp.ne.s32.totalorder %s50, %s51
      %p65 = scmp.eq.s32.totalorder %s31, 3
      %p66 = por %p64, %p65
      %p68 = scmp.ne.s32.totalorder %s51, %s67
      %p69 = scmp.eq.s32.totalorder %s31, 0
      %p70 = por %p68, %p69
      %s72 = sadd.s32 %s71, 1
      %p75 = scmp.eq.s32.totalorder %s25, 3
      %p76 = scmp.ne.s32.totalorder %s71, %s73
      %p77 = scmp.eq.s32.totalorder %s25, 0
      %p78 = por %p76, %p77
      %p79 = scmp.ne.s32.totalorder %s71, %s73
      %p80 = scmp.eq.s32.totalorder %s30, 3
      %p81 = por %p79, %p80
      %p82 = scmp.ne.s32.totalorder %s73, %s74
      %p83 = scmp.eq.s32.totalorder %s30, 0
      %p84 = por %p82, %p83
      %p85 = scmp.ne.s32.totalorder %s73, %s74
      %p86 = scmp.eq.s32.totalorder %s31, 3
      %p87 = por %p85, %p86
      %p89 = scmp.ne.s32.totalorder %s74, %s88
      %p90 = scmp.eq.s32.totalorder %s31, 0
      %p91 = por %p89, %p90
      %s92 = ssub.s32 %s32, %s44
      %p93 = scmp.eq.s32.totalorder %s92, 0
      %s95 = sadd.s32 %s94, 1
      %s96 = scalar_select %p93, %s94, %s95
      %p99 = pneg %p93
      %p100 = scmp.eq.s32.totalorder %s25, 3
      %p101 = por %p99, %p100
      %p102 = scmp.ne.s32.totalorder %s94, %s97
      %p103 = scmp.eq.s32.totalorder %s25, 0
      %p104 = por %p102, %p103
      %p105 = scmp.ne.s32.totalorder %s94, %s97
      %p106 = scmp.eq.s32.totalorder %s30, 3
      %p107 = por %p105, %p106
      %p108 = scmp.ne.s32.totalorder %s97, %s98
      %p109 = scmp.eq.s32.totalorder %s30, 0
      %p110 = por %p108, %p109
      %p111 = scmp.ne.s32.totalorder %s97, %s98
      %p112 = scmp.eq.s32.totalorder %s31, 3
      %p113 = por %p111, %p112
      %p115 = scmp.ne.s32.totalorder %s98, %s114
      %p116 = scmp.eq.s32.totalorder %s31, 0
      %p117 = por %p115, %p116
      %s118 = ssub.s32 %s32, %s44
      %s119 = ssub.s32 %s33, %s40
      %s120 = sor.u32 %s118, %s119
      %p121 = scmp.eq.s32.totalorder %s120, 0
      %s123 = sadd.s32 %s122, 1
      %s124 = scalar_select %p121, %s122, %s123
      %p127 = pneg %p121
      %p128 = scmp.eq.s32.totalorder %s25, 3
      %p129 = por %p127, %p128
      %p130 = scmp.ne.s32.totalorder %s122, %s125
      %p131 = scmp.eq.s32.totalorder %s25, 0
      %p132 = por %p130, %p131
      %p133 = scmp.ne.s32.totalorder %s122, %s125
      %p134 = scmp.eq.s32.totalorder %s30, 3
      %p135 = por %p133, %p134
      %p136 = scmp.ne.s32.totalorder %s125, %s126
      %p137 = scmp.eq.s32.totalorder %s30, 0
      %p138 = por %p136, %p137
      %p139 = scmp.ne.s32.totalorder %s125, %s126
      %p140 = scmp.eq.s32.totalorder %s31, 3
      %p141 = por %p139, %p140
      %p143 = scmp.ne.s32.totalorder %s126, %s142
      %p144 = scmp.eq.s32.totalorder %s31, 0
      %p145 = por %p143, %p144
      %p146 = scmp.le.s32.totalorder 1, %s25
      %p147 = scmp.lt.s32.totalorder %s25, 5
      %p148 = pnand %p146, %p147
      %p149 = pneg %p148
      // Predicated region
      $region9: #{tpu_custom_call.1} parent=5 // pred_check
        _
      $region10: #{tpu_custom_call.1} parent=5 // pred_check_branch
        %151 = sbr.rel (%p148) target = $region12
      $region11: #{tpu_custom_call.1} parent=5 // pred_region
        %s152 = ssub.s32 %s25, 1
        // Predicated region
        $region13: #{tpu_custom_call.1} parent=11 // pred_check
          %p153 = pneg %p84
        $region14: #{tpu_custom_call.1} parent=11 // pred_check_branch
          %155 = sbr.rel (%p153) target = $region16
        $region15: #{tpu_custom_call.1} parent=11 // pred_region
          %157 = vsyncadd [#allocation5], 0
          %s158 = sshll.u32 %s2, 4
          %s159 = int_to_ptr.hbm [resolvable:$true] %s158
          %s160 = sshll.u32 [#allocation4], 4
          %s161 = int_to_ptr.vmem [resolvable:$true] %s160
          %166 = dma.hbm_to_vmem [thread:$0]  %s159, 512, %s161, [#allocation5], 64, 64, 4
        $region16: #{tpu_custom_call.1} parent=11 // pred_fallthru
          _
      $region12: #{tpu_custom_call.1} parent=5 // pred_fallthru
        _
      %p167 = scmp.lt.s32.totalorder %s25, 4
      // Predicated region
      $region17: #{tpu_custom_call.1} parent=5 // pred_check
        %p168 = pneg %p167
      $region18: #{tpu_custom_call.1} parent=5 // pred_check_branch
        %170 = sbr.rel (%p168) target = $region20
      $region19: #{tpu_custom_call.1} parent=5 // pred_region
        // Predicated region
        $region21: #{tpu_custom_call.1} parent=19 // pred_check
          %p171 = pneg %p57
        $region22: #{tpu_custom_call.1} parent=19 // pred_check_branch
          %173 = sbr.rel (%p171) target = $region24
        $region23: #{tpu_custom_call.1} parent=19 // pred_region
          %p174 = scmp.lt.s32.totalorder %s33, 1
          %s175 = scalar_select %p174, %s33, 1
          %s176 = smul.addr %s175, 2
          %s177 = smul.addr %s176, 4
          %s178 = scalar_lea.vmem %s1, %s177
        $region24: #{tpu_custom_call.1} parent=19 // pred_fallthru
          _
        // Predicated region
        $region25: #{tpu_custom_call.1} parent=19 // pred_check
          %p179 = pneg %p104
        $region26: #{tpu_custom_call.1} parent=19 // pred_check_branch
          %181 = sbr.rel (%p179) target = $region28
        $region27: #{tpu_custom_call.1} parent=19 // pred_region
          %s182 = sand.u32 %s94, 1
          %s183 = scalar_lea.sflag [#allocation8], %s182
          %s184 = sand.u32 %s94, 1
          %s185 = smul.addr %s184, 64
          %s186 = scalar_lea.vmem [#allocation7], %s185
          %188 = vsyncadd %s183, 0
          %s189 = smul.addr %s32, 8
          %s190 = smul.addr %s189, 8
          %s191 = scalar_lea.hbm %s3, %s190
          %s192 = sshll.u32 %s191, 4
          %s193 = int_to_ptr.hbm [resolvable:$true] %s192
          %s194 = sshll.u32 %s186, 4
          %s195 = int_to_ptr.vmem [resolvable:$true] %s194
          %200 = dma.hbm_to_vmem [thread:$0]  %s193, 1024, %s195, %s183, 128, 128, 8
        $region28: #{tpu_custom_call.1} parent=19 // pred_fallthru
          _
      $region20: #{tpu_custom_call.1} parent=5 // pred_fallthru
        _
      %p201 = scmp.le.s32.totalorder 1, %s25
      %p202 = scmp.lt.s32.totalorder %s25, 5
      %p203 = pnand %p201, %p202
      %p204 = pneg %p203
      // Predicated region
      $region29: #{tpu_custom_call.1} parent=5 // pred_check
        _
      $region30: #{tpu_custom_call.1} parent=5 // pred_check_branch
        %206 = sbr.rel (%p203) target = $region32
      $region31: #{tpu_custom_call.1} parent=5 // pred_region
        %s207 = ssub.s32 %s25, 1
        // Predicated region
        $region33: #{tpu_custom_call.1} parent=31 // pred_check
          %p208 = pneg %p84
        $region34: #{tpu_custom_call.1} parent=31 // pred_check_branch
          %210 = sbr.rel (%p208) target = $region36
        $region35: #{tpu_custom_call.1} parent=31 // pred_region
          %212 = dma.done [#allocation5], 512
        $region36: #{tpu_custom_call.1} parent=31 // pred_fallthru
          _
        %s213 = sand.u32 %s97, 1
        %s214 = scalar_lea.sflag [#allocation8], %s213
        %s215 = sand.u32 %s97, 1
        %s216 = smul.addr %s215, 64
        %s217 = scalar_lea.vmem [#allocation7], %s216
        // Predicated region
        $region37: #{tpu_custom_call.1} parent=31 // pred_check
          %p218 = pneg %p110
        $region38: #{tpu_custom_call.1} parent=31 // pred_check_branch
          %220 = sbr.rel (%p218) target = $region40
        $region39: #{tpu_custom_call.1} parent=31 // pred_region
          %222 = dma.done %s214, 1024
        $region40: #{tpu_custom_call.1} parent=31 // pred_fallthru
          _
        %p223 = scmp.lt.s32.totalorder %s35, 1
        %s224 = scalar_select %p223, %s35, 1
        %s225 = smul.addr %s224, 2
        %s226 = smul.addr %s225, 4
        %s227 = scalar_lea.vmem %s1, %s226
        %p228 = pneg %p63
        %p229 = pneg %p60
        %p230 = pneg %p84
        %p231 = pneg %p81
        %s232 = sand.u32 %s97, 1
        %s233 = scalar_lea.sflag [#allocation8], %s232
        %s234 = sand.u32 %s97, 1
        %s235 = smul.addr %s234, 64
        %s236 = scalar_lea.vmem [#allocation7], %s235
        %p237 = pneg %p110
        %p238 = pneg %p107
        %p239 = pneg %p138
        %p240 = pneg %p135
        %s241 = sand.u32 %s125, 1
        %s242 = scalar_lea.sflag [#allocation6], %s241
        %s243 = sand.u32 %s125, 1
        %s244 = smul.addr %s243, 64
        %s245 = scalar_lea.vmem [#allocation9], %s244
        %p246 = scmp.lt.s32.totalorder %s35, 1
        %s247 = scalar_select %p246, %s35, 1
        %s248 = smul.addr %s247, 2
        %s249 = smul.addr %s248, 4
        %s250 = scalar_lea.vmem %s1, %s249
        %s251 = smul.u32 2, %s35
        %s253 = smul.u32 %s35, 8
        %s254 = ssub.s32 %s253, 1
        %p255 = scmp.gt.s32.totalorder %s254, 0
        %s256 = scalar_select %p255, %s254, 0
        %p257 = scmp.lt.s32.totalorder %s256, 6
        %s258 = scalar_select %p257, %s256, 6
        %s259 = scalar_lea.vmem %s217, %s258 [#allocation7]
        %v260 = vld [vmem:[%s259] sm:$0xff]
        %v261 = vld [vmem:[%s259 + $0x8] sm:$0x3]
        %s262 = sadd.s32 %s258, 16
        %s263 = scalar_lea.vmem %s217, %s262 [#allocation7]
        %v264 = vld [vmem:[%s263] sm:$0xff]
        %v265 = vld [vmem:[%s263 + $0x8] sm:$0x3]
        %s266 = sadd.s32 %s258, 32
        %s267 = scalar_lea.vmem %s217, %s266 [#allocation7]
        %v268 = vld [vmem:[%s267] sm:$0xff]
        %v269 = vld [vmem:[%s267 + $0x8] sm:$0x3]
        %s270 = sadd.s32 %s258, 48
        %s271 = scalar_lea.vmem %s217, %s270 [#allocation7]
        %v272 = vld [vmem:[%s271] sm:$0xff]
        %v273 = vld [vmem:[%s271 + $0x8] sm:$0x3]
        %s274 = sld [smem:[#allocation3]]
        %v275 = vstv %s274
        %v276 = vmul.f32 %v260, %v275
        %v277 = vmul.f32 %v261, %v275
        %s278 = sld [smem:[#allocation3 + $0x1]]
        %v279 = vstv %s278
        %v280 = vmul.f32 %v264, %v279
        %v281 = vmul.f32 %v265, %v279
        %v282 = vadd.f32 %v276, %v280
        %v283 = vadd.f32 %v277, %v281
        %s284 = sld [smem:[#allocation3 + $0x2]]
        %v285 = vstv %s284
        %v286 = vmul.f32 %v268, %v285
        %v287 = vmul.f32 %v269, %v285
        %v288 = vadd.f32 %v282, %v286
        %v289 = vadd.f32 %v283, %v287
        %s290 = sld [smem:[#allocation3 + $0x3]]
        %v291 = vstv %s290
        %v292 = vmul.f32 %v272, %v291
        %v293 = vmul.f32 %v273, %v291
        %v294 = vadd.f32 %v288, %v292
        %v295 = vadd.f32 %v289, %v293
        %s296 = sld [smem:[#allocation3 + $0x4]]
        %v297 = vstv %s296
        %v298 = vadd.f32 %v294, %v297
        %v299 = vadd.f32 %v295, %v297
        %v300 = vmax.f32 %v298, 0.0
        %v301 = vmax.f32 %v299, 0.0
        %s302 = sld [smem:[#allocation3 + $0x80]]
        %v303 = vstv %s302
        %v304 = vmul.f32 %v260, %v303
        %v305 = vmul.f32 %v261, %v303
        %s306 = sld [smem:[#allocation3 + $0x81]]
        %v307 = vstv %s306
        %v308 = vmul.f32 %v264, %v307
        %v309 = vmul.f32 %v265, %v307
        %v310 = vadd.f32 %v304, %v308
        %v311 = vadd.f32 %v305, %v309
        %s312 = sld [smem:[#allocation3 + $0x82]]
        %v313 = vstv %s312
        %v314 = vmul.f32 %v268, %v313
        %v315 = vmul.f32 %v269, %v313
        %v316 = vadd.f32 %v310, %v314
        %v317 = vadd.f32 %v311, %v315
        %s318 = sld [smem:[#allocation3 + $0x83]]
        %v319 = vstv %s318
        %v320 = vmul.f32 %v272, %v319
        %v321 = vmul.f32 %v273, %v319
        %v322 = vadd.f32 %v316, %v320
        %v323 = vadd.f32 %v317, %v321
        %s324 = sld [smem:[#allocation3 + $0x84]]
        %v325 = vstv %s324
        %v326 = vadd.f32 %v322, %v325
        %v327 = vadd.f32 %v323, %v325
        %v328 = vmax.f32 %v326, 0.0
        %v329 = vmax.f32 %v327, 0.0
        %s330 = sld [smem:[#allocation3 + $0x100]]
        %v331 = vstv %s330
        %v332 = vmul.f32 %v260, %v331
        %v333 = vmul.f32 %v261, %v331
        %s334 = sld [smem:[#allocation3 + $0x101]]
        %v335 = vstv %s334
        %v336 = vmul.f32 %v264, %v335
        %v337 = vmul.f32 %v265, %v335
        %v338 = vadd.f32 %v332, %v336
        %v339 = vadd.f32 %v333, %v337
        %s340 = sld [smem:[#allocation3 + $0x102]]
        %v341 = vstv %s340
        %v342 = vmul.f32 %v268, %v341
        %v343 = vmul.f32 %v269, %v341
        %v344 = vadd.f32 %v338, %v342
        %v345 = vadd.f32 %v339, %v343
        %s346 = sld [smem:[#allocation3 + $0x103]]
        %v347 = vstv %s346
        %v348 = vmul.f32 %v272, %v347
        %v349 = vmul.f32 %v273, %v347
        %v350 = vadd.f32 %v344, %v348
        %v351 = vadd.f32 %v345, %v349
        %s352 = sld [smem:[#allocation3 + $0x104]]
        %v353 = vstv %s352
        %v354 = vadd.f32 %v350, %v353
        %v355 = vadd.f32 %v351, %v353
        %v356 = vmax.f32 %v354, 0.0
        %v357 = vmax.f32 %v355, 0.0
        %s358 = sld [smem:[#allocation3 + $0x180]]
        %v359 = vstv %s358
        %v360 = vmul.f32 %v260, %v359
        %v361 = vmul.f32 %v261, %v359
        %s362 = sld [smem:[#allocation3 + $0x181]]
        %v363 = vstv %s362
        %v364 = vmul.f32 %v264, %v363
        %v365 = vmul.f32 %v265, %v363
        %v366 = vadd.f32 %v360, %v364
        %v367 = vadd.f32 %v361, %v365
        %s368 = sld [smem:[#allocation3 + $0x182]]
        %v369 = vstv %s368
        %v370 = vmul.f32 %v268, %v369
        %v371 = vmul.f32 %v269, %v369
        %v372 = vadd.f32 %v366, %v370
        %v373 = vadd.f32 %v367, %v371
        %s374 = sld [smem:[#allocation3 + $0x183]]
        %v375 = vstv %s374
        %v376 = vmul.f32 %v272, %v375
        %v377 = vmul.f32 %v273, %v375
        %v378 = vadd.f32 %v372, %v376
        %v379 = vadd.f32 %v373, %v377
        %s380 = sld [smem:[#allocation3 + $0x184]]
        %v381 = vstv %s380
        %v382 = vadd.f32 %v378, %v381
        %v383 = vadd.f32 %v379, %v381
        %v384 = vmax.f32 %v382, 0.0
        %v385 = vmax.f32 %v383, 0.0
        %s386 = sld [smem:[#allocation3 + $0x200]]
        %v387 = vstv %s386
        %v388 = vmul.f32 %v260, %v387
        %v389 = vmul.f32 %v261, %v387
        %s390 = sld [smem:[#allocation3 + $0x201]]
        %v391 = vstv %s390
        %v392 = vmul.f32 %v264, %v391
        %v393 = vmul.f32 %v265, %v391
        %v394 = vadd.f32 %v388, %v392
        %v395 = vadd.f32 %v389, %v393
        %s396 = sld [smem:[#allocation3 + $0x202]]
        %v397 = vstv %s396
        %v398 = vmul.f32 %v268, %v397
        %v399 = vmul.f32 %v269, %v397
        %v400 = vadd.f32 %v394, %v398
        %v401 = vadd.f32 %v395, %v399
        %s402 = sld [smem:[#allocation3 + $0x203]]
        %v403 = vstv %s402
        %v404 = vmul.f32 %v272, %v403
        %v405 = vmul.f32 %v273, %v403
        %v406 = vadd.f32 %v400, %v404
        %v407 = vadd.f32 %v401, %v405
        %s408 = sld [smem:[#allocation3 + $0x204]]
        %v409 = vstv %s408
        %v410 = vadd.f32 %v406, %v409
        %v411 = vadd.f32 %v407, %v409
        %v412 = vmax.f32 %v410, 0.0
        %v413 = vmax.f32 %v411, 0.0
        %v414 = vld [vmem:[%s250] sm:$0xf]
        %v415 = vld [vmem:[%s250 + $0x4] sm:$0xf]
        %v416 = vld [vmem:[#allocation4] sm:$0xf]
        %v417 = vld [vmem:[#allocation4 + $0x4] sm:$0xf]
        %v418 = vld [vmem:[#allocation4 + $0x8] sm:$0xf]
        %v419 = vld [vmem:[#allocation4 + $0xc] sm:$0xf]
        %v420 = vld [vmem:[#allocation4 + $0x10] sm:$0xf]
        %v421 = vld [vmem:[#allocation4 + $0x14] sm:$0xf]
        %v422 = vld [vmem:[#allocation4 + $0x18] sm:$0xf]
        %v423 = vld [vmem:[#allocation4 + $0x1c] sm:$0xf]
        %v424 = vpack.c.bf16 %v301, %v300
        %v427 = vunpack.c.l.b16 %v414
        %v428 = vunpack.c.l.b16 %v415
        %v429 = vpack.c.b16 %v428, %v427
        %vm430 = vcmask 80896
        %v432 = vsel %vm430, %v429, 0
        %vm434 = vcmask 1044480
        %v436 = vsel %vm434, %v424, 0
        %438 = vmatpush.bf16.msra.mxu0 0
        %439 = vmatpush.bf16.msra.mxu0 0
        %440 = vmatpush.bf16.msra.mxu0 0
        %441 = vmatpush.bf16.msra.mxu0 0
        %442 = vmatpush.bf16.msra.mxu0 0
        %443 = vmatpush.bf16.msra.mxu0 0
        %444 = vmatpush.bf16.msra.mxu0 0
        %445 = vmatpush.bf16.msra.mxu0 %v436
        %446 = vmatmul.bf16.gmra.mxu0 %v432
        %v447 = vpop.f32.mrf.mxu0
        %v448 = vadd.f32 0.0, %v447
        %v449 = vpop.f32.mrf.mxu0
        %v450 = vadd.f32 0.0, %v449
        %451 = vdwg.mxu0
        %v452 = vpack.c.bf16 %v450, %v448
        %v461 = vunpack.c.l.b16 %v416
        %v462 = vunpack.c.l.b16 %v417
        %v463 = vunpack.c.l.b16 %v418
        %v464 = vunpack.c.l.b16 %v419
        %v465 = vunpack.c.l.b16 %v420
        %v466 = vunpack.c.l.b16 %v421
        %v467 = vunpack.c.l.b16 %v422
        %v468 = vunpack.c.l.b16 %v423
        %v469 = vpack.c.b16 %v462, %v461
        %v470 = vpack.c.b16 %v464, %v463
        %v471 = vpack.c.b16 %v466, %v465
        %v472 = vpack.c.b16 %v468, %v467
        %vm477 = vcmask 523264
        %v479 = vsel %vm477, %v452, 0
        %481 = vmatpush.bf16.msra.mxu0 0
        %482 = vmatpush.bf16.msra.mxu0 0
        %483 = vmatpush.bf16.msra.mxu0 0
        %484 = vmatpush.bf16.msra.mxu0 0
        %485 = vmatpush.bf16.msra.mxu0 %v472
        %486 = vmatpush.bf16.msra.mxu0 %v471
        %487 = vmatpush.bf16.msra.mxu0 %v470
        %488 = vmatpush.bf16.msra.mxu0 %v469
        %489 = vmatmul.bf16.gmra.mxu0 %v479
        %v490 = vpop.f32.mrf.mxu0
        %v491 = vadd.f32 0.0, %v490
        %v492 = vpop.f32.mrf.mxu0
        %v493 = vadd.f32 0.0, %v492
        %494 = vdwg.mxu0
        %v495 = vpack.c.bf16 %v329, %v328
        %v497 = vsel %vm434, %v495, 0
        %499 = vmatpush.bf16.msra.mxu0 0
        %500 = vmatpush.bf16.msra.mxu0 0
        %501 = vmatpush.bf16.msra.mxu0 0
        %502 = vmatpush.bf16.msra.mxu0 0
        %503 = vmatpush.bf16.msra.mxu0 0
        %504 = vmatpush.bf16.msra.mxu0 0
        %505 = vmatpush.bf16.msra.mxu0 0
        %506 = vmatpush.bf16.msra.mxu0 %v497
        %507 = vmatmul.bf16.gmra.mxu0 %v432
        %v508 = vpop.f32.mrf.mxu0
        %v509 = vadd.f32 0.0, %v508
        %v510 = vpop.f32.mrf.mxu0
        %v511 = vadd.f32 0.0, %v510
        %512 = vdwg.mxu0
        %v513 = vpack.c.bf16 %v511, %v509
        %v515 = vsel %vm477, %v513, 0
        %517 = vmatpush.bf16.msra.mxu0 0
        %518 = vmatpush.bf16.msra.mxu0 0
        %519 = vmatpush.bf16.msra.mxu0 0
        %520 = vmatpush.bf16.msra.mxu0 0
        %521 = vmatpush.bf16.msra.mxu0 %v472
        %522 = vmatpush.bf16.msra.mxu0 %v471
        %523 = vmatpush.bf16.msra.mxu0 %v470
        %524 = vmatpush.bf16.msra.mxu0 %v469
        %525 = vmatmul.bf16.gmra.mxu0 %v515
        %v526 = vpop.f32.mrf.mxu0
        %v527 = vadd.f32 0.0, %v526
        %v528 = vpop.f32.mrf.mxu0
        %v529 = vadd.f32 0.0, %v528
        %530 = vdwg.mxu0
        %v531 = vpack.c.bf16 %v357, %v356
        %v533 = vsel %vm434, %v531, 0
        %535 = vmatpush.bf16.msra.mxu0 0
        %536 = vmatpush.bf16.msra.mxu0 0
        %537 = vmatpush.bf16.msra.mxu0 0
        %538 = vmatpush.bf16.msra.mxu0 0
        %539 = vmatpush.bf16.msra.mxu0 0
        %540 = vmatpush.bf16.msra.mxu0 0
        %541 = vmatpush.bf16.msra.mxu0 0
        %542 = vmatpush.bf16.msra.mxu0 %v533
        %543 = vmatmul.bf16.gmra.mxu0 %v432
        %v544 = vpop.f32.mrf.mxu0
        %v545 = vadd.f32 0.0, %v544
        %v546 = vpop.f32.mrf.mxu0
        %v547 = vadd.f32 0.0, %v546
        %548 = vdwg.mxu0
        %v549 = vpack.c.bf16 %v547, %v545
        %v551 = vsel %vm477, %v549, 0
        %553 = vmatpush.bf16.msra.mxu0 0
        %554 = vmatpush.bf16.msra.mxu0 0
        %555 = vmatpush.bf16.msra.mxu0 0
        %556 = vmatpush.bf16.msra.mxu0 0
        %557 = vmatpush.bf16.msra.mxu0 %v472
        %558 = vmatpush.bf16.msra.mxu0 %v471
        %559 = vmatpush.bf16.msra.mxu0 %v470
        %560 = vmatpush.bf16.msra.mxu0 %v469
        %561 = vmatmul.bf16.gmra.mxu0 %v551
        %v562 = vpop.f32.mrf.mxu0
        %v563 = vadd.f32 0.0, %v562
        %v564 = vpop.f32.mrf.mxu0
        %v565 = vadd.f32 0.0, %v564
        %566 = vdwg.mxu0
        %v567 = vpack.c.bf16 %v385, %v384
        %v569 = vsel %vm434, %v567, 0
        %571 = vmatpush.bf16.msra.mxu0 0
        %572 = vmatpush.bf16.msra.mxu0 0
        %573 = vmatpush.bf16.msra.mxu0 0
        %574 = vmatpush.bf16.msra.mxu0 0
        %575 = vmatpush.bf16.msra.mxu0 0
        %576 = vmatpush.bf16.msra.mxu0 0
        %577 = vmatpush.bf16.msra.mxu0 0
        %578 = vmatpush.bf16.msra.mxu0 %v569
        %579 = vmatmul.bf16.gmra.mxu0 %v432
        %v580 = vpop.f32.mrf.mxu0
        %v581 = vadd.f32 0.0, %v580
        %v582 = vpop.f32.mrf.mxu0
        %v583 = vadd.f32 0.0, %v582
        %584 = vdwg.mxu0
        %v585 = vpack.c.bf16 %v583, %v581
        %v587 = vsel %vm477, %v585, 0
        %589 = vmatpush.bf16.msra.mxu0 0
        %590 = vmatpush.bf16.msra.mxu0 0
        %591 = vmatpush.bf16.msra.mxu0 0
        %592 = vmatpush.bf16.msra.mxu0 0
        %593 = vmatpush.bf16.msra.mxu0 %v472
        %594 = vmatpush.bf16.msra.mxu0 %v471
        %595 = vmatpush.bf16.msra.mxu0 %v470
        %596 = vmatpush.bf16.msra.mxu0 %v469
        %597 = vmatmul.bf16.gmra.mxu0 %v587
        %v598 = vpop.f32.mrf.mxu0
        %v599 = vadd.f32 0.0, %v598
        %v600 = vpop.f32.mrf.mxu0
        %v601 = vadd.f32 0.0, %v600
        %602 = vdwg.mxu0
        %v603 = vpack.c.bf16 %v413, %v412
        %v605 = vsel %vm434, %v603, 0
        %607 = vmatpush.bf16.msra.mxu0 0
        %608 = vmatpush.bf16.msra.mxu0 0
        %609 = vmatpush.bf16.msra.mxu0 0
        %610 = vmatpush.bf16.msra.mxu0 0
        %611 = vmatpush.bf16.msra.mxu0 0
        %612 = vmatpush.bf16.msra.mxu0 0
        %613 = vmatpush.bf16.msra.mxu0 0
        %614 = vmatpush.bf16.msra.mxu0 %v605
        %615 = vmatmul.bf16.gmra.mxu0 %v432
        %v616 = vpop.f32.mrf.mxu0
        %v617 = vadd.f32 0.0, %v616
        %v618 = vpop.f32.mrf.mxu0
        %v619 = vadd.f32 0.0, %v618
        %620 = vdwg.mxu0
        %v621 = vpack.c.bf16 %v619, %v617
        %v623 = vsel %vm477, %v621, 0
        %625 = vmatpush.bf16.msra.mxu0 0
        %626 = vmatpush.bf16.msra.mxu0 0
        %627 = vmatpush.bf16.msra.mxu0 0
        %628 = vmatpush.bf16.msra.mxu0 0
        %629 = vmatpush.bf16.msra.mxu0 %v472
        %630 = vmatpush.bf16.msra.mxu0 %v471
        %631 = vmatpush.bf16.msra.mxu0 %v470
        %632 = vmatpush.bf16.msra.mxu0 %v469
        %633 = vmatmul.bf16.gmra.mxu0 %v623
        %v634 = vpop.f32.mrf.mxu0
        %v635 = vadd.f32 0.0, %v634
        %v636 = vpop.f32.mrf.mxu0
        %v637 = vadd.f32 0.0, %v636
        %638 = vdwg.mxu0
        %s639 = sld [smem:[#allocation3 + $0x5]]
        %v640 = vstv %s639
        %v641 = vmul.f32 %v491, %v640
        %v642 = vmul.f32 %v493, %v640
        %s643 = sld [smem:[#allocation3 + $0x6]]
        %v644 = vstv %s643
        %v645 = vmul.f32 %v527, %v644
        %v646 = vmul.f32 %v529, %v644
        %v647 = vadd.f32 %v641, %v645
        %v648 = vadd.f32 %v642, %v646
        %s649 = sld [smem:[#allocation3 + $0x7]]
        %v650 = vstv %s649
        %v651 = vmul.f32 %v563, %v650
        %v652 = vmul.f32 %v565, %v650
        %v653 = vadd.f32 %v647, %v651
        %v654 = vadd.f32 %v648, %v652
        %s655 = sld [smem:[#allocation3 + $0x8]]
        %v656 = vstv %s655
        %v657 = vmul.f32 %v599, %v656
        %v658 = vmul.f32 %v601, %v656
        %v659 = vadd.f32 %v653, %v657
        %v660 = vadd.f32 %v654, %v658
        %s661 = sld [smem:[#allocation3 + $0x9]]
        %v662 = vstv %s661
        %v663 = vmul.f32 %v635, %v662
        %v664 = vmul.f32 %v637, %v662
        %v665 = vadd.f32 %v659, %v663
        %v666 = vadd.f32 %v660, %v664
        %s667 = sld [smem:[#allocation3 + $0xa]]
        %v668 = vstv %s667
        %v669 = vadd.f32 %v665, %v668
        %v670 = vadd.f32 %v666, %v668
        %v671 = vmax.f32 %v669, 0.0
        %v672 = vmax.f32 %v670, 0.0
        %s673 = sld [smem:[#allocation3 + $0x85]]
        %v674 = vstv %s673
        %v675 = vmul.f32 %v491, %v674
        %v676 = vmul.f32 %v493, %v674
        %s677 = sld [smem:[#allocation3 + $0x86]]
        %v678 = vstv %s677
        %v679 = vmul.f32 %v527, %v678
        %v680 = vmul.f32 %v529, %v678
        %v681 = vadd.f32 %v675, %v679
        %v682 = vadd.f32 %v676, %v680
        %s683 = sld [smem:[#allocation3 + $0x87]]
        %v684 = vstv %s683
        %v685 = vmul.f32 %v563, %v684
        %v686 = vmul.f32 %v565, %v684
        %v687 = vadd.f32 %v681, %v685
        %v688 = vadd.f32 %v682, %v686
        %s689 = sld [smem:[#allocation3 + $0x88]]
        %v690 = vstv %s689
        %v691 = vmul.f32 %v599, %v690
        %v692 = vmul.f32 %v601, %v690
        %v693 = vadd.f32 %v687, %v691
        %v694 = vadd.f32 %v688, %v692
        %s695 = sld [smem:[#allocation3 + $0x89]]
        %v696 = vstv %s695
        %v697 = vmul.f32 %v635, %v696
        %v698 = vmul.f32 %v637, %v696
        %v699 = vadd.f32 %v693, %v697
        %v700 = vadd.f32 %v694, %v698
        %s701 = sld [smem:[#allocation3 + $0x8a]]
        %v702 = vstv %s701
        %v703 = vadd.f32 %v699, %v702
        %v704 = vadd.f32 %v700, %v702
        %v705 = vmax.f32 %v703, 0.0
        %v706 = vmax.f32 %v704, 0.0
        %s707 = sld [smem:[#allocation3 + $0x105]]
        %v708 = vstv %s707
        %v709 = vmul.f32 %v491, %v708
        %v710 = vmul.f32 %v493, %v708
        %s711 = sld [smem:[#allocation3 + $0x106]]
        %v712 = vstv %s711
        %v713 = vmul.f32 %v527, %v712
        %v714 = vmul.f32 %v529, %v712
        %v715 = vadd.f32 %v709, %v713
        %v716 = vadd.f32 %v710, %v714
        %s717 = sld [smem:[#allocation3 + $0x107]]
        %v718 = vstv %s717
        %v719 = vmul.f32 %v563, %v718
        %v720 = vmul.f32 %v565, %v718
        %v721 = vadd.f32 %v715, %v719
        %v722 = vadd.f32 %v716, %v720
        %s723 = sld [smem:[#allocation3 + $0x108]]
        %v724 = vstv %s723
        %v725 = vmul.f32 %v599, %v724
        %v726 = vmul.f32 %v601, %v724
        %v727 = vadd.f32 %v721, %v725
        %v728 = vadd.f32 %v722, %v726
        %s729 = sld [smem:[#allocation3 + $0x109]]
        %v730 = vstv %s729
        %v731 = vmul.f32 %v635, %v730
        %v732 = vmul.f32 %v637, %v730
        %v733 = vadd.f32 %v727, %v731
        %v734 = vadd.f32 %v728, %v732
        %s735 = sld [smem:[#allocation3 + $0x10a]]
        %v736 = vstv %s735
        %v737 = vadd.f32 %v733, %v736
        %v738 = vadd.f32 %v734, %v736
        %v739 = vmax.f32 %v737, 0.0
        %v740 = vmax.f32 %v738, 0.0
        %s741 = sld [smem:[#allocation3 + $0x185]]
        %v742 = vstv %s741
        %v743 = vmul.f32 %v491, %v742
        %v744 = vmul.f32 %v493, %v742
        %s745 = sld [smem:[#allocation3 + $0x186]]
        %v746 = vstv %s745
        %v747 = vmul.f32 %v527, %v746
        %v748 = vmul.f32 %v529, %v746
        %v749 = vadd.f32 %v743, %v747
        %v750 = vadd.f32 %v744, %v748
        %s751 = sld [smem:[#allocation3 + $0x187]]
        %v752 = vstv %s751
        %v753 = vmul.f32 %v563, %v752
        %v754 = vmul.f32 %v565, %v752
        %v755 = vadd.f32 %v749, %v753
        %v756 = vadd.f32 %v750, %v754
        %s757 = sld [smem:[#allocation3 + $0x188]]
        %v758 = vstv %s757
        %v759 = vmul.f32 %v599, %v758
        %v760 = vmul.f32 %v601, %v758
        %v761 = vadd.f32 %v755, %v759
        %v762 = vadd.f32 %v756, %v760
        %s763 = sld [smem:[#allocation3 + $0x189]]
        %v764 = vstv %s763
        %v765 = vmul.f32 %v635, %v764
        %v766 = vmul.f32 %v637, %v764
        %v767 = vadd.f32 %v761, %v765
        %v768 = vadd.f32 %v762, %v766
        %s769 = sld [smem:[#allocation3 + $0x18a]]
        %v770 = vstv %s769
        %v771 = vadd.f32 %v767, %v770
        %v772 = vadd.f32 %v768, %v770
        %v773 = vmax.f32 %v771, 0.0
        %v774 = vmax.f32 %v772, 0.0
        %s775 = sld [smem:[#allocation3 + $0x205]]
        %v776 = vstv %s775
        %v777 = vmul.f32 %v491, %v776
        %v778 = vmul.f32 %v493, %v776
        %s779 = sld [smem:[#allocation3 + $0x206]]
        %v780 = vstv %s779
        %v781 = vmul.f32 %v527, %v780
        %v782 = vmul.f32 %v529, %v780
        %v783 = vadd.f32 %v777, %v781
        %v784 = vadd.f32 %v778, %v782
        %s785 = sld [smem:[#allocation3 + $0x207]]
        %v786 = vstv %s785
        %v787 = vmul.f32 %v563, %v786
        %v788 = vmul.f32 %v565, %v786
        %v789 = vadd.f32 %v783, %v787
        %v790 = vadd.f32 %v784, %v788
        %s791 = sld [smem:[#allocation3 + $0x208]]
        %v792 = vstv %s791
        %v793 = vmul.f32 %v599, %v792
        %v794 = vmul.f32 %v601, %v792
        %v795 = vadd.f32 %v789, %v793
        %v796 = vadd.f32 %v790, %v794
        %s797 = sld [smem:[#allocation3 + $0x209]]
        %v798 = vstv %s797
        %v799 = vmul.f32 %v635, %v798
        %v800 = vmul.f32 %v637, %v798
        %v801 = vadd.f32 %v795, %v799
        %v802 = vadd.f32 %v796, %v800
        %s803 = sld [smem:[#allocation3 + $0x20a]]
        %v804 = vstv %s803
        %v805 = vadd.f32 %v801, %v804
        %v806 = vadd.f32 %v802, %v804
        %v807 = vmax.f32 %v805, 0.0
        %v808 = vmax.f32 %v806, 0.0
        %s809 = sld [smem:[#allocation3 + $0x285]]
        %v810 = vstv %s809
        %v811 = vmul.f32 %v491, %v810
        %v812 = vmul.f32 %v493, %v810
        %s813 = sld [smem:[#allocation3 + $0x286]]
        %v814 = vstv %s813
        %v815 = vmul.f32 %v527, %v814
        %v816 = vmul.f32 %v529, %v814
        %v817 = vadd.f32 %v811, %v815
        %v818 = vadd.f32 %v812, %v816
        %s819 = sld [smem:[#allocation3 + $0x287]]
        %v820 = vstv %s819
        %v821 = vmul.f32 %v563, %v820
        %v822 = vmul.f32 %v565, %v820
        %v823 = vadd.f32 %v817, %v821
        %v824 = vadd.f32 %v818, %v822
        %s825 = sld [smem:[#allocation3 + $0x288]]
        %v826 = vstv %s825
        %v827 = vmul.f32 %v599, %v826
        %v828 = vmul.f32 %v601, %v826
        %v829 = vadd.f32 %v823, %v827
        %v830 = vadd.f32 %v824, %v828
        %s831 = sld [smem:[#allocation3 + $0x289]]
        %v832 = vstv %s831
        %v833 = vmul.f32 %v635, %v832
        %v834 = vmul.f32 %v637, %v832
        %v835 = vadd.f32 %v829, %v833
        %v836 = vadd.f32 %v830, %v834
        %s837 = sld [smem:[#allocation3 + $0x28a]]
        %v838 = vstv %s837
        %v839 = vadd.f32 %v835, %v838
        %v840 = vadd.f32 %v836, %v838
        %v841 = vmax.f32 %v839, 0.0
        %v842 = vmax.f32 %v840, 0.0
        %s843 = sld [smem:[#allocation3 + $0xb]]
        %v844 = vstv %s843
        %v845 = vmul.f32 %v671, %v844
        %v846 = vmul.f32 %v672, %v844
        %s847 = sld [smem:[#allocation3 + $0xc]]
        %v848 = vstv %s847
        %v849 = vmul.f32 %v705, %v848
        %v850 = vmul.f32 %v706, %v848
        %v851 = vadd.f32 %v845, %v849
        %v852 = vadd.f32 %v846, %v850
        %s853 = sld [smem:[#allocation3 + $0xd]]
        %v854 = vstv %s853
        %v855 = vmul.f32 %v739, %v854
        %v856 = vmul.f32 %v740, %v854
        %v857 = vadd.f32 %v851, %v855
        %v858 = vadd.f32 %v852, %v856
        %s859 = sld [smem:[#allocation3 + $0xe]]
        %v860 = vstv %s859
        %v861 = vmul.f32 %v773, %v860
        %v862 = vmul.f32 %v774, %v860
        %v863 = vadd.f32 %v857, %v861
        %v864 = vadd.f32 %v858, %v862
        %s865 = sld [smem:[#allocation3 + $0xf]]
        %v866 = vstv %s865
        %v867 = vmul.f32 %v807, %v866
        %v868 = vmul.f32 %v808, %v866
        %v869 = vadd.f32 %v863, %v867
        %v870 = vadd.f32 %v864, %v868
        %s871 = sld [smem:[#allocation3 + $0x10]]
        %v872 = vstv %s871
        %v873 = vmul.f32 %v841, %v872
        %v874 = vmul.f32 %v842, %v872
        %v875 = vadd.f32 %v869, %v873
        %v876 = vadd.f32 %v870, %v874
        %s877 = sld [smem:[#allocation3 + $0x11]]
        %v878 = vstv %s877
        %v879 = vadd.f32 %v875, %v878
        %v880 = vadd.f32 %v876, %v878
        %v881 = vmax.f32 %v879, 0.0
        %v882 = vmax.f32 %v880, 0.0
        %s883 = sld [smem:[#allocation3 + $0x8b]]
        %v884 = vstv %s883
        %v885 = vmul.f32 %v671, %v884
        %v886 = vmul.f32 %v672, %v884
        %s887 = sld [smem:[#allocation3 + $0x8c]]
        %v888 = vstv %s887
        %v889 = vmul.f32 %v705, %v888
        %v890 = vmul.f32 %v706, %v888
        %v891 = vadd.f32 %v885, %v889
        %v892 = vadd.f32 %v886, %v890
        %s893 = sld [smem:[#allocation3 + $0x8d]]
        %v894 = vstv %s893
        %v895 = vmul.f32 %v739, %v894
        %v896 = vmul.f32 %v740, %v894
        %v897 = vadd.f32 %v891, %v895
        %v898 = vadd.f32 %v892, %v896
        %s899 = sld [smem:[#allocation3 + $0x8e]]
        %v900 = vstv %s899
        %v901 = vmul.f32 %v773, %v900
        %v902 = vmul.f32 %v774, %v900
        %v903 = vadd.f32 %v897, %v901
        %v904 = vadd.f32 %v898, %v902
        %s905 = sld [smem:[#allocation3 + $0x8f]]
        %v906 = vstv %s905
        %v907 = vmul.f32 %v807, %v906
        %v908 = vmul.f32 %v808, %v906
        %v909 = vadd.f32 %v903, %v907
        %v910 = vadd.f32 %v904, %v908
        %s911 = sld [smem:[#allocation3 + $0x90]]
        %v912 = vstv %s911
        %v913 = vmul.f32 %v841, %v912
        %v914 = vmul.f32 %v842, %v912
        %v915 = vadd.f32 %v909, %v913
        %v916 = vadd.f32 %v910, %v914
        %s917 = sld [smem:[#allocation3 + $0x91]]
        %v918 = vstv %s917
        %v919 = vadd.f32 %v915, %v918
        %v920 = vadd.f32 %v916, %v918
        %v921 = vmax.f32 %v919, 0.0
        %v922 = vmax.f32 %v920, 0.0
        %s923 = sld [smem:[#allocation3 + $0x10b]]
        %v924 = vstv %s923
        %v925 = vmul.f32 %v671, %v924
        %v926 = vmul.f32 %v672, %v924
        %s927 = sld [smem:[#allocation3 + $0x10c]]
        %v928 = vstv %s927
        %v929 = vmul.f32 %v705, %v928
        %v930 = vmul.f32 %v706, %v928
        %v931 = vadd.f32 %v925, %v929
        %v932 = vadd.f32 %v926, %v930
        %s933 = sld [smem:[#allocation3 + $0x10d]]
        %v934 = vstv %s933
        %v935 = vmul.f32 %v739, %v934
        %v936 = vmul.f32 %v740, %v934
        %v937 = vadd.f32 %v931, %v935
        %v938 = vadd.f32 %v932, %v936
        %s939 = sld [smem:[#allocation3 + $0x10e]]
        %v940 = vstv %s939
        %v941 = vmul.f32 %v773, %v940
        %v942 = vmul.f32 %v774, %v940
        %v943 = vadd.f32 %v937, %v941
        %v944 = vadd.f32 %v938, %v942
        %s945 = sld [smem:[#allocation3 + $0x10f]]
        %v946 = vstv %s945
        %v947 = vmul.f32 %v807, %v946
        %v948 = vmul.f32 %v808, %v946
        %v949 = vadd.f32 %v943, %v947
        %v950 = vadd.f32 %v944, %v948
        %s951 = sld [smem:[#allocation3 + $0x110]]
        %v952 = vstv %s951
        %v953 = vmul.f32 %v841, %v952
        %v954 = vmul.f32 %v842, %v952
        %v955 = vadd.f32 %v949, %v953
        %v956 = vadd.f32 %v950, %v954
        %s957 = sld [smem:[#allocation3 + $0x111]]
        %v958 = vstv %s957
        %v959 = vadd.f32 %v955, %v958
        %v960 = vadd.f32 %v956, %v958
        %v961 = vmax.f32 %v959, 0.0
        %v962 = vmax.f32 %v960, 0.0
        %s963 = sld [smem:[#allocation3 + $0x18b]]
        %v964 = vstv %s963
        %v965 = vmul.f32 %v671, %v964
        %v966 = vmul.f32 %v672, %v964
        %s967 = sld [smem:[#allocation3 + $0x18c]]
        %v968 = vstv %s967
        %v969 = vmul.f32 %v705, %v968
        %v970 = vmul.f32 %v706, %v968
        %v971 = vadd.f32 %v965, %v969
        %v972 = vadd.f32 %v966, %v970
        %s973 = sld [smem:[#allocation3 + $0x18d]]
        %v974 = vstv %s973
        %v975 = vmul.f32 %v739, %v974
        %v976 = vmul.f32 %v740, %v974
        %v977 = vadd.f32 %v971, %v975
        %v978 = vadd.f32 %v972, %v976
        %s979 = sld [smem:[#allocation3 + $0x18e]]
        %v980 = vstv %s979
        %v981 = vmul.f32 %v773, %v980
        %v982 = vmul.f32 %v774, %v980
        %v983 = vadd.f32 %v977, %v981
        %v984 = vadd.f32 %v978, %v982
        %s985 = sld [smem:[#allocation3 + $0x18f]]
        %v986 = vstv %s985
        %v987 = vmul.f32 %v807, %v986
        %v988 = vmul.f32 %v808, %v986
        %v989 = vadd.f32 %v983, %v987
        %v990 = vadd.f32 %v984, %v988
        %s991 = sld [smem:[#allocation3 + $0x190]]
        %v992 = vstv %s991
        %v993 = vmul.f32 %v841, %v992
        %v994 = vmul.f32 %v842, %v992
        %v995 = vadd.f32 %v989, %v993
        %v996 = vadd.f32 %v990, %v994
        %s997 = sld [smem:[#allocation3 + $0x191]]
        %v998 = vstv %s997
        %v999 = vadd.f32 %v995, %v998
        %v1000 = vadd.f32 %v996, %v998
        %v1001 = vmax.f32 %v999, 0.0
        %v1002 = vmax.f32 %v1000, 0.0
        %s1003 = sld [smem:[#allocation3 + $0x20b]]
        %v1004 = vstv %s1003
        %v1005 = vmul.f32 %v671, %v1004
        %v1006 = vmul.f32 %v672, %v1004
        %s1007 = sld [smem:[#allocation3 + $0x20c]]
        %v1008 = vstv %s1007
        %v1009 = vmul.f32 %v705, %v1008
        %v1010 = vmul.f32 %v706, %v1008
        %v1011 = vadd.f32 %v1005, %v1009
        %v1012 = vadd.f32 %v1006, %v1010
        %s1013 = sld [smem:[#allocation3 + $0x20d]]
        %v1014 = vstv %s1013
        %v1015 = vmul.f32 %v739, %v1014
        %v1016 = vmul.f32 %v740, %v1014
        %v1017 = vadd.f32 %v1011, %v1015
        %v1018 = vadd.f32 %v1012, %v1016
        %s1019 = sld [smem:[#allocation3 + $0x20e]]
        %v1020 = vstv %s1019
        %v1021 = vmul.f32 %v773, %v1020
        %v1022 = vmul.f32 %v774, %v1020
        %v1023 = vadd.f32 %v1017, %v1021
        %v1024 = vadd.f32 %v1018, %v1022
        %s1025 = sld [smem:[#allocation3 + $0x20f]]
        %v1026 = vstv %s1025
        %v1027 = vmul.f32 %v807, %v1026
        %v1028 = vmul.f32 %v808, %v1026
        %v1029 = vadd.f32 %v1023, %v1027
        %v1030 = vadd.f32 %v1024, %v1028
        %s1031 = sld [smem:[#allocation3 + $0x210]]
        %v1032 = vstv %s1031
        %v1033 = vmul.f32 %v841, %v1032
        %v1034 = vmul.f32 %v842, %v1032
        %v1035 = vadd.f32 %v1029, %v1033
        %v1036 = vadd.f32 %v1030, %v1034
        %s1037 = sld [smem:[#allocation3 + $0x211]]
        %v1038 = vstv %s1037
        %v1039 = vadd.f32 %v1035, %v1038
        %v1040 = vadd.f32 %v1036, %v1038
        %v1041 = vmax.f32 %v1039, 0.0
        %v1042 = vmax.f32 %v1040, 0.0
        %s1043 = sld [smem:[#allocation3 + $0x28b]]
        %v1044 = vstv %s1043
        %v1045 = vmul.f32 %v671, %v1044
        %v1046 = vmul.f32 %v672, %v1044
        %s1047 = sld [smem:[#allocation3 + $0x28c]]
        %v1048 = vstv %s1047
        %v1049 = vmul.f32 %v705, %v1048
        %v1050 = vmul.f32 %v706, %v1048
        %v1051 = vadd.f32 %v1045, %v1049
        %v1052 = vadd.f32 %v1046, %v1050
        %s1053 = sld [smem:[#allocation3 + $0x28d]]
        %v1054 = vstv %s1053
        %v1055 = vmul.f32 %v739, %v1054
        %v1056 = vmul.f32 %v740, %v1054
        %v1057 = vadd.f32 %v1051, %v1055
        %v1058 = vadd.f32 %v1052, %v1056
        %s1059 = sld [smem:[#allocation3 + $0x28e]]
        %v1060 = vstv %s1059
        %v1061 = vmul.f32 %v773, %v1060
        %v1062 = vmul.f32 %v774, %v1060
        %v1063 = vadd.f32 %v1057, %v1061
        %v1064 = vadd.f32 %v1058, %v1062
        %s1065 = sld [smem:[#allocation3 + $0x28f]]
        %v1066 = vstv %s1065
        %v1067 = vmul.f32 %v807, %v1066
        %v1068 = vmul.f32 %v808, %v1066
        %v1069 = vadd.f32 %v1063, %v1067
        %v1070 = vadd.f32 %v1064, %v1068
        %s1071 = sld [smem:[#allocation3 + $0x290]]
        %v1072 = vstv %s1071
        %v1073 = vmul.f32 %v841, %v1072
        %v1074 = vmul.f32 %v842, %v1072
        %v1075 = vadd.f32 %v1069, %v1073
        %v1076 = vadd.f32 %v1070, %v1074
        %s1077 = sld [smem:[#allocation3 + $0x291]]
        %v1078 = vstv %s1077
        %v1079 = vadd.f32 %v1075, %v1078
        %v1080 = vadd.f32 %v1076, %v1078
        %v1081 = vmax.f32 %v1079, 0.0
        %v1082 = vmax.f32 %v1080, 0.0
        %s1083 = sld [smem:[#allocation3 + $0x30b]]
        %v1084 = vstv %s1083
        %v1085 = vmul.f32 %v671, %v1084
        %v1086 = vmul.f32 %v672, %v1084
        %s1087 = sld [smem:[#allocation3 + $0x30c]]
        %v1088 = vstv %s1087
        %v1089 = vmul.f32 %v705, %v1088
        %v1090 = vmul.f32 %v706, %v1088
        %v1091 = vadd.f32 %v1085, %v1089
        %v1092 = vadd.f32 %v1086, %v1090
        %s1093 = sld [smem:[#allocation3 + $0x30d]]
        %v1094 = vstv %s1093
        %v1095 = vmul.f32 %v739, %v1094
        %v1096 = vmul.f32 %v740, %v1094
        %v1097 = vadd.f32 %v1091, %v1095
        %v1098 = vadd.f32 %v1092, %v1096
        %s1099 = sld [smem:[#allocation3 + $0x30e]]
        %v1100 = vstv %s1099
        %v1101 = vmul.f32 %v773, %v1100
        %v1102 = vmul.f32 %v774, %v1100
        %v1103 = vadd.f32 %v1097, %v1101
        %v1104 = vadd.f32 %v1098, %v1102
        %s1105 = sld [smem:[#allocation3 + $0x30f]]
        %v1106 = vstv %s1105
        %v1107 = vmul.f32 %v807, %v1106
        %v1108 = vmul.f32 %v808, %v1106
        %v1109 = vadd.f32 %v1103, %v1107
        %v1110 = vadd.f32 %v1104, %v1108
        %s1111 = sld [smem:[#allocation3 + $0x310]]
        %v1112 = vstv %s1111
        %v1113 = vmul.f32 %v841, %v1112
        %v1114 = vmul.f32 %v842, %v1112
        %v1115 = vadd.f32 %v1109, %v1113
        %v1116 = vadd.f32 %v1110, %v1114
        %s1117 = sld [smem:[#allocation3 + $0x311]]
        %v1118 = vstv %s1117
        %v1119 = vadd.f32 %v1115, %v1118
        %v1120 = vadd.f32 %v1116, %v1118
        %v1121 = vmax.f32 %v1119, 0.0
        %v1122 = vmax.f32 %v1120, 0.0
        %s1123 = sld [smem:[#allocation3 + $0x38b]]
        %v1124 = vstv %s1123
        %v1125 = vmul.f32 %v671, %v1124
        %v1126 = vmul.f32 %v672, %v1124
        %s1127 = sld [smem:[#allocation3 + $0x38c]]
        %v1128 = vstv %s1127
        %v1129 = vmul.f32 %v705, %v1128
        %v1130 = vmul.f32 %v706, %v1128
        %v1131 = vadd.f32 %v1125, %v1129
        %v1132 = vadd.f32 %v1126, %v1130
        %s1133 = sld [smem:[#allocation3 + $0x38d]]
        %v1134 = vstv %s1133
        %v1135 = vmul.f32 %v739, %v1134
        %v1136 = vmul.f32 %v740, %v1134
        %v1137 = vadd.f32 %v1131, %v1135
        %v1138 = vadd.f32 %v1132, %v1136
        %s1139 = sld [smem:[#allocation3 + $0x38e]]
        %v1140 = vstv %s1139
        %v1141 = vmul.f32 %v773, %v1140
        %v1142 = vmul.f32 %v774, %v1140
        %v1143 = vadd.f32 %v1137, %v1141
        %v1144 = vadd.f32 %v1138, %v1142
        %s1145 = sld [smem:[#allocation3 + $0x38f]]
        %v1146 = vstv %s1145
        %v1147 = vmul.f32 %v807, %v1146
        %v1148 = vmul.f32 %v808, %v1146
        %v1149 = vadd.f32 %v1143, %v1147
        %v1150 = vadd.f32 %v1144, %v1148
        %s1151 = sld [smem:[#allocation3 + $0x390]]
        %v1152 = vstv %s1151
        %v1153 = vmul.f32 %v841, %v1152
        %v1154 = vmul.f32 %v842, %v1152
        %v1155 = vadd.f32 %v1149, %v1153
        %v1156 = vadd.f32 %v1150, %v1154
        %s1157 = sld [smem:[#allocation3 + $0x391]]
        %v1158 = vstv %s1157
        %v1159 = vadd.f32 %v1155, %v1158
        %v1160 = vadd.f32 %v1156, %v1158
        %v1161 = vmax.f32 %v1159, 0.0
        %v1162 = vmax.f32 %v1160, 0.0
        %s1163 = sld [smem:[#allocation3 + $0x12]]
        %v1164 = vstv %s1163
        %v1165 = vmul.f32 %v881, %v1164
        %v1166 = vmul.f32 %v882, %v1164
        %s1167 = sld [smem:[#allocation3 + $0x13]]
        %v1168 = vstv %s1167
        %v1169 = vmul.f32 %v921, %v1168
        %v1170 = vmul.f32 %v922, %v1168
        %v1171 = vadd.f32 %v1165, %v1169
        %v1172 = vadd.f32 %v1166, %v1170
        %s1173 = sld [smem:[#allocation3 + $0x14]]
        %v1174 = vstv %s1173
        %v1175 = vmul.f32 %v961, %v1174
        %v1176 = vmul.f32 %v962, %v1174
        %v1177 = vadd.f32 %v1171, %v1175
        %v1178 = vadd.f32 %v1172, %v1176
        %s1179 = sld [smem:[#allocation3 + $0x15]]
        %v1180 = vstv %s1179
        %v1181 = vmul.f32 %v1001, %v1180
        %v1182 = vmul.f32 %v1002, %v1180
        %v1183 = vadd.f32 %v1177, %v1181
        %v1184 = vadd.f32 %v1178, %v1182
        %s1185 = sld [smem:[#allocation3 + $0x16]]
        %v1186 = vstv %s1185
        %v1187 = vmul.f32 %v1041, %v1186
        %v1188 = vmul.f32 %v1042, %v1186
        %v1189 = vadd.f32 %v1183, %v1187
        %v1190 = vadd.f32 %v1184, %v1188
        %s1191 = sld [smem:[#allocation3 + $0x17]]
        %v1192 = vstv %s1191
        %v1193 = vmul.f32 %v1081, %v1192
        %v1194 = vmul.f32 %v1082, %v1192
        %v1195 = vadd.f32 %v1189, %v1193
        %v1196 = vadd.f32 %v1190, %v1194
        %s1197 = sld [smem:[#allocation3 + $0x18]]
        %v1198 = vstv %s1197
        %v1199 = vmul.f32 %v1121, %v1198
        %v1200 = vmul.f32 %v1122, %v1198
        %v1201 = vadd.f32 %v1195, %v1199
        %v1202 = vadd.f32 %v1196, %v1200
        %s1203 = sld [smem:[#allocation3 + $0x19]]
        %v1204 = vstv %s1203
        %v1205 = vmul.f32 %v1161, %v1204
        %v1206 = vmul.f32 %v1162, %v1204
        %v1207 = vadd.f32 %v1201, %v1205
        %v1208 = vadd.f32 %v1202, %v1206
        %s1209 = sld [smem:[#allocation3 + $0x1a]]
        %v1210 = vstv %s1209
        %v1211 = vadd.f32 %v1207, %v1210
        %v1212 = vadd.f32 %v1208, %v1210
        %v1213 = vmax.f32 %v1211, 0.0
        %v1214 = vmax.f32 %v1212, 0.0
        %v1215 = vpack.c.bf16 %v1213, %v1213
        %v1216 = vpack.c.bf16 %v1214, %v1214
        %1217 = vst [vmem:[%s245] sm:$0xf] %v1215
        %1218 = vst [vmem:[%s245 + $0x4] sm:$0xf] %v1216
        %s1219 = sld [smem:[#allocation3 + $0x92]]
        %v1220 = vstv %s1219
        %v1221 = vmul.f32 %v881, %v1220
        %v1222 = vmul.f32 %v882, %v1220
        %s1223 = sld [smem:[#allocation3 + $0x93]]
        %v1224 = vstv %s1223
        %v1225 = vmul.f32 %v921, %v1224
        %v1226 = vmul.f32 %v922, %v1224
        %v1227 = vadd.f32 %v1221, %v1225
        %v1228 = vadd.f32 %v1222, %v1226
        %s1229 = sld [smem:[#allocation3 + $0x94]]
        %v1230 = vstv %s1229
        %v1231 = vmul.f32 %v961, %v1230
        %v1232 = vmul.f32 %v962, %v1230
        %v1233 = vadd.f32 %v1227, %v1231
        %v1234 = vadd.f32 %v1228, %v1232
        %s1235 = sld [smem:[#allocation3 + $0x95]]
        %v1236 = vstv %s1235
        %v1237 = vmul.f32 %v1001, %v1236
        %v1238 = vmul.f32 %v1002, %v1236
        %v1239 = vadd.f32 %v1233, %v1237
        %v1240 = vadd.f32 %v1234, %v1238
        %s1241 = sld [smem:[#allocation3 + $0x96]]
        %v1242 = vstv %s1241
        %v1243 = vmul.f32 %v1041, %v1242
        %v1244 = vmul.f32 %v1042, %v1242
        %v1245 = vadd.f32 %v1239, %v1243
        %v1246 = vadd.f32 %v1240, %v1244
        %s1247 = sld [smem:[#allocation3 + $0x97]]
        %v1248 = vstv %s1247
        %v1249 = vmul.f32 %v1081, %v1248
        %v1250 = vmul.f32 %v1082, %v1248
        %v1251 = vadd.f32 %v1245, %v1249
        %v1252 = vadd.f32 %v1246, %v1250
        %s1253 = sld [smem:[#allocation3 + $0x98]]
        %v1254 = vstv %s1253
        %v1255 = vmul.f32 %v1121, %v1254
        %v1256 = vmul.f32 %v1122, %v1254
        %v1257 = vadd.f32 %v1251, %v1255
        %v1258 = vadd.f32 %v1252, %v1256
        %s1259 = sld [smem:[#allocation3 + $0x99]]
        %v1260 = vstv %s1259
        %v1261 = vmul.f32 %v1161, %v1260
        %v1262 = vmul.f32 %v1162, %v1260
        %v1263 = vadd.f32 %v1257, %v1261
        %v1264 = vadd.f32 %v1258, %v1262
        %s1265 = sld [smem:[#allocation3 + $0x9a]]
        %v1266 = vstv %s1265
        %v1267 = vadd.f32 %v1263, %v1266
        %v1268 = vadd.f32 %v1264, %v1266
        %v1269 = vmax.f32 %v1267, 0.0
        %v1270 = vmax.f32 %v1268, 0.0
        %v1271 = vpack.c.bf16 %v1269, %v1269
        %v1272 = vpack.c.bf16 %v1270, %v1270
        %s1273 = scalar_lea.vmem %s245, 8 [#allocation9]
        %1274 = vst [vmem:[%s1273] sm:$0xf] %v1271
        %1275 = vst [vmem:[%s1273 + $0x4] sm:$0xf] %v1272
        %s1276 = sld [smem:[#allocation3 + $0x112]]
        %v1277 = vstv %s1276
        %v1278 = vmul.f32 %v881, %v1277
        %v1279 = vmul.f32 %v882, %v1277
        %s1280 = sld [smem:[#allocation3 + $0x113]]
        %v1281 = vstv %s1280
        %v1282 = vmul.f32 %v921, %v1281
        %v1283 = vmul.f32 %v922, %v1281
        %v1284 = vadd.f32 %v1278, %v1282
        %v1285 = vadd.f32 %v1279, %v1283
        %s1286 = sld [smem:[#allocation3 + $0x114]]
        %v1287 = vstv %s1286
        %v1288 = vmul.f32 %v961, %v1287
        %v1289 = vmul.f32 %v962, %v1287
        %v1290 = vadd.f32 %v1284, %v1288
        %v1291 = vadd.f32 %v1285, %v1289
        %s1292 = sld [smem:[#allocation3 + $0x115]]
        %v1293 = vstv %s1292
        %v1294 = vmul.f32 %v1001, %v1293
        %v1295 = vmul.f32 %v1002, %v1293
        %v1296 = vadd.f32 %v1290, %v1294
        %v1297 = vadd.f32 %v1291, %v1295
        %s1298 = sld [smem:[#allocation3 + $0x116]]
        %v1299 = vstv %s1298
        %v1300 = vmul.f32 %v1041, %v1299
        %v1301 = vmul.f32 %v1042, %v1299
        %v1302 = vadd.f32 %v1296, %v1300
        %v1303 = vadd.f32 %v1297, %v1301
        %s1304 = sld [smem:[#allocation3 + $0x117]]
        %v1305 = vstv %s1304
        %v1306 = vmul.f32 %v1081, %v1305
        %v1307 = vmul.f32 %v1082, %v1305
        %v1308 = vadd.f32 %v1302, %v1306
        %v1309 = vadd.f32 %v1303, %v1307
        %s1310 = sld [smem:[#allocation3 + $0x118]]
        %v1311 = vstv %s1310
        %v1312 = vmul.f32 %v1121, %v1311
        %v1313 = vmul.f32 %v1122, %v1311
        %v1314 = vadd.f32 %v1308, %v1312
        %v1315 = vadd.f32 %v1309, %v1313
        %s1316 = sld [smem:[#allocation3 + $0x119]]
        %v1317 = vstv %s1316
        %v1318 = vmul.f32 %v1161, %v1317
        %v1319 = vmul.f32 %v1162, %v1317
        %v1320 = vadd.f32 %v1314, %v1318
        %v1321 = vadd.f32 %v1315, %v1319
        %s1322 = sld [smem:[#allocation3 + $0x11a]]
        %v1323 = vstv %s1322
        %v1324 = vadd.f32 %v1320, %v1323
        %v1325 = vadd.f32 %v1321, %v1323
        %v1326 = vmax.f32 %v1324, 0.0
        %v1327 = vmax.f32 %v1325, 0.0
        %v1328 = vpack.c.bf16 %v1326, %v1326
        %v1329 = vpack.c.bf16 %v1327, %v1327
        %s1330 = scalar_lea.vmem %s245, 16 [#allocation9]
        %1331 = vst [vmem:[%s1330] sm:$0xf] %v1328
        %1332 = vst [vmem:[%s1330 + $0x4] sm:$0xf] %v1329
        %s1333 = sld [smem:[#allocation3 + $0x192]]
        %v1334 = vstv %s1333
        %v1335 = vmul.f32 %v881, %v1334
        %v1336 = vmul.f32 %v882, %v1334
        %s1337 = sld [smem:[#allocation3 + $0x193]]
        %v1338 = vstv %s1337
        %v1339 = vmul.f32 %v921, %v1338
        %v1340 = vmul.f32 %v922, %v1338
        %v1341 = vadd.f32 %v1335, %v1339
        %v1342 = vadd.f32 %v1336, %v1340
        %s1343 = sld [smem:[#allocation3 + $0x194]]
        %v1344 = vstv %s1343
        %v1345 = vmul.f32 %v961, %v1344
        %v1346 = vmul.f32 %v962, %v1344
        %v1347 = vadd.f32 %v1341, %v1345
        %v1348 = vadd.f32 %v1342, %v1346
        %s1349 = sld [smem:[#allocation3 + $0x195]]
        %v1350 = vstv %s1349
        %v1351 = vmul.f32 %v1001, %v1350
        %v1352 = vmul.f32 %v1002, %v1350
        %v1353 = vadd.f32 %v1347, %v1351
        %v1354 = vadd.f32 %v1348, %v1352
        %s1355 = sld [smem:[#allocation3 + $0x196]]
        %v1356 = vstv %s1355
        %v1357 = vmul.f32 %v1041, %v1356
        %v1358 = vmul.f32 %v1042, %v1356
        %v1359 = vadd.f32 %v1353, %v1357
        %v1360 = vadd.f32 %v1354, %v1358
        %s1361 = sld [smem:[#allocation3 + $0x197]]
        %v1362 = vstv %s1361
        %v1363 = vmul.f32 %v1081, %v1362
        %v1364 = vmul.f32 %v1082, %v1362
        %v1365 = vadd.f32 %v1359, %v1363
        %v1366 = vadd.f32 %v1360, %v1364
        %s1367 = sld [smem:[#allocation3 + $0x198]]
        %v1368 = vstv %s1367
        %v1369 = vmul.f32 %v1121, %v1368
        %v1370 = vmul.f32 %v1122, %v1368
        %v1371 = vadd.f32 %v1365, %v1369
        %v1372 = vadd.f32 %v1366, %v1370
        %s1373 = sld [smem:[#allocation3 + $0x199]]
        %v1374 = vstv %s1373
        %v1375 = vmul.f32 %v1161, %v1374
        %v1376 = vmul.f32 %v1162, %v1374
        %v1377 = vadd.f32 %v1371, %v1375
        %v1378 = vadd.f32 %v1372, %v1376
        %s1379 = sld [smem:[#allocation3 + $0x19a]]
        %v1380 = vstv %s1379
        %v1381 = vadd.f32 %v1377, %v1380
        %v1382 = vadd.f32 %v1378, %v1380
        %v1383 = vmax.f32 %v1381, 0.0
        %v1384 = vmax.f32 %v1382, 0.0
        %v1385 = vpack.c.bf16 %v1383, %v1383
        %v1386 = vpack.c.bf16 %v1384, %v1384
        %s1387 = scalar_lea.vmem %s245, 24 [#allocation9]
        %1388 = vst [vmem:[%s1387] sm:$0xf] %v1385
        %1389 = vst [vmem:[%s1387 + $0x4] sm:$0xf] %v1386
        %s1390 = sld [smem:[#allocation3 + $0x212]]
        %v1391 = vstv %s1390
        %v1392 = vmul.f32 %v881, %v1391
        %v1393 = vmul.f32 %v882, %v1391
        %s1394 = sld [smem:[#allocation3 + $0x213]]
        %v1395 = vstv %s1394
        %v1396 = vmul.f32 %v921, %v1395
        %v1397 = vmul.f32 %v922, %v1395
        %v1398 = vadd.f32 %v1392, %v1396
        %v1399 = vadd.f32 %v1393, %v1397
        %s1400 = sld [smem:[#allocation3 + $0x214]]
        %v1401 = vstv %s1400
        %v1402 = vmul.f32 %v961, %v1401
        %v1403 = vmul.f32 %v962, %v1401
        %v1404 = vadd.f32 %v1398, %v1402
        %v1405 = vadd.f32 %v1399, %v1403
        %s1406 = sld [smem:[#allocation3 + $0x215]]
        %v1407 = vstv %s1406
        %v1408 = vmul.f32 %v1001, %v1407
        %v1409 = vmul.f32 %v1002, %v1407
        %v1410 = vadd.f32 %v1404, %v1408
        %v1411 = vadd.f32 %v1405, %v1409
        %s1412 = sld [smem:[#allocation3 + $0x216]]
        %v1413 = vstv %s1412
        %v1414 = vmul.f32 %v1041, %v1413
        %v1415 = vmul.f32 %v1042, %v1413
        %v1416 = vadd.f32 %v1410, %v1414
        %v1417 = vadd.f32 %v1411, %v1415
        %s1418 = sld [smem:[#allocation3 + $0x217]]
        %v1419 = vstv %s1418
        %v1420 = vmul.f32 %v1081, %v1419
        %v1421 = vmul.f32 %v1082, %v1419
        %v1422 = vadd.f32 %v1416, %v1420
        %v1423 = vadd.f32 %v1417, %v1421
        %s1424 = sld [smem:[#allocation3 + $0x218]]
        %v1425 = vstv %s1424
        %v1426 = vmul.f32 %v1121, %v1425
        %v1427 = vmul.f32 %v1122, %v1425
        %v1428 = vadd.f32 %v1422, %v1426
        %v1429 = vadd.f32 %v1423, %v1427
        %s1430 = sld [smem:[#allocation3 + $0x219]]
        %v1431 = vstv %s1430
        %v1432 = vmul.f32 %v1161, %v1431
        %v1433 = vmul.f32 %v1162, %v1431
        %v1434 = vadd.f32 %v1428, %v1432
        %v1435 = vadd.f32 %v1429, %v1433
        %s1436 = sld [smem:[#allocation3 + $0x21a]]
        %v1437 = vstv %s1436
        %v1438 = vadd.f32 %v1434, %v1437
        %v1439 = vadd.f32 %v1435, %v1437
        %v1440 = vmax.f32 %v1438, 0.0
        %v1441 = vmax.f32 %v1439, 0.0
        %v1442 = vpack.c.bf16 %v1440, %v1440
        %v1443 = vpack.c.bf16 %v1441, %v1441
        %s1444 = scalar_lea.vmem %s245, 32 [#allocation9]
        %1445 = vst [vmem:[%s1444] sm:$0xf] %v1442
        %1446 = vst [vmem:[%s1444 + $0x4] sm:$0xf] %v1443
        %s1447 = sld [smem:[#allocation3 + $0x292]]
        %v1448 = vstv %s1447
        %v1449 = vmul.f32 %v881, %v1448
        %v1450 = vmul.f32 %v882, %v1448
        %s1451 = sld [smem:[#allocation3 + $0x293]]
        %v1452 = vstv %s1451
        %v1453 = vmul.f32 %v921, %v1452
        %v1454 = vmul.f32 %v922, %v1452
        %v1455 = vadd.f32 %v1449, %v1453
        %v1456 = vadd.f32 %v1450, %v1454
        %s1457 = sld [smem:[#allocation3 + $0x294]]
        %v1458 = vstv %s1457
        %v1459 = vmul.f32 %v961, %v1458
        %v1460 = vmul.f32 %v962, %v1458
        %v1461 = vadd.f32 %v1455, %v1459
        %v1462 = vadd.f32 %v1456, %v1460
        %s1463 = sld [smem:[#allocation3 + $0x295]]
        %v1464 = vstv %s1463
        %v1465 = vmul.f32 %v1001, %v1464
        %v1466 = vmul.f32 %v1002, %v1464
        %v1467 = vadd.f32 %v1461, %v1465
        %v1468 = vadd.f32 %v1462, %v1466
        %s1469 = sld [smem:[#allocation3 + $0x296]]
        %v1470 = vstv %s1469
        %v1471 = vmul.f32 %v1041, %v1470
        %v1472 = vmul.f32 %v1042, %v1470
        %v1473 = vadd.f32 %v1467, %v1471
        %v1474 = vadd.f32 %v1468, %v1472
        %s1475 = sld [smem:[#allocation3 + $0x297]]
        %v1476 = vstv %s1475
        %v1477 = vmul.f32 %v1081, %v1476
        %v1478 = vmul.f32 %v1082, %v1476
        %v1479 = vadd.f32 %v1473, %v1477
        %v1480 = vadd.f32 %v1474, %v1478
        %s1481 = sld [smem:[#allocation3 + $0x298]]
        %v1482 = vstv %s1481
        %v1483 = vmul.f32 %v1121, %v1482
        %v1484 = vmul.f32 %v1122, %v1482
        %v1485 = vadd.f32 %v1479, %v1483
        %v1486 = vadd.f32 %v1480, %v1484
        %s1487 = sld [smem:[#allocation3 + $0x299]]
        %v1488 = vstv %s1487
        %v1489 = vmul.f32 %v1161, %v1488
        %v1490 = vmul.f32 %v1162, %v1488
        %v1491 = vadd.f32 %v1485, %v1489
        %v1492 = vadd.f32 %v1486, %v1490
        %s1493 = sld [smem:[#allocation3 + $0x29a]]
        %v1494 = vstv %s1493
        %v1495 = vadd.f32 %v1491, %v1494
        %v1496 = vadd.f32 %v1492, %v1494
        %v1497 = vmax.f32 %v1495, 0.0
        %v1498 = vmax.f32 %v1496, 0.0
        %v1499 = vpack.c.bf16 %v1497, %v1497
        %v1500 = vpack.c.bf16 %v1498, %v1498
        %s1501 = scalar_lea.vmem %s245, 40 [#allocation9]
        %1502 = vst [vmem:[%s1501] sm:$0xf] %v1499
        %1503 = vst [vmem:[%s1501 + $0x4] sm:$0xf] %v1500
        %s1504 = sld [smem:[#allocation3 + $0x312]]
        %v1505 = vstv %s1504
        %v1506 = vmul.f32 %v881, %v1505
        %v1507 = vmul.f32 %v882, %v1505
        %s1508 = sld [smem:[#allocation3 + $0x313]]
        %v1509 = vstv %s1508
        %v1510 = vmul.f32 %v921, %v1509
        %v1511 = vmul.f32 %v922, %v1509
        %v1512 = vadd.f32 %v1506, %v1510
        %v1513 = vadd.f32 %v1507, %v1511
        %s1514 = sld [smem:[#allocation3 + $0x314]]
        %v1515 = vstv %s1514
        %v1516 = vmul.f32 %v961, %v1515
        %v1517 = vmul.f32 %v962, %v1515
        %v1518 = vadd.f32 %v1512, %v1516
        %v1519 = vadd.f32 %v1513, %v1517
        %s1520 = sld [smem:[#allocation3 + $0x315]]
        %v1521 = vstv %s1520
        %v1522 = vmul.f32 %v1001, %v1521
        %v1523 = vmul.f32 %v1002, %v1521
        %v1524 = vadd.f32 %v1518, %v1522
        %v1525 = vadd.f32 %v1519, %v1523
        %s1526 = sld [smem:[#allocation3 + $0x316]]
        %v1527 = vstv %s1526
        %v1528 = vmul.f32 %v1041, %v1527
        %v1529 = vmul.f32 %v1042, %v1527
        %v1530 = vadd.f32 %v1524, %v1528
        %v1531 = vadd.f32 %v1525, %v1529
        %s1532 = sld [smem:[#allocation3 + $0x317]]
        %v1533 = vstv %s1532
        %v1534 = vmul.f32 %v1081, %v1533
        %v1535 = vmul.f32 %v1082, %v1533
        %v1536 = vadd.f32 %v1530, %v1534
        %v1537 = vadd.f32 %v1531, %v1535
        %s1538 = sld [smem:[#allocation3 + $0x318]]
        %v1539 = vstv %s1538
        %v1540 = vmul.f32 %v1121, %v1539
        %v1541 = vmul.f32 %v1122, %v1539
        %v1542 = vadd.f32 %v1536, %v1540
        %v1543 = vadd.f32 %v1537, %v1541
        %s1544 = sld [smem:[#allocation3 + $0x319]]
        %v1545 = vstv %s1544
        %v1546 = vmul.f32 %v1161, %v1545
        %v1547 = vmul.f32 %v1162, %v1545
        %v1548 = vadd.f32 %v1542, %v1546
        %v1549 = vadd.f32 %v1543, %v1547
        %s1550 = sld [smem:[#allocation3 + $0x31a]]
        %v1551 = vstv %s1550
        %v1552 = vadd.f32 %v1548, %v1551
        %v1553 = vadd.f32 %v1549, %v1551
        %v1554 = vmax.f32 %v1552, 0.0
        %v1555 = vmax.f32 %v1553, 0.0
        %v1556 = vpack.c.bf16 %v1554, %v1554
        %v1557 = vpack.c.bf16 %v1555, %v1555
        %s1558 = scalar_lea.vmem %s245, 48 [#allocation9]
        %1559 = vst [vmem:[%s1558] sm:$0xf] %v1556
        %1560 = vst [vmem:[%s1558 + $0x4] sm:$0xf] %v1557
        %s1561 = sld [smem:[#allocation3 + $0x392]]
        %v1562 = vstv %s1561
        %v1563 = vmul.f32 %v881, %v1562
        %v1564 = vmul.f32 %v882, %v1562
        %s1565 = sld [smem:[#allocation3 + $0x393]]
        %v1566 = vstv %s1565
        %v1567 = vmul.f32 %v921, %v1566
        %v1568 = vmul.f32 %v922, %v1566
        %v1569 = vadd.f32 %v1563, %v1567
        %v1570 = vadd.f32 %v1564, %v1568
        %s1571 = sld [smem:[#allocation3 + $0x394]]
        %v1572 = vstv %s1571
        %v1573 = vmul.f32 %v961, %v1572
        %v1574 = vmul.f32 %v962, %v1572
        %v1575 = vadd.f32 %v1569, %v1573
        %v1576 = vadd.f32 %v1570, %v1574
        %s1577 = sld [smem:[#allocation3 + $0x395]]
        %v1578 = vstv %s1577
        %v1579 = vmul.f32 %v1001, %v1578
        %v1580 = vmul.f32 %v1002, %v1578
        %v1581 = vadd.f32 %v1575, %v1579
        %v1582 = vadd.f32 %v1576, %v1580
        %s1583 = sld [smem:[#allocation3 + $0x396]]
        %v1584 = vstv %s1583
        %v1585 = vmul.f32 %v1041, %v1584
        %v1586 = vmul.f32 %v1042, %v1584
        %v1587 = vadd.f32 %v1581, %v1585
        %v1588 = vadd.f32 %v1582, %v1586
        %s1589 = sld [smem:[#allocation3 + $0x397]]
        %v1590 = vstv %s1589
        %v1591 = vmul.f32 %v1081, %v1590
        %v1592 = vmul.f32 %v1082, %v1590
        %v1593 = vadd.f32 %v1587, %v1591
        %v1594 = vadd.f32 %v1588, %v1592
        %s1595 = sld [smem:[#allocation3 + $0x398]]
        %v1596 = vstv %s1595
        %v1597 = vmul.f32 %v1121, %v1596
        %v1598 = vmul.f32 %v1122, %v1596
        %v1599 = vadd.f32 %v1593, %v1597
        %v1600 = vadd.f32 %v1594, %v1598
        %s1601 = sld [smem:[#allocation3 + $0x399]]
        %v1602 = vstv %s1601
        %v1603 = vmul.f32 %v1161, %v1602
        %v1604 = vmul.f32 %v1162, %v1602
        %v1605 = vadd.f32 %v1599, %v1603
        %v1606 = vadd.f32 %v1600, %v1604
        %s1607 = sld [smem:[#allocation3 + $0x39a]]
        %v1608 = vstv %s1607
        %v1609 = vadd.f32 %v1605, %v1608
        %v1610 = vadd.f32 %v1606, %v1608
        %v1611 = vmax.f32 %v1609, 0.0
        %v1612 = vmax.f32 %v1610, 0.0
        %v1613 = vpack.c.bf16 %v1611, %v1611
        %v1614 = vpack.c.bf16 %v1612, %v1612
        %s1615 = scalar_lea.vmem %s245, 56 [#allocation9]
        %1616 = vst [vmem:[%s1615] sm:$0xf] %v1613
        %1617 = vst [vmem:[%s1615 + $0x4] sm:$0xf] %v1614
        %s1618 = sand.u32 %s125, 1
        %s1619 = scalar_lea.sflag [#allocation6], %s1618
        %s1620 = sand.u32 %s125, 1
        %s1621 = smul.addr %s1620, 64
        %s1622 = scalar_lea.vmem [#allocation9], %s1621
        // Predicated region
        $region41: #{tpu_custom_call.1} parent=31 // pred_check
          %p1623 = pneg %p135
        $region42: #{tpu_custom_call.1} parent=31 // pred_check_branch
          %1625 = sbr.rel (%p1623) target = $region44
        $region43: #{tpu_custom_call.1} parent=31 // pred_region
          #allocation11 [shape = 'u32[6]{0}', space=smem, size = 0x18, scoped, tag = 'DMA stride descriptor']
          %s1626 = smul.u32 2, %s35
          %1628 = vsyncadd %s1619, 0
          %s1629 = smul.addr %s34, 32
          %s1630 = sadd.s32 %s1626, %s1629
          %s1631 = smul.addr %s1630, 4
          %s1632 = scalar_lea.hbm %s4, %s1631
          %s1634 = sshll.u32 1, 14
          %s1635 = sxor.u32 4294967295, %s1634
          %s1638 = sshll.u32 7, 18
          %s1639 = sxor.u32 4294967295, %s1638
          %s1640 = sand.u32 0, %s1639
          %s1642 = sor.u32 %s1640, 0
          %s1643 = sshll.u32 %s1622, 4
          %s1644 = int_to_ptr.vmem [resolvable:$true] %s1643
          %s1645 = sshll.u32 %s1632, 4
          %s1646 = int_to_ptr.hbm [resolvable:$true] %s1645
          %1652 = sst [smem:[#allocation11]] 128
          %s1653 = scalar_lea.smem [#allocation11], 1
          %1654 = sst [smem:[%s1653]] 256
          %s1655 = scalar_lea.smem [#allocation11], 2
          %1656 = sst [smem:[%s1655]] 2
          %s1657 = scalar_lea.smem [#allocation11], 3
          %1658 = sst [smem:[%s1657]] 64
          %s1659 = scalar_lea.smem [#allocation11], 4
          %1660 = sst [smem:[%s1659]] 64
          %s1661 = scalar_lea.smem [#allocation11], 5
          %1662 = sst [smem:[%s1661]] 4
          %1664 = dma.general %s1644, 1024, %s1646, %s1619, [#allocation10], [#allocation11], %s1642, 0
        $region44: #{tpu_custom_call.1} parent=31 // pred_fallthru
          _
      $region32: #{tpu_custom_call.1} parent=5 // pred_fallthru
        _
      %p1665 = scmp.le.s32.totalorder 2, %s25
      // Predicated region
      $region45: #{tpu_custom_call.1} parent=5 // pred_check
        %p1666 = pneg %p1665
      $region46: #{tpu_custom_call.1} parent=5 // pred_check_branch
        %1668 = sbr.rel (%p1666) target = $region48
      $region47: #{tpu_custom_call.1} parent=5 // pred_region
        %s1669 = ssub.s32 %s25, 2
        // Predicated region
        $region49: #{tpu_custom_call.1} parent=47 // pred_check
          %p1670 = pneg %p141
        $region50: #{tpu_custom_call.1} parent=47 // pred_check_branch
          %1672 = sbr.rel (%p1670) target = $region52
        $region51: #{tpu_custom_call.1} parent=47 // pred_region
          %s1673 = sand.u32 %s126, 1
          %s1674 = scalar_lea.sflag [#allocation6], %s1673
          %s1675 = sand.u32 %s126, 1
          %s1676 = smul.addr %s1675, 64
          %s1677 = scalar_lea.vmem [#allocation9], %s1676
          %1679 = dma.done %s1674, 1024
        $region52: #{tpu_custom_call.1} parent=47 // pred_fallthru
          _
      $region48: #{tpu_custom_call.1} parent=5 // pred_fallthru
        _
    $region6: #{tpu_custom_call.1} parent=1 // loop_footer
      %s29 = sadd.s32 1, %s25
    $region7: #{tpu_custom_call.1} parent=1 // loop_footer_branch
      %24 = sbr.rel target = $region3
    $region8: #{tpu_custom_call.1} parent=1 // loop_exit
      _
    %1680 = vsyncpa [#allocation5], 1
    %s1681 = scalar_lea.sflag [#allocation5], 1
    %1682 = vsyncpa %s1681, 1
    %1683 = vsyncpa [#allocation8], 1
    %s1684 = scalar_lea.sflag [#allocation8], 1
    %1685 = vsyncpa %s1684, 1
    %1686 = vsyncpa [#allocation6], 1
    %s1687 = scalar_lea.sflag [#allocation6], 1
    %1688 = vsyncpa %s1687, 1

</llo_original>
